<compile_context>
chip_gen: v7x
topology: tpu7x:2x2x1
jax: 0.10.0
libtpu: 0.0.40
codegen_flags: <defaults>
</compile_context>

<pallas_src>
import functools

import jax
import jax.numpy as jnp
from jax import lax
from jax.experimental import pallas as pl
from jax.experimental.pallas import tpu as pltpu

THRESH = 0.5
DECAY = 0.8


# -----------------------------------------------------------------------------
# Fused kernel: conv3x3 -> mem_update -> conv3x3 -> +residual -> mem_update
# One grid step == one batch element; everything stays in VMEM in between.
# -----------------------------------------------------------------------------
def _spiking_block_kernel(x_ref, w1_ref, b1_ref, w2_ref, b2_ref,
                          c1m_ref, c2m_ref,
                          c1m_out, c1s_out, c2m_out, c2s_out,
                          slab_ref, *, H, W):
    """Shapes seen by the kernel (batch dim squeezed), all flat channels-last:

      x_ref, c*m_ref, *_out : (H*W, C)      f32   (row-major over (y, x), C on lanes)
      w1_ref, w2_ref        : (3, 3*C, C)   bf16  indexed [dy, dx*C + ci, co]
      b1_ref, b2_ref        : (1, C)        f32
      slab_ref              : ((H+2)*W, 3*C) bf16 VMEM scratch — dx-packed, row-padded
                              conv operand (implicit im2col along dx).
    """
    HW = H * W
    C = x_ref.shape[-1]
    CK = 3 * C                 # packed contraction depth
    HALO = W                   # one padded image row at the top and bottom of the slab

    # Zero the two halo row-blocks (~12 KiB, aligned).  The interior is overwritten
    # every step, so the rest of the slab never needs clearing.
    zero_halo = jnp.zeros((HALO, CK), slab_ref.dtype)
    slab_ref[0:HALO, :] = zero_halo
    slab_ref[HALO + HW:, :] = zero_halo

    # Column-edge masks in the flat (y*W + x) layout.
    col = lax.broadcasted_iota(jnp.int32, (HW, 1), 0) % W
    first_col = col == 0
    last_col = col == (W - 1)
    zrow = jnp.zeros((1, C), jnp.float32)

    def fill_slab(a):
        """slab[HALO + y*W + x, dx*C:(dx+1)*C] = a[y, x + dx - 1]   (0 off-image)."""
        left = jnp.where(first_col, 0.0,
                         jnp.concatenate([zrow, a[:HW - 1, :]], axis=0))
        right = jnp.where(last_col, 0.0,
                          jnp.concatenate([a[1:, :], zrow], axis=0))
        slab_ref[HALO:HALO + HW, 0:C] = left.astype(slab_ref.dtype)
        slab_ref[HALO:HALO + HW, C:2 * C] = a.astype(slab_ref.dtype)
        slab_ref[HALO:HALO + HW, 2 * C:CK] = right.astype(slab_ref.dtype)

    def conv3x3(w_ref):
        """3x3 conv as three (HW, 3C) x (3C, C) MXU matmuls over aligned dy slices."""
        acc = jnp.dot(slab_ref[0:HW, :], w_ref[0],
                      preferred_element_type=jnp.float32)
        for dy in (1, 2):
            acc = acc + jnp.dot(slab_ref[dy * W:dy * W + HW, :], w_ref[dy],
                                preferred_element_type=jnp.float32)
        return acc

    x = x_ref[...]                                    # (HW, C) f32; also the residual

    # ---- conv1 -> membrane update 1 (f32 VPU epilogue) ----
    fill_slab(x)
    out1 = conv3x3(w1_ref) + b1_ref[...]
    m1 = c1m_ref[...] * DECAY + out1
    c1m_out[...] = m1
    c1s_out[...] = (m1 > THRESH).astype(jnp.float32)

    # ---- conv2 on out1 (literal source: conv2(out)) + residual -> update 2 ----
    fill_slab(out1)
    out2 = conv3x3(w2_ref) + b2_ref[...] + x
    m2 = c2m_ref[...] * DECAY + out2
    c2m_out[...] = m2
    c2s_out[...] = (m2 > THRESH).astype(jnp.float32)


# -----------------------------------------------------------------------------
# Flat (B, H*W, C) channels-last entry point — use this inside an SNN time loop.
# -----------------------------------------------------------------------------
def spiking_basic_block_forward_flat(params, x, c1_mem, c2_mem, *, H, W):
    """x / c1_mem / c2_mem: (B, H*W, C) f32.  Returns (c1_mem', c1_spike, c2_mem',
    c2_spike), all (B, H*W, C) f32."""
    B, HW, C = x.shape
    assert HW == H * W
    assert params["w1"].shape == (3, 3 * C, C) and params["w2"].shape == (3, 3 * C, C), \
        "downsample=None requires inplanes == planes"

    act_spec = pl.BlockSpec((None, HW, C), lambda b: (b, 0, 0))
    out_sds = tuple(jax.ShapeDtypeStruct((B, HW, C), jnp.float32) for _ in range(4))

    return pl.pallas_call(
        functools.partial(_spiking_block_kernel, H=H, W=W),
        out_shape=out_sds,
        grid=(B,),
        in_specs=[
            act_spec,                                           # x (also residual)
            pl.BlockSpec((3, 3 * C, C), lambda b: (0, 0, 0)),   # w1 (bf16, resident)
            pl.BlockSpec((1, C), lambda b: (0, 0)),             # b1
            pl.BlockSpec((3, 3 * C, C), lambda b: (0, 0, 0)),   # w2
            pl.BlockSpec((1, C), lambda b: (0, 0)),             # b2
            act_spec,                                           # c1_mem
            act_spec,                                           # c2_mem
        ],
        out_specs=tuple(
            pl.BlockSpec((None, HW, C), lambda b: (b, 0, 0)) for _ in range(4)),
        scratch_shapes=[pltpu.VMEM(((H + 2) * W, 3 * C), jnp.bfloat16)],
        compiler_params=pltpu.CompilerParams(
            dimension_semantics=("parallel",),       # batch split across v7x's 2 TCs
            vmem_limit_bytes=32 * 1024 * 1024,
        ),
    )(x, params["w1"], params["b1"], params["w2"], params["b2"], c1_mem, c2_mem)


# -----------------------------------------------------------------------------
# NCHW wrapper matching SpikingBasicBlock.forward (layout conversion only here).
# -----------------------------------------------------------------------------
def spiking_basic_block_forward(params, x, c1_mem, c1_spike, c2_mem, c2_spike):
    """Returns (c2_spike, c1_mem, c1_spike, c2_mem, c2_spike), like the module."""
    del c1_spike, c2_spike   # unused: spike = act_fun(new mem)
    B, C, H, W = x.shape

    def to_flat(t):
        return jnp.transpose(t, (0, 2, 3, 1)).reshape(B, H * W, C).astype(jnp.float32)

    c1m, c1s, c2m, c2s = spiking_basic_block_forward_flat(
        params, to_flat(x), to_flat(c1_mem), to_flat(c2_mem), H=H, W=W)

    def to_nchw(t):
        return jnp.transpose(t.reshape(B, H, W, C), (0, 3, 1, 2))

    # drop2 (Dropout 0.2) is identity at inference time.
    return to_nchw(c2s), to_nchw(c1m), to_nchw(c1s), to_nchw(c2m), to_nchw(c2s)


# -----------------------------------------------------------------------------
# Parameter construction (PyTorch layout) + one-time conversion to kernel layout
# -----------------------------------------------------------------------------
def make_params(key, inplanes, planes):
    k1, k2, k3, k4 = jax.random.split(key, 4)
    bound1 = 1.0 / ((inplanes * 9) ** 0.5)
    bound2 = 1.0 / ((planes * 9) ** 0.5)
    return {
        "conv1_w": jax.random.uniform(k1, (planes, inplanes, 3, 3), jnp.float32, -bound1, bound1),
        "conv1_b": jax.random.uniform(k2, (planes,), jnp.float32, -bound1, bound1),
        "conv2_w": jax.random.uniform(k3, (planes, planes, 3, 3), jnp.float32, -bound2, bound2),
        "conv2_b": jax.random.uniform(k4, (planes,), jnp.float32, -bound2, bound2),
    }


def prepare_params(torch_params):
    """One-time reshape/cast (at init, not per step): (Cout, Cin, 3, 3) torch weights
    -> (dy, dx*Cin + ci, Cout) bf16 for the K-packed MXU matmuls."""
    def conv_w(w):
        co, ci = w.shape[0], w.shape[1]
        return jnp.transpose(w, (2, 3, 1, 0)).reshape(3, 3 * ci, co).astype(jnp.bfloat16)
    return {
        "w1": conv_w(torch_params["conv1_w"]),
        "b1": torch_params["conv1_b"].reshape(1, -1).astype(jnp.float32),
        "w2": conv_w(torch_params["conv2_w"]),
        "b2": torch_params["conv2_b"].reshape(1, -1).astype(jnp.float32),
    }


# -----------------------------------------------------------------------------
# Pure-JAX f32 reference (for validation only)
# -----------------------------------------------------------------------------
def _reference_forward(torch_params, x, c1_mem, c2_mem):
    dn = ("NCHW", "OIHW", "NCHW")

    def conv(inp, w, b):
        y = lax.conv_general_dilated(inp, w, window_strides=(1, 1), padding="SAME",
                                     dimension_numbers=dn,
                                     precision=lax.Precision.HIGHEST)
        return y + b.reshape(1, -1, 1, 1)

    out1 = conv(x, torch_params["conv1_w"], torch_params["conv1_b"])
    m1 = c1_mem * DECAY + out1
    s1 = (m1 > THRESH).astype(jnp.float32)
    out2 = conv(out1, torch_params["conv2_w"], torch_params["conv2_b"]) + x
    m2 = c2_mem * DECAY + out2
    s2 = (m2 > THRESH).astype(jnp.float32)
    return s2, m1, s1, m2, s2


if __name__ == "__main__":
    key = jax.random.PRNGKey(0)
    k_p, k_x, k_m1, k_m2 = jax.random.split(key, 4)

    # SpikingBasicBlock(inplanes=64, planes=64, stride=1, downsample=None) on 16x16 images.
    B, C, H, W = 2, 64, 16, 16
    torch_params = make_params(k_p, C, C)
    params = prepare_params(torch_params)

    x = jax.random.normal(k_x, (B, C, H, W), jnp.float32)
    c1_mem = 0.1 * jax.random.normal(k_m1, (B, C, H, W), jnp.float32)
    c1_spike = jnp.zeros((B, C, H, W), jnp.float32)
    c2_mem = 0.1 * jax.random.normal(k_m2, (B, C, H, W), jnp.float32)
    c2_spike = jnp.zeros((B, C, H, W), jnp.float32)

    fwd = jax.jit(spiking_basic_block_forward)
    outs = jax.block_until_ready(fwd(params, x, c1_mem, c1_spike, c2_mem, c2_spike))
    c2_s, c1_m, c1_s, c2_m, c2_s2 = outs

    for t in outs:
        assert t.shape == (B, C, H, W) and t.dtype == jnp.float32
    assert bool(jnp.all(jnp.isfinite(c1_m))) and bool(jnp.all(jnp.isfinite(c2_m)))

    # Spikes must be exactly the thresholding of the kernel's own membranes.
    assert bool(jnp.array_equal(c1_s, (c1_m > THRESH).astype(jnp.float32)))
    assert bool(jnp.array_equal(c2_s, (c2_m > THRESH).astype(jnp.float32)))
    assert bool(jnp.array_equal(c2_s, c2_s2))

    # Membranes vs. a pure-JAX f32 reference (kernel matmuls are bf16 -> loose tolerance).
    _, r1m, _, r2m, _ = _reference_forward(torch_params, x, c1_mem, c2_mem)
    assert bool(jnp.allclose(c1_m, r1m, atol=3e-2, rtol=3e-2))
    assert bool(jnp.allclose(c2_m, r2m, atol=3e-2, rtol=3e-2))

    print("KERNEL_OK")
</pallas_src>

<mosaic_0001>
module attributes {stable_mosaic.version = 11 : i64} {
  func.func @_spiking_block_kernel(%arg0: i32, %arg1: memref<1x256x64xf32, #tpu.memory_space<vmem>>, %arg2: memref<3x192x64xbf16, #tpu.memory_space<vmem>>, %arg3: memref<1x64xf32, #tpu.memory_space<vmem>>, %arg4: memref<3x192x64xbf16, #tpu.memory_space<vmem>>, %arg5: memref<1x64xf32, #tpu.memory_space<vmem>>, %arg6: memref<1x256x64xf32, #tpu.memory_space<vmem>>, %arg7: memref<1x256x64xf32, #tpu.memory_space<vmem>>, %arg8: memref<1x256x64xf32, #tpu.memory_space<vmem>>, %arg9: memref<1x256x64xf32, #tpu.memory_space<vmem>>, %arg10: memref<1x256x64xf32, #tpu.memory_space<vmem>>, %arg11: memref<1x256x64xf32, #tpu.memory_space<vmem>>, %arg12: memref<288x192xbf16, #tpu.memory_space<vmem>>) attributes {dimension_semantics = [#tpu.dimension_semantics<parallel>], iteration_bounds = array<i64: 2>, scalar_prefetch = 0 : i64, scratch_operands = 1 : i64, tpu.core_type = #tpu.core_type<tc>, window_params = [{transform_indices = @transform_0, window_bounds = array<i64: 1, 256, 64>}, {pipeline_mode = #tpu.pipeline_mode<synchronous>, transform_indices = @transform_1, window_bounds = array<i64: 3, 192, 64>}, {pipeline_mode = #tpu.pipeline_mode<synchronous>, transform_indices = @transform_2, window_bounds = array<i64: 1, 64>}, {pipeline_mode = #tpu.pipeline_mode<synchronous>, transform_indices = @transform_3, window_bounds = array<i64: 3, 192, 64>}, {pipeline_mode = #tpu.pipeline_mode<synchronous>, transform_indices = @transform_4, window_bounds = array<i64: 1, 64>}, {transform_indices = @transform_5, window_bounds = array<i64: 1, 256, 64>}, {transform_indices = @transform_6, window_bounds = array<i64: 1, 256, 64>}, {transform_indices = @transform_7, window_bounds = array<i64: 1, 256, 64>}, {transform_indices = @transform_8, window_bounds = array<i64: 1, 256, 64>}, {transform_indices = @transform_9, window_bounds = array<i64: 1, 256, 64>}, {transform_indices = @transform_10, window_bounds = array<i64: 1, 256, 64>}]} {
    %cst = arith.constant 0.000000e+00 : bf16
    %0 = vector.broadcast %cst : bf16 to vector<16x192xbf16>
    %c0 = arith.constant 0 : index
    %c0_0 = arith.constant 0 : index
    %1 = vector.load %arg12[%c0, %c0_0] : memref<288x192xbf16, #tpu.memory_space<vmem>>, vector<16x192xbf16>
    tpu.vector_store %arg12[%c0, %c0_0], %0 {strides = array<i32>} : memref<288x192xbf16, #tpu.memory_space<vmem>>, vector<16x192xbf16>,
    %c272 = arith.constant 272 : index
    %c0_1 = arith.constant 0 : index
    %2 = vector.load %arg12[%c272, %c0_1] : memref<288x192xbf16, #tpu.memory_space<vmem>>, vector<16x192xbf16>
    tpu.vector_store %arg12[%c272, %c0_1], %0 {strides = array<i32>} : memref<288x192xbf16, #tpu.memory_space<vmem>>, vector<16x192xbf16>,
    %3 = tpu.iota {dimensions = array<i32: 0>} : vector<256x1xi32>
    %c16_i32 = arith.constant 16 : i32
    %c0_i32 = arith.constant 0 : i32
    %4 = arith.cmpi eq, %c16_i32, %c0_i32 : i32
    %c1_i32 = arith.constant 1 : i32
    %5 = arith.select %4, %c1_i32, %c16_i32 : i32
    %6 = vector.broadcast %5 : i32 to vector<256x1xi32>
    %7 = arith.remsi %3, %6 : vector<256x1xi32>
    %c0_i32_2 = arith.constant 0 : i32
    %8 = vector.broadcast %c0_i32_2 : i32 to vector<256x1xi32>
    %9 = arith.cmpi ne, %7, %8 : vector<256x1xi32>
    %c0_i32_3 = arith.constant 0 : i32
    %10 = vector.broadcast %c0_i32_3 : i32 to vector<256x1xi32>
    %11 = arith.cmpi slt, %7, %10 : vector<256x1xi32>
    %c0_i32_4 = arith.constant 0 : i32
    %12 = arith.cmpi slt, %5, %c0_i32_4 : i32
    %13 = vector.broadcast %12 : i1 to vector<256x1xi1>
    %14 = vector.broadcast %13 : vector<256x1xi1> to vector<256x1xi1>
    %15 = arith.xori %11, %14 : vector<256x1xi1>
    %16 = arith.andi %15, %9 : vector<256x1xi1>
    %17 = vector.broadcast %5 : i32 to vector<256x1xi32>
    %18 = arith.addi %7, %17 : vector<256x1xi32>
    %19 = arith.select %16, %18, %7 : vector<256x1xi1>, vector<256x1xi32>
    %c0_i32_5 = arith.constant 0 : i32
    %20 = vector.broadcast %c0_i32_5 : i32 to vector<256x1xi32>
    %21 = arith.cmpi eq, %19, %20 : vector<256x1xi32>
    %c15_i32 = arith.constant 15 : i32
    %22 = vector.broadcast %c15_i32 : i32 to vector<256x1xi32>
    %23 = arith.cmpi eq, %19, %22 : vector<256x1xi32>
    %cst_6 = arith.constant 0.000000e+00 : f32
    %24 = vector.broadcast %cst_6 : f32 to vector<1x64xf32>
    %c0_7 = arith.constant 0 : index
    %c0_8 = arith.constant 0 : index
    %c0_9 = arith.constant 0 : index
    %25 = vector.load %arg1[%c0_7, %c0_8, %c0_9] : memref<1x256x64xf32, #tpu.memory_space<vmem>>, vector<1x256x64xf32>
    %26 = vector.shape_cast %25 : vector<1x256x64xf32> to vector<256x64xf32>
    %27 = vector.extract_strided_slice %26 {offsets = [0, 0], sizes = [255, 64], strides = [1, 1]} : vector<256x64xf32> to vector<255x64xf32>
    %28 = tpu.concatenate %24, %27 in 0 : vector<1x64xf32>, vector<255x64xf32> -> vector<256x64xf32>
    %cst_10 = arith.constant 0.000000e+00 : f32
    %29 = vector.shape_cast %21 : vector<256x1xi1> to vector<256x1xi1>
    %30 = vector.broadcast %29 : vector<256x1xi1> to vector<256x64xi1>
    %31 = vector.broadcast %cst_10 : f32 to vector<256x64xf32>
    %32 = arith.select %30, %31, %28 : vector<256x64xi1>, vector<256x64xf32>
    %33 = vector.extract_strided_slice %26 {offsets = [1, 0], sizes = [255, 64], strides = [1, 1]} : vector<256x64xf32> to vector<255x64xf32>
    %34 = tpu.concatenate %33, %24 in 0 : vector<255x64xf32>, vector<1x64xf32> -> vector<256x64xf32>
    %cst_11 = arith.constant 0.000000e+00 : f32
    %35 = vector.shape_cast %23 : vector<256x1xi1> to vector<256x1xi1>
    %36 = vector.broadcast %35 : vector<256x1xi1> to vector<256x64xi1>
    %37 = vector.broadcast %cst_11 : f32 to vector<256x64xf32>
    %38 = arith.select %36, %37, %34 : vector<256x64xi1>, vector<256x64xf32>
    %39 = arith.truncf %32 : vector<256x64xf32> to vector<256x64xbf16>
    %c16 = arith.constant 16 : index
    %c0_12 = arith.constant 0 : index
    %40 = vector.load %arg12[%c16, %c0_12] : memref<288x192xbf16, #tpu.memory_space<vmem>>, vector<256x64xbf16>
    tpu.vector_store %arg12[%c16, %c0_12], %39 {strides = array<i32>} : memref<288x192xbf16, #tpu.memory_space<vmem>>, vector<256x64xbf16>,
    %41 = arith.truncf %26 : vector<256x64xf32> to vector<256x64xbf16>
    %c16_13 = arith.constant 16 : index
    %c64 = arith.constant 64 : index
    %42 = vector.load %arg12[%c16_13, %c64] : memref<288x192xbf16, #tpu.memory_space<vmem>>, vector<256x64xbf16>
    tpu.vector_store %arg12[%c16_13, %c64], %41 {strides = array<i32>} : memref<288x192xbf16, #tpu.memory_space<vmem>>, vector<256x64xbf16>,
    %43 = arith.truncf %38 : vector<256x64xf32> to vector<256x64xbf16>
    %c16_14 = arith.constant 16 : index
    %c128 = arith.constant 128 : index
    %44 = vector.load %arg12[%c16_14, %c128] : memref<288x192xbf16, #tpu.memory_space<vmem>>, vector<256x64xbf16>
    tpu.vector_store %arg12[%c16_14, %c128], %43 {strides = array<i32>} : memref<288x192xbf16, #tpu.memory_space<vmem>>, vector<256x64xbf16>,
    %c0_15 = arith.constant 0 : index
    %c0_16 = arith.constant 0 : index
    %45 = vector.load %arg12[%c0_15, %c0_16] : memref<288x192xbf16, #tpu.memory_space<vmem>>, vector<256x192xbf16>
    %c0_17 = arith.constant 0 : index
    %c0_18 = arith.constant 0 : index
    %c0_19 = arith.constant 0 : index
    %46 = vector.load %arg2[%c0_17, %c0_18, %c0_19] : memref<3x192x64xbf16, #tpu.memory_space<vmem>>, vector<1x192x64xbf16>
    %47 = vector.shape_cast %46 : vector<1x192x64xbf16> to vector<192x64xbf16>
    %cst_20 = arith.constant dense<0.000000e+00> : vector<256x64xf32>
    %48 = tpu.matmul %45, %47, %cst_20 {dimension_numbers = #tpu.dot_dimension_numbers<[1], [0], [0], [1], [0, 0, 1, 1], [], []>} : vector<256x192xbf16>, vector<192x64xbf16>, vector<256x64xf32> -> vector<256x64xf32>
    %c16_21 = arith.constant 16 : index
    %c0_22 = arith.constant 0 : index
    %49 = vector.load %arg12[%c16_21, %c0_22] : memref<288x192xbf16, #tpu.memory_space<vmem>>, vector<256x192xbf16>
    %c1 = arith.constant 1 : index
    %c0_23 = arith.constant 0 : index
    %c0_24 = arith.constant 0 : index
    %50 = vector.load %arg2[%c1, %c0_23, %c0_24] : memref<3x192x64xbf16, #tpu.memory_space<vmem>>, vector<1x192x64xbf16>
    %51 = vector.shape_cast %50 : vector<1x192x64xbf16> to vector<192x64xbf16>
    %cst_25 = arith.constant dense<0.000000e+00> : vector<256x64xf32>
    %52 = tpu.matmul %49, %51, %cst_25 {dimension_numbers = #tpu.dot_dimension_numbers<[1], [0], [0], [1], [0, 0, 1, 1], [], []>} : vector<256x192xbf16>, vector<192x64xbf16>, vector<256x64xf32> -> vector<256x64xf32>
    %53 = arith.addf %48, %52 : vector<256x64xf32>
    %c32 = arith.constant 32 : index
    %c0_26 = arith.constant 0 : index
    %54 = vector.load %arg12[%c32, %c0_26] : memref<288x192xbf16, #tpu.memory_space<vmem>>, vector<256x192xbf16>
    %c2 = arith.constant 2 : index
    %c0_27 = arith.constant 0 : index
    %c0_28 = arith.constant 0 : index
    %55 = vector.load %arg2[%c2, %c0_27, %c0_28] : memref<3x192x64xbf16, #tpu.memory_space<vmem>>, vector<1x192x64xbf16>
    %56 = vector.shape_cast %55 : vector<1x192x64xbf16> to vector<192x64xbf16>
    %cst_29 = arith.constant dense<0.000000e+00> : vector<256x64xf32>
    %57 = tpu.matmul %54, %56, %cst_29 {dimension_numbers = #tpu.dot_dimension_numbers<[1], [0], [0], [1], [0, 0, 1, 1], [], []>} : vector<256x192xbf16>, vector<192x64xbf16>, vector<256x64xf32> -> vector<256x64xf32>
    %58 = arith.addf %53, %57 : vector<256x64xf32>
    %c0_30 = arith.constant 0 : index
    %c0_31 = arith.constant 0 : index
    %59 = vector.load %arg3[%c0_30, %c0_31] : memref<1x64xf32, #tpu.memory_space<vmem>>, vector<1x64xf32>
    %60 = vector.broadcast %59 : vector<1x64xf32> to vector<256x64xf32>
    %61 = arith.addf %58, %60 : vector<256x64xf32>
    %c0_32 = arith.constant 0 : index
    %c0_33 = arith.constant 0 : index
    %c0_34 = arith.constant 0 : index
    %62 = vector.load %arg6[%c0_32, %c0_33, %c0_34] : memref<1x256x64xf32, #tpu.memory_space<vmem>>, vector<1x256x64xf32>
    %63 = vector.shape_cast %62 : vector<1x256x64xf32> to vector<256x64xf32>
    %cst_35 = arith.constant 8.000000e-01 : f32
    %64 = vector.broadcast %cst_35 : f32 to vector<256x64xf32>
    %65 = arith.mulf %63, %64 : vector<256x64xf32>
    %66 = arith.addf %65, %61 : vector<256x64xf32>
    %c0_36 = arith.constant 0 : index
    %c0_37 = arith.constant 0 : index
    %c0_38 = arith.constant 0 : index
    %67 = vector.load %arg8[%c0_36, %c0_37, %c0_38] : memref<1x256x64xf32, #tpu.memory_space<vmem>>, vector<1x256x64xf32>
    %68 = vector.shape_cast %67 : vector<1x256x64xf32> to vector<256x64xf32>
    %69 = vector.shape_cast %66 : vector<256x64xf32> to vector<1x256x64xf32>
    tpu.vector_store %arg8[%c0_36, %c0_37, %c0_38], %69 {strides = array<i32>} : memref<1x256x64xf32, #tpu.memory_space<vmem>>, vector<1x256x64xf32>,
    %cst_39 = arith.constant 5.000000e-01 : f32
    %70 = vector.broadcast %cst_39 : f32 to vector<256x64xf32>
    %71 = arith.cmpf ogt, %66, %70 : vector<256x64xf32>
    %72 = arith.extui %71 : vector<256x64xi1> to vector<256x64xi32>
    %73 = arith.sitofp %72 : vector<256x64xi32> to vector<256x64xf32>
    %c0_40 = arith.constant 0 : index
    %c0_41 = arith.constant 0 : index
    %c0_42 = arith.constant 0 : index
    %74 = vector.load %arg9[%c0_40, %c0_41, %c0_42] : memref<1x256x64xf32, #tpu.memory_space<vmem>>, vector<1x256x64xf32>
    %75 = vector.shape_cast %74 : vector<1x256x64xf32> to vector<256x64xf32>
    %76 = vector.shape_cast %73 : vector<256x64xf32> to vector<1x256x64xf32>
    tpu.vector_store %arg9[%c0_40, %c0_41, %c0_42], %76 {strides = array<i32>} : memref<1x256x64xf32, #tpu.memory_space<vmem>>, vector<1x256x64xf32>,
    %77 = vector.extract_strided_slice %61 {offsets = [0, 0], sizes = [255, 64], strides = [1, 1]} : vector<256x64xf32> to vector<255x64xf32>
    %78 = tpu.concatenate %24, %77 in 0 : vector<1x64xf32>, vector<255x64xf32> -> vector<256x64xf32>
    %cst_43 = arith.constant 0.000000e+00 : f32
    %79 = vector.shape_cast %21 : vector<256x1xi1> to vector<256x1xi1>
    %80 = vector.broadcast %79 : vector<256x1xi1> to vector<256x64xi1>
    %81 = vector.broadcast %cst_43 : f32 to vector<256x64xf32>
    %82 = arith.select %80, %81, %78 : vector<256x64xi1>, vector<256x64xf32>
    %83 = vector.extract_strided_slice %61 {offsets = [1, 0], sizes = [255, 64], strides = [1, 1]} : vector<256x64xf32> to vector<255x64xf32>
    %84 = tpu.concatenate %83, %24 in 0 : vector<255x64xf32>, vector<1x64xf32> -> vector<256x64xf32>
    %cst_44 = arith.constant 0.000000e+00 : f32
    %85 = vector.shape_cast %23 : vector<256x1xi1> to vector<256x1xi1>
    %86 = vector.broadcast %85 : vector<256x1xi1> to vector<256x64xi1>
    %87 = vector.broadcast %cst_44 : f32 to vector<256x64xf32>
    %88 = arith.select %86, %87, %84 : vector<256x64xi1>, vector<256x64xf32>
    %89 = arith.truncf %82 : vector<256x64xf32> to vector<256x64xbf16>
    %c16_45 = arith.constant 16 : index
    %c0_46 = arith.constant 0 : index
    %90 = vector.load %arg12[%c16_45, %c0_46] : memref<288x192xbf16, #tpu.memory_space<vmem>>, vector<256x64xbf16>
    tpu.vector_store %arg12[%c16_45, %c0_46], %89 {strides = array<i32>} : memref<288x192xbf16, #tpu.memory_space<vmem>>, vector<256x64xbf16>,
    %91 = arith.truncf %61 : vector<256x64xf32> to vector<256x64xbf16>
    %c16_47 = arith.constant 16 : index
    %c64_48 = arith.constant 64 : index
    %92 = vector.load %arg12[%c16_47, %c64_48] : memref<288x192xbf16, #tpu.memory_space<vmem>>, vector<256x64xbf16>
    tpu.vector_store %arg12[%c16_47, %c64_48], %91 {strides = array<i32>} : memref<288x192xbf16, #tpu.memory_space<vmem>>, vector<256x64xbf16>,
    %93 = arith.truncf %88 : vector<256x64xf32> to vector<256x64xbf16>
    %c16_49 = arith.constant 16 : index
    %c128_50 = arith.constant 128 : index
    %94 = vector.load %arg12[%c16_49, %c128_50] : memref<288x192xbf16, #tpu.memory_space<vmem>>, vector<256x64xbf16>
    tpu.vector_store %arg12[%c16_49, %c128_50], %93 {strides = array<i32>} : memref<288x192xbf16, #tpu.memory_space<vmem>>, vector<256x64xbf16>,
    %c0_51 = arith.constant 0 : index
    %c0_52 = arith.constant 0 : index
    %95 = vector.load %arg12[%c0_51, %c0_52] : memref<288x192xbf16, #tpu.memory_space<vmem>>, vector<256x192xbf16>
    %c0_53 = arith.constant 0 : index
    %c0_54 = arith.constant 0 : index
    %c0_55 = arith.constant 0 : index
    %96 = vector.load %arg4[%c0_53, %c0_54, %c0_55] : memref<3x192x64xbf16, #tpu.memory_space<vmem>>, vector<1x192x64xbf16>
    %97 = vector.shape_cast %96 : vector<1x192x64xbf16> to vector<192x64xbf16>
    %cst_56 = arith.constant dense<0.000000e+00> : vector<256x64xf32>
    %98 = tpu.matmul %95, %97, %cst_56 {dimension_numbers = #tpu.dot_dimension_numbers<[1], [0], [0], [1], [0, 0, 1, 1], [], []>} : vector<256x192xbf16>, vector<192x64xbf16>, vector<256x64xf32> -> vector<256x64xf32>
    %c16_57 = arith.constant 16 : index
    %c0_58 = arith.constant 0 : index
    %99 = vector.load %arg12[%c16_57, %c0_58] : memref<288x192xbf16, #tpu.memory_space<vmem>>, vector<256x192xbf16>
    %c1_59 = arith.constant 1 : index
    %c0_60 = arith.constant 0 : index
    %c0_61 = arith.constant 0 : index
    %100 = vector.load %arg4[%c1_59, %c0_60, %c0_61] : memref<3x192x64xbf16, #tpu.memory_space<vmem>>, vector<1x192x64xbf16>
    %101 = vector.shape_cast %100 : vector<1x192x64xbf16> to vector<192x64xbf16>
    %cst_62 = arith.constant dense<0.000000e+00> : vector<256x64xf32>
    %102 = tpu.matmul %99, %101, %cst_62 {dimension_numbers = #tpu.dot_dimension_numbers<[1], [0], [0], [1], [0, 0, 1, 1], [], []>} : vector<256x192xbf16>, vector<192x64xbf16>, vector<256x64xf32> -> vector<256x64xf32>
    %103 = arith.addf %98, %102 : vector<256x64xf32>
    %c32_63 = arith.constant 32 : index
    %c0_64 = arith.constant 0 : index
    %104 = vector.load %arg12[%c32_63, %c0_64] : memref<288x192xbf16, #tpu.memory_space<vmem>>, vector<256x192xbf16>
    %c2_65 = arith.constant 2 : index
    %c0_66 = arith.constant 0 : index
    %c0_67 = arith.constant 0 : index
    %105 = vector.load %arg4[%c2_65, %c0_66, %c0_67] : memref<3x192x64xbf16, #tpu.memory_space<vmem>>, vector<1x192x64xbf16>
    %106 = vector.shape_cast %105 : vector<1x192x64xbf16> to vector<192x64xbf16>
    %cst_68 = arith.constant dense<0.000000e+00> : vector<256x64xf32>
    %107 = tpu.matmul %104, %106, %cst_68 {dimension_numbers = #tpu.dot_dimension_numbers<[1], [0], [0], [1], [0, 0, 1, 1], [], []>} : vector<256x192xbf16>, vector<192x64xbf16>, vector<256x64xf32> -> vector<256x64xf32>
    %108 = arith.addf %103, %107 : vector<256x64xf32>
    %c0_69 = arith.constant 0 : index
    %c0_70 = arith.constant 0 : index
    %109 = vector.load %arg5[%c0_69, %c0_70] : memref<1x64xf32, #tpu.memory_space<vmem>>, vector<1x64xf32>
    %110 = vector.broadcast %109 : vector<1x64xf32> to vector<256x64xf32>
    %111 = arith.addf %108, %110 : vector<256x64xf32>
    %112 = arith.addf %111, %26 : vector<256x64xf32>
    %c0_71 = arith.constant 0 : index
    %c0_72 = arith.constant 0 : index
    %c0_73 = arith.constant 0 : index
    %113 = vector.load %arg7[%c0_71, %c0_72, %c0_73] : memref<1x256x64xf32, #tpu.memory_space<vmem>>, vector<1x256x64xf32>
    %114 = vector.shape_cast %113 : vector<1x256x64xf32> to vector<256x64xf32>
    %cst_74 = arith.constant 8.000000e-01 : f32
    %115 = vector.broadcast %cst_74 : f32 to vector<256x64xf32>
    %116 = arith.mulf %114, %115 : vector<256x64xf32>
    %117 = arith.addf %116, %112 : vector<256x64xf32>
    %c0_75 = arith.constant 0 : index
    %c0_76 = arith.constant 0 : index
    %c0_77 = arith.constant 0 : index
    %118 = vector.load %arg10[%c0_75, %c0_76, %c0_77] : memref<1x256x64xf32, #tpu.memory_space<vmem>>, vector<1x256x64xf32>
    %119 = vector.shape_cast %118 : vector<1x256x64xf32> to vector<256x64xf32>
    %120 = vector.shape_cast %117 : vector<256x64xf32> to vector<1x256x64xf32>
    tpu.vector_store %arg10[%c0_75, %c0_76, %c0_77], %120 {strides = array<i32>} : memref<1x256x64xf32, #tpu.memory_space<vmem>>, vector<1x256x64xf32>,
    %cst_78 = arith.constant 5.000000e-01 : f32
    %121 = vector.broadcast %cst_78 : f32 to vector<256x64xf32>
    %122 = arith.cmpf ogt, %117, %121 : vector<256x64xf32>
    %123 = arith.extui %122 : vector<256x64xi1> to vector<256x64xi32>
    %124 = arith.sitofp %123 : vector<256x64xi32> to vector<256x64xf32>
    %c0_79 = arith.constant 0 : index
    %c0_80 = arith.constant 0 : index
    %c0_81 = arith.constant 0 : index
    %125 = vector.load %arg11[%c0_79, %c0_80, %c0_81] : memref<1x256x64xf32, #tpu.memory_space<vmem>>, vector<1x256x64xf32>
    %126 = vector.shape_cast %125 : vector<1x256x64xf32> to vector<256x64xf32>
    %127 = vector.shape_cast %124 : vector<256x64xf32> to vector<1x256x64xf32>
    tpu.vector_store %arg11[%c0_79, %c0_80, %c0_81], %127 {strides = array<i32>} : memref<1x256x64xf32, #tpu.memory_space<vmem>>, vector<1x256x64xf32>,
    return
  }
  func.func @transform_0(%arg0: i32) -> (i32, i32, i32) {
    %c0_i32 = arith.constant 0 : i32
    %c0_i32_0 = arith.constant 0 : i32
    %c0_i32_1 = arith.constant 0 : i32
    return %arg0, %c0_i32, %c0_i32_0 : i32, i32, i32
  }
  func.func @transform_1(%arg0: i32) -> (i32, i32, i32) {
    %c0_i32 = arith.constant 0 : i32
    %c0_i32_0 = arith.constant 0 : i32
    %c0_i32_1 = arith.constant 0 : i32
    %c0_i32_2 = arith.constant 0 : i32
    return %c0_i32, %c0_i32_0, %c0_i32_1 : i32, i32, i32
  }
  func.func @transform_2(%arg0: i32) -> (i32, i32) {
    %c0_i32 = arith.constant 0 : i32
    %c0_i32_0 = arith.constant 0 : i32
    %c0_i32_1 = arith.constant 0 : i32
    return %c0_i32, %c0_i32_0 : i32, i32
  }
  func.func @transform_3(%arg0: i32) -> (i32, i32, i32) {
    %c0_i32 = arith.constant 0 : i32
    %c0_i32_0 = arith.constant 0 : i32
    %c0_i32_1 = arith.constant 0 : i32
    %c0_i32_2 = arith.constant 0 : i32
    return %c0_i32, %c0_i32_0, %c0_i32_1 : i32, i32, i32
  }
  func.func @transform_4(%arg0: i32) -> (i32, i32) {
    %c0_i32 = arith.constant 0 : i32
    %c0_i32_0 = arith.constant 0 : i32
    %c0_i32_1 = arith.constant 0 : i32
    return %c0_i32, %c0_i32_0 : i32, i32
  }
  func.func @transform_5(%arg0: i32) -> (i32, i32, i32) {
    %c0_i32 = arith.constant 0 : i32
    %c0_i32_0 = arith.constant 0 : i32
    %c0_i32_1 = arith.constant 0 : i32
    return %arg0, %c0_i32, %c0_i32_0 : i32, i32, i32
  }
  func.func @transform_6(%arg0: i32) -> (i32, i32, i32) {
    %c0_i32 = arith.constant 0 : i32
    %c0_i32_0 = arith.constant 0 : i32
    %c0_i32_1 = arith.constant 0 : i32
    return %arg0, %c0_i32, %c0_i32_0 : i32, i32, i32
  }
  func.func @transform_7(%arg0: i32) -> (i32, i32, i32) {
    %c0_i32 = arith.constant 0 : i32
    %c0_i32_0 = arith.constant 0 : i32
    %c0_i32_1 = arith.constant 0 : i32
    return %arg0, %c0_i32, %c0_i32_0 : i32, i32, i32
  }
  func.func @transform_8(%arg0: i32) -> (i32, i32, i32) {
    %c0_i32 = arith.constant 0 : i32
    %c0_i32_0 = arith.constant 0 : i32
    %c0_i32_1 = arith.constant 0 : i32
    return %arg0, %c0_i32, %c0_i32_0 : i32, i32, i32
  }
  func.func @transform_9(%arg0: i32) -> (i32, i32, i32) {
    %c0_i32 = arith.constant 0 : i32
    %c0_i32_0 = arith.constant 0 : i32
    %c0_i32_1 = arith.constant 0 : i32
    return %arg0, %c0_i32, %c0_i32_0 : i32, i32, i32
  }
  func.func @transform_10(%arg0: i32) -> (i32, i32, i32) {
    %c0_i32 = arith.constant 0 : i32
    %c0_i32_0 = arith.constant 0 : i32
    %c0_i32_1 = arith.constant 0 : i32
    return %arg0, %c0_i32, %c0_i32_0 : i32, i32, i32
  }
}

</mosaic_0001>

<llo_original>
// kernel: spiking_basic_block_forward.1
$region0: #{spiking_basic_block_forward.1}
  #allocation0 [shape = 'u32[]', space=smem, size = 0x4, offset = 0x4, fixed_abs, tag = 'smem constant byte address 0x4 - core index']
  #allocation1 [shape = 'u32[144,128]{1,0:T(1,128)}', space=vmem, size = 0x12000, scoped, tag = 'internal scratch']
  #allocation2 [shape = 'bf16[288,192]{1,0:T(16,128)(2,1)}', space=vmem, size = 0x24000, scoped, tag = 'scratch operand']
  %s0 = inlined_call_operand.vmem [shape: f32[2,256,64], index: 0, kind: input, shape index: {}]
  %s1 = inlined_call_operand.vmem [shape: bf16[3,192,64], index: 1, kind: input, shape index: {}]
  %s2 = inlined_call_operand.vmem [shape: f32[1,64], index: 2, kind: input, shape index: {}]
  %s3 = inlined_call_operand.vmem [shape: bf16[3,192,64], index: 3, kind: input, shape index: {}]
  %s4 = inlined_call_operand.vmem [shape: f32[1,64], index: 4, kind: input, shape index: {}]
  %s5 = inlined_call_operand.hbm [shape: f32[2,256,64], index: 5, kind: input, shape index: {}]
  %s6 = inlined_call_operand.hbm [shape: f32[2,256,64], index: 6, kind: input, shape index: {}]
  %s7 = inlined_call_operand.hbm [shape: f32[2,256,64], index: 7, kind: output, shape index: {0}]
  %s8 = inlined_call_operand.hbm [shape: f32[2,256,64], index: 8, kind: output, shape index: {1}]
  %s9 = inlined_call_operand.hbm [shape: f32[2,256,64], index: 9, kind: output, shape index: {2}]
  %s10 = inlined_call_operand.vmem [shape: f32[2,256,64], index: 10, kind: output, shape index: {3}]
  %11 = xla_tuple %s7, %s8, %s9, %s10
  %s12 = sld [smem:[#allocation0]]
  $region93: #{spiking_basic_block_forward.1} parent=0
    _
  %s14 = ssub.s32 1, %s12
  %s15 = scalar_select 0, %s14, %s12
  $region1: #{spiking_basic_block_forward.1} parent=0
    #allocation3 [shape = 'u8[262144]{0}', space=vmem, size = 0x40000, scoped, tag = 'input window, operand 5']
    #allocation4 [shape = 's32[2]{0}', space=sflag, size = 0x8, scoped, tag = 'scoped memory for spiking_basic_block_forward.1']
    #allocation5 [shape = 's32[2]{0}', space=sflag, size = 0x8, scoped, tag = 'scoped memory for spiking_basic_block_forward.1']
    #allocation6 [shape = 'u8[262144]{0}', space=vmem, size = 0x40000, scoped, tag = 'input window, operand 6']
    #allocation7 [shape = 's32[2]{0}', space=sflag, size = 0x8, scoped, tag = 'scoped memory for spiking_basic_block_forward.1']
    #allocation8 [shape = 'u8[262144]{0}', space=vmem, size = 0x40000, scoped, tag = 'output window, operand 0']
    #allocation9 [shape = 'u8[262144]{0}', space=vmem, size = 0x40000, scoped, tag = 'output window, operand 1']
    #allocation10 [shape = 's32[2]{0}', space=sflag, size = 0x8, scoped, tag = 'scoped memory for spiking_basic_block_forward.1']
    #allocation11 [shape = 'u8[262144]{0}', space=vmem, size = 0x40000, scoped, tag = 'output window, operand 2']
    %16 = vsyncpa [#allocation4], 0
    %s17 = scalar_lea.sflag [#allocation4], 1
    %18 = vsyncpa %s17, 0
    %19 = vsyncpa [#allocation7], 0
    %s20 = scalar_lea.sflag [#allocation7], 1
    %21 = vsyncpa %s20, 0
    %22 = vsyncpa [#allocation5], 0
    %s23 = scalar_lea.sflag [#allocation5], 1
    %24 = vsyncpa %s23, 0
    %25 = vsyncpa [#allocation10], 0
    %s26 = scalar_lea.sflag [#allocation10], 1
    %27 = vsyncpa %s26, 0
    loop: start=0, step=1, limit=4
    $region2: #{spiking_basic_block_forward.1} parent=1 // loop_pre_header
      _
    $region3: #{spiking_basic_block_forward.1} parent=1 // loop_header
      %s29 = sphi 0, %s33
      %p30 = scmp.ge.s32.totalorder %s29, 4
      %s39 = sphi 0, %s41
      %s42 = sphi 0, %s39
      %s43 = sphi 0, %s42
      %s59 = sphi 0, %s43
      %s63 = sphi 0, %s63
      %s65 = sphi 0, %s63
      %s66 = sphi 0, %s65
      %s80 = sphi 0, %s66
      %s84 = sphi 0, %s84
      %s86 = sphi 0, %s84
      %s87 = sphi 0, %s86
      %s101 = sphi 0, %s87
      %s105 = sphi 0, %s105
      %s107 = sphi 0, %s105
      %s108 = sphi 0, %s107
      %s122 = sphi 0, %s108
      %s126 = sphi 0, %s126
      %s128 = sphi 0, %s126
      %s129 = sphi 0, %s128
      %s143 = sphi 0, %s129
      %s149 = sphi 0, %s151
      %s152 = sphi 0, %s149
      %s153 = sphi 0, %s152
      %s169 = sphi 0, %s153
      %s175 = sphi 0, %s177
      %s178 = sphi 0, %s175
      %s179 = sphi 0, %s178
      %s195 = sphi 0, %s179
      %s201 = sphi 0, %s203
      %s204 = sphi 0, %s201
      %s205 = sphi 0, %s204
      %s221 = sphi 0, %s205
      %s227 = sphi 0, %s229
      %s230 = sphi 0, %s227
      %s231 = sphi 0, %s230
      %s247 = sphi 0, %s231
      %s253 = sphi 0, %s255
      %s256 = sphi 0, %s253
      %s257 = sphi 0, %s256
      %s273 = sphi 0, %s257
      %s279 = sphi 0, %s281
      %s282 = sphi 0, %s279
      %s283 = sphi 0, %s282
      %s299 = sphi 0, %s283
    $region4: #{spiking_basic_block_forward.1} parent=1 // loop_header_branch
      %32 = sbr.rel (%p30) target = $region8
    $region5: #{spiking_basic_block_forward.1} parent=1 // loop_body
      %s34 = ssub.s32 %s29, 1
      %s35 = ssub.s32 %s29, 2
      %s36 = sadd.s32 %s29, 1
      %s37 = ssub.s32 %s29, %s36
      %p38 = scmp.eq.s32.totalorder %s37, 0
      %s40 = sadd.s32 %s39, 1
      %s41 = scalar_select %p38, %s39, %s40
      %p44 = pneg %p38
      %p45 = scmp.eq.s32.totalorder %s29, 1
      %p46 = por %p44, %p45
      %p47 = scmp.ne.s32.totalorder %s39, %s42
      %p48 = scmp.eq.s32.totalorder %s29, 0
      %p49 = por %p47, %p48
      %p50 = scmp.ne.s32.totalorder %s39, %s42
      %p51 = scmp.eq.s32.totalorder %s34, 1
      %p52 = por %p50, %p51
      %p53 = scmp.ne.s32.totalorder %s42, %s43
      %p54 = scmp.eq.s32.totalorder %s34, 0
      %p55 = por %p53, %p54
      %p56 = scmp.ne.s32.totalorder %s42, %s43
      %p57 = scmp.eq.s32.totalorder %s35, 1
      %p58 = por %p56, %p57
      %p60 = scmp.ne.s32.totalorder %s43, %s59
      %p61 = scmp.eq.s32.totalorder %s35, 0
      %p62 = por %p60, %p61
      %s64 = sadd.s32 %s63, 1
      %p67 = scmp.eq.s32.totalorder %s29, 1
      %p68 = scmp.ne.s32.totalorder %s63, %s65
      %p69 = scmp.eq.s32.totalorder %s29, 0
      %p70 = por %p68, %p69
      %p71 = scmp.ne.s32.totalorder %s63, %s65
      %p72 = scmp.eq.s32.totalorder %s34, 1
      %p73 = por %p71, %p72
      %p74 = scmp.ne.s32.totalorder %s65, %s66
      %p75 = scmp.eq.s32.totalorder %s34, 0
      %p76 = por %p74, %p75
      %p77 = scmp.ne.s32.totalorder %s65, %s66
      %p78 = scmp.eq.s32.totalorder %s35, 1
      %p79 = por %p77, %p78
      %p81 = scmp.ne.s32.totalorder %s66, %s80
      %p82 = scmp.eq.s32.totalorder %s35, 0
      %p83 = por %p81, %p82
      %s85 = sadd.s32 %s84, 1
      %p88 = scmp.eq.s32.totalorder %s29, 1
      %p89 = scmp.ne.s32.totalorder %s84, %s86
      %p90 = scmp.eq.s32.totalorder %s29, 0
      %p91 = por %p89, %p90
      %p92 = scmp.ne.s32.totalorder %s84, %s86
      %p93 = scmp.eq.s32.totalorder %s34, 1
      %p94 = por %p92, %p93
      %p95 = scmp.ne.s32.totalorder %s86, %s87
      %p96 = scmp.eq.s32.totalorder %s34, 0
      %p97 = por %p95, %p96
      %p98 = scmp.ne.s32.totalorder %s86, %s87
      %p99 = scmp.eq.s32.totalorder %s35, 1
      %p100 = por %p98, %p99
      %p102 = scmp.ne.s32.totalorder %s87, %s101
      %p103 = scmp.eq.s32.totalorder %s35, 0
      %p104 = por %p102, %p103
      %s106 = sadd.s32 %s105, 1
      %p109 = scmp.eq.s32.totalorder %s29, 1
      %p110 = scmp.ne.s32.totalorder %s105, %s107
      %p111 = scmp.eq.s32.totalorder %s29, 0
      %p112 = por %p110, %p111
      %p113 = scmp.ne.s32.totalorder %s105, %s107
      %p114 = scmp.eq.s32.totalorder %s34, 1
      %p115 = por %p113, %p114
      %p116 = scmp.ne.s32.totalorder %s107, %s108
      %p117 = scmp.eq.s32.totalorder %s34, 0
      %p118 = por %p116, %p117
      %p119 = scmp.ne.s32.totalorder %s107, %s108
      %p120 = scmp.eq.s32.totalorder %s35, 1
      %p121 = por %p119, %p120
      %p123 = scmp.ne.s32.totalorder %s108, %s122
      %p124 = scmp.eq.s32.totalorder %s35, 0
      %p125 = por %p123, %p124
      %s127 = sadd.s32 %s126, 1
      %p130 = scmp.eq.s32.totalorder %s29, 1
      %p131 = scmp.ne.s32.totalorder %s126, %s128
      %p132 = scmp.eq.s32.totalorder %s29, 0
      %p133 = por %p131, %p132
      %p134 = scmp.ne.s32.totalorder %s126, %s128
      %p135 = scmp.eq.s32.totalorder %s34, 1
      %p136 = por %p134, %p135
      %p137 = scmp.ne.s32.totalorder %s128, %s129
      %p138 = scmp.eq.s32.totalorder %s34, 0
      %p139 = por %p137, %p138
      %p140 = scmp.ne.s32.totalorder %s128, %s129
      %p141 = scmp.eq.s32.totalorder %s35, 1
      %p142 = por %p140, %p141
      %p144 = scmp.ne.s32.totalorder %s129, %s143
      %p145 = scmp.eq.s32.totalorder %s35, 0
      %p146 = por %p144, %p145
      %s147 = ssub.s32 %s29, %s36
      %p148 = scmp.eq.s32.totalorder %s147, 0
      %s150 = sadd.s32 %s149, 1
      %s151 = scalar_select %p148, %s149, %s150
      %p154 = pneg %p148
      %p155 = scmp.eq.s32.totalorder %s29, 1
      %p156 = por %p154, %p155
      %p157 = scmp.ne.s32.totalorder %s149, %s152
      %p158 = scmp.eq.s32.totalorder %s29, 0
      %p159 = por %p157, %p158
      %p160 = scmp.ne.s32.totalorder %s149, %s152
      %p161 = scmp.eq.s32.totalorder %s34, 1
      %p162 = por %p160, %p161
      %p163 = scmp.ne.s32.totalorder %s152, %s153
      %p164 = scmp.eq.s32.totalorder %s34, 0
      %p165 = por %p163, %p164
      %p166 = scmp.ne.s32.totalorder %s152, %s153
      %p167 = scmp.eq.s32.totalorder %s35, 1
      %p168 = por %p166, %p167
      %p170 = scmp.ne.s32.totalorder %s153, %s169
      %p171 = scmp.eq.s32.totalorder %s35, 0
      %p172 = por %p170, %p171
      %s173 = ssub.s32 %s29, %s36
      %p174 = scmp.eq.s32.totalorder %s173, 0
      %s176 = sadd.s32 %s175, 1
      %s177 = scalar_select %p174, %s175, %s176
      %p180 = pneg %p174
      %p181 = scmp.eq.s32.totalorder %s29, 1
      %p182 = por %p180, %p181
      %p183 = scmp.ne.s32.totalorder %s175, %s178
      %p184 = scmp.eq.s32.totalorder %s29, 0
      %p185 = por %p183, %p184
      %p186 = scmp.ne.s32.totalorder %s175, %s178
      %p187 = scmp.eq.s32.totalorder %s34, 1
      %p188 = por %p186, %p187
      %p189 = scmp.ne.s32.totalorder %s178, %s179
      %p190 = scmp.eq.s32.totalorder %s34, 0
      %p191 = por %p189, %p190
      %p192 = scmp.ne.s32.totalorder %s178, %s179
      %p193 = scmp.eq.s32.totalorder %s35, 1
      %p194 = por %p192, %p193
      %p196 = scmp.ne.s32.totalorder %s179, %s195
      %p197 = scmp.eq.s32.totalorder %s35, 0
      %p198 = por %p196, %p197
      %s199 = ssub.s32 %s29, %s36
      %p200 = scmp.eq.s32.totalorder %s199, 0
      %s202 = sadd.s32 %s201, 1
      %s203 = scalar_select %p200, %s201, %s202
      %p206 = pneg %p200
      %p207 = scmp.eq.s32.totalorder %s29, 1
      %p208 = por %p206, %p207
      %p209 = scmp.ne.s32.totalorder %s201, %s204
      %p210 = scmp.eq.s32.totalorder %s29, 0
      %p211 = por %p209, %p210
      %p212 = scmp.ne.s32.totalorder %s201, %s204
      %p213 = scmp.eq.s32.totalorder %s34, 1
      %p214 = por %p212, %p213
      %p215 = scmp.ne.s32.totalorder %s204, %s205
      %p216 = scmp.eq.s32.totalorder %s34, 0
      %p217 = por %p215, %p216
      %p218 = scmp.ne.s32.totalorder %s204, %s205
      %p219 = scmp.eq.s32.totalorder %s35, 1
      %p220 = por %p218, %p219
      %p222 = scmp.ne.s32.totalorder %s205, %s221
      %p223 = scmp.eq.s32.totalorder %s35, 0
      %p224 = por %p222, %p223
      %s225 = ssub.s32 %s29, %s36
      %p226 = scmp.eq.s32.totalorder %s225, 0
      %s228 = sadd.s32 %s227, 1
      %s229 = scalar_select %p226, %s227, %s228
      %p232 = pneg %p226
      %p233 = scmp.eq.s32.totalorder %s29, 1
      %p234 = por %p232, %p233
      %p235 = scmp.ne.s32.totalorder %s227, %s230
      %p236 = scmp.eq.s32.totalorder %s29, 0
      %p237 = por %p235, %p236
      %p238 = scmp.ne.s32.totalorder %s227, %s230
      %p239 = scmp.eq.s32.totalorder %s34, 1
      %p240 = por %p238, %p239
      %p241 = scmp.ne.s32.totalorder %s230, %s231
      %p242 = scmp.eq.s32.totalorder %s34, 0
      %p243 = por %p241, %p242
      %p244 = scmp.ne.s32.totalorder %s230, %s231
      %p245 = scmp.eq.s32.totalorder %s35, 1
      %p246 = por %p244, %p245
      %p248 = scmp.ne.s32.totalorder %s231, %s247
      %p249 = scmp.eq.s32.totalorder %s35, 0
      %p250 = por %p248, %p249
      %s251 = ssub.s32 %s29, %s36
      %p252 = scmp.eq.s32.totalorder %s251, 0
      %s254 = sadd.s32 %s253, 1
      %s255 = scalar_select %p252, %s253, %s254
      %p258 = pneg %p252
      %p259 = scmp.eq.s32.totalorder %s29, 1
      %p260 = por %p258, %p259
      %p261 = scmp.ne.s32.totalorder %s253, %s256
      %p262 = scmp.eq.s32.totalorder %s29, 0
      %p263 = por %p261, %p262
      %p264 = scmp.ne.s32.totalorder %s253, %s256
      %p265 = scmp.eq.s32.totalorder %s34, 1
      %p266 = por %p264, %p265
      %p267 = scmp.ne.s32.totalorder %s256, %s257
      %p268 = scmp.eq.s32.totalorder %s34, 0
      %p269 = por %p267, %p268
      %p270 = scmp.ne.s32.totalorder %s256, %s257
      %p271 = scmp.eq.s32.totalorder %s35, 1
      %p272 = por %p270, %p271
      %p274 = scmp.ne.s32.totalorder %s257, %s273
      %p275 = scmp.eq.s32.totalorder %s35, 0
      %p276 = por %p274, %p275
      %s277 = ssub.s32 %s29, %s36
      %p278 = scmp.eq.s32.totalorder %s277, 0
      %s280 = sadd.s32 %s279, 1
      %s281 = scalar_select %p278, %s279, %s280
      %p284 = pneg %p278
      %p285 = scmp.eq.s32.totalorder %s29, 1
      %p286 = por %p284, %p285
      %p287 = scmp.ne.s32.totalorder %s279, %s282
      %p288 = scmp.eq.s32.totalorder %s29, 0
      %p289 = por %p287, %p288
      %p290 = scmp.ne.s32.totalorder %s279, %s282
      %p291 = scmp.eq.s32.totalorder %s34, 1
      %p292 = por %p290, %p291
      %p293 = scmp.ne.s32.totalorder %s282, %s283
      %p294 = scmp.eq.s32.totalorder %s34, 0
      %p295 = por %p293, %p294
      %p296 = scmp.ne.s32.totalorder %s282, %s283
      %p297 = scmp.eq.s32.totalorder %s35, 1
      %p298 = por %p296, %p297
      %p300 = scmp.ne.s32.totalorder %s283, %s299
      %p301 = scmp.eq.s32.totalorder %s35, 0
      %p302 = por %p300, %p301
      %p303 = scmp.le.s32.totalorder 1, %s29
      %p304 = scmp.lt.s32.totalorder %s29, 3
      %p305 = pnand %p303, %p304
      %p306 = pneg %p305
      // Predicated region
      $region9: #{spiking_basic_block_forward.1} parent=5 // pred_check
        _
      $region10: #{spiking_basic_block_forward.1} parent=5 // pred_check_branch
        %308 = sbr.rel (%p305) target = $region12
      $region11: #{spiking_basic_block_forward.1} parent=5 // pred_region
        %s309 = ssub.s32 %s29, 1
        // Predicated region
        $region13: #{spiking_basic_block_forward.1} parent=11 // pred_check
          %p310 = pneg %p76
        $region14: #{spiking_basic_block_forward.1} parent=11 // pred_check_branch
          %312 = sbr.rel (%p310) target = $region16
        $region15: #{spiking_basic_block_forward.1} parent=11 // pred_region
          _
        $region16: #{spiking_basic_block_forward.1} parent=11 // pred_fallthru
          _
        // Predicated region
        $region17: #{spiking_basic_block_forward.1} parent=11 // pred_check
          %p313 = pneg %p97
        $region18: #{spiking_basic_block_forward.1} parent=11 // pred_check_branch
          %315 = sbr.rel (%p313) target = $region20
        $region19: #{spiking_basic_block_forward.1} parent=11 // pred_region
          _
        $region20: #{spiking_basic_block_forward.1} parent=11 // pred_fallthru
          _
        // Predicated region
        $region21: #{spiking_basic_block_forward.1} parent=11 // pred_check
          %p316 = pneg %p118
        $region22: #{spiking_basic_block_forward.1} parent=11 // pred_check_branch
          %318 = sbr.rel (%p316) target = $region24
        $region23: #{spiking_basic_block_forward.1} parent=11 // pred_region
          _
        $region24: #{spiking_basic_block_forward.1} parent=11 // pred_fallthru
          _
        // Predicated region
        $region25: #{spiking_basic_block_forward.1} parent=11 // pred_check
          %p319 = pneg %p139
        $region26: #{spiking_basic_block_forward.1} parent=11 // pred_check_branch
          %321 = sbr.rel (%p319) target = $region28
        $region27: #{spiking_basic_block_forward.1} parent=11 // pred_region
          _
        $region28: #{spiking_basic_block_forward.1} parent=11 // pred_fallthru
          _
      $region12: #{spiking_basic_block_forward.1} parent=5 // pred_fallthru
        _
      %p322 = scmp.lt.s32.totalorder %s29, 2
      // Predicated region
      $region29: #{spiking_basic_block_forward.1} parent=5 // pred_check
        %p323 = pneg %p322
      $region30: #{spiking_basic_block_forward.1} parent=5 // pred_check_branch
        %325 = sbr.rel (%p323) target = $region32
      $region31: #{spiking_basic_block_forward.1} parent=5 // pred_region
        // Predicated region
        $region33: #{spiking_basic_block_forward.1} parent=31 // pred_check
          %p326 = pneg %p49
        $region34: #{spiking_basic_block_forward.1} parent=31 // pred_check_branch
          %328 = sbr.rel (%p326) target = $region36
        $region35: #{spiking_basic_block_forward.1} parent=31 // pred_region
          %p329 = scmp.lt.s32.totalorder %s29, 1
          %s330 = scalar_select %p329, %s29, 1
          %s331 = smul.addr %s330, 32
          %s332 = smul.addr %s331, 8
          %s333 = scalar_lea.vmem %s0, %s332
        $region36: #{spiking_basic_block_forward.1} parent=31 // pred_fallthru
          _
        // Predicated region
        $region37: #{spiking_basic_block_forward.1} parent=31 // pred_check
          %p334 = pneg %p159
        $region38: #{spiking_basic_block_forward.1} parent=31 // pred_check_branch
          %336 = sbr.rel (%p334) target = $region40
        $region39: #{spiking_basic_block_forward.1} parent=31 // pred_region
          %s337 = sand.u32 %s149, 1
          %s338 = scalar_lea.sflag [#allocation4], %s337
          %s339 = sand.u32 %s149, 1
          %s340 = smul.addr %s339, 256
          %s341 = scalar_lea.vmem [#allocation3], %s340
          %s343 = ssub.s32 4096, 4096
          %344 = vsyncadd %s338, %s343
          %s345 = smul.addr %s29, 32
          %s346 = smul.addr %s345, 128
          %s347 = scalar_lea.hbm %s5, %s346
          %s348 = sshll.u32 %s341, 4
          %s349 = int_to_ptr.vmem [resolvable:$true] %s348
          %354 = dma.hbm_to_vmem [thread:$0]  %s347, 4096, %s349, %s338, 128, 128, 8
        $region40: #{spiking_basic_block_forward.1} parent=31 // pred_fallthru
          _
        // Predicated region
        $region41: #{spiking_basic_block_forward.1} parent=31 // pred_check
          %p355 = pneg %p185
        $region42: #{spiking_basic_block_forward.1} parent=31 // pred_check_branch
          %357 = sbr.rel (%p355) target = $region44
        $region43: #{spiking_basic_block_forward.1} parent=31 // pred_region
          %s358 = sand.u32 %s175, 1
          %s359 = scalar_lea.sflag [#allocation7], %s358
          %s360 = sand.u32 %s175, 1
          %s361 = smul.addr %s360, 256
          %s362 = scalar_lea.vmem [#allocation6], %s361
          %s364 = ssub.s32 4096, 4096
          %365 = vsyncadd %s359, %s364
          %s366 = smul.addr %s29, 32
          %s367 = smul.addr %s366, 128
          %s368 = scalar_lea.hbm %s6, %s367
          %s369 = sshll.u32 %s362, 4
          %s370 = int_to_ptr.vmem [resolvable:$true] %s369
          %375 = dma.hbm_to_vmem [thread:$0]  %s368, 4096, %s370, %s359, 128, 128, 8
        $region44: #{spiking_basic_block_forward.1} parent=31 // pred_fallthru
          _
      $region32: #{spiking_basic_block_forward.1} parent=5 // pred_fallthru
        _
      %p376 = scmp.le.s32.totalorder 1, %s29
      %p377 = scmp.lt.s32.totalorder %s29, 3
      %p378 = pnand %p376, %p377
      %p379 = pneg %p378
      // Predicated region
      $region45: #{spiking_basic_block_forward.1} parent=5 // pred_check
        _
      $region46: #{spiking_basic_block_forward.1} parent=5 // pred_check_branch
        %381 = sbr.rel (%p378) target = $region48
      $region47: #{spiking_basic_block_forward.1} parent=5 // pred_region
        %s382 = ssub.s32 %s29, 1
        %s383 = sand.u32 %s152, 1
        %s384 = scalar_lea.sflag [#allocation4], %s383
        %s385 = sand.u32 %s152, 1
        %s386 = smul.addr %s385, 256
        %s387 = scalar_lea.vmem [#allocation3], %s386
        // Predicated region
        $region49: #{spiking_basic_block_forward.1} parent=47 // pred_check
          %p388 = pneg %p165
        $region50: #{spiking_basic_block_forward.1} parent=47 // pred_check_branch
          %390 = sbr.rel (%p388) target = $region52
        $region51: #{spiking_basic_block_forward.1} parent=47 // pred_region
          %391 = dma.done %s384, 4096
        $region52: #{spiking_basic_block_forward.1} parent=47 // pred_fallthru
          _
        %s392 = sand.u32 %s178, 1
        %s393 = scalar_lea.sflag [#allocation7], %s392
        %s394 = sand.u32 %s178, 1
        %s395 = smul.addr %s394, 256
        %s396 = scalar_lea.vmem [#allocation6], %s395
        // Predicated region
        $region53: #{spiking_basic_block_forward.1} parent=47 // pred_check
          %p397 = pneg %p191
        $region54: #{spiking_basic_block_forward.1} parent=47 // pred_check_branch
          %399 = sbr.rel (%p397) target = $region56
        $region55: #{spiking_basic_block_forward.1} parent=47 // pred_region
          %400 = dma.done %s393, 4096
        $region56: #{spiking_basic_block_forward.1} parent=47 // pred_fallthru
          _
        %p401 = scmp.lt.s32.totalorder %s34, 1
        %s402 = scalar_select %p401, %s34, 1
        %s403 = smul.addr %s402, 32
        %s404 = smul.addr %s403, 8
        %s405 = scalar_lea.vmem %s0, %s404
        %p406 = pneg %p55
        %p407 = pneg %p52
        %p408 = pneg %p76
        %p409 = pneg %p73
        %p410 = pneg %p97
        %p411 = pneg %p94
        %p412 = pneg %p118
        %p413 = pneg %p115
        %p414 = pneg %p139
        %p415 = pneg %p136
        %s416 = sand.u32 %s152, 1
        %s417 = scalar_lea.sflag [#allocation4], %s416
        %s418 = sand.u32 %s152, 1
        %s419 = smul.addr %s418, 256
        %s420 = scalar_lea.vmem [#allocation3], %s419
        %p421 = pneg %p165
        %p422 = pneg %p162
        %s423 = sand.u32 %s178, 1
        %s424 = scalar_lea.sflag [#allocation7], %s423
        %s425 = sand.u32 %s178, 1
        %s426 = smul.addr %s425, 256
        %s427 = scalar_lea.vmem [#allocation6], %s426
        %p428 = pneg %p191
        %p429 = pneg %p188
        %p430 = pneg %p217
        %p431 = pneg %p214
        %s432 = sand.u32 %s204, 1
        %s433 = scalar_lea.sflag [#allocation5], %s432
        %s434 = sand.u32 %s204, 1
        %s435 = smul.addr %s434, 256
        %s436 = scalar_lea.vmem [#allocation8], %s435
        %p437 = pneg %p243
        %p438 = pneg %p240
        %s439 = sand.u32 %s34, 1
        %s440 = scalar_lea.sflag [#allocation10], %s439
        %s441 = sand.u32 %s230, 1
        %s442 = smul.addr %s441, 256
        %s443 = scalar_lea.vmem [#allocation9], %s442
        %p444 = pneg %p269
        %p445 = pneg %p266
        %s446 = sand.u32 %s34, 1
        %s447 = scalar_lea.sflag [#allocation10], %s446
        %s448 = sand.u32 %s256, 1
        %s449 = smul.addr %s448, 256
        %s450 = scalar_lea.vmem [#allocation11], %s449
        %p451 = pneg %p295
        %p452 = pneg %p292
        %p453 = scmp.lt.s32.totalorder %s34, 1
        %s454 = scalar_select %p453, %s34, 1
        %s455 = smul.addr %s454, 32
        %s456 = smul.addr %s455, 8
        %s457 = scalar_lea.vmem %s10, %s456
        %p458 = scmp.lt.s32.totalorder %s34, 1
        %s459 = scalar_select %p458, %s34, 1
        %s460 = smul.addr %s459, 32
        %s461 = smul.addr %s460, 8
        %s462 = scalar_lea.vmem %s0, %s461
        %p463 = scmp.lt.s32.totalorder %s34, 1
        %s464 = scalar_select %p463, %s34, 1
        %s465 = smul.addr %s464, 32
        %s466 = smul.addr %s465, 8
        %s467 = scalar_lea.vmem %s10, %s466
        %469 = vst [vmem:[#allocation2] sm:$0xff] 0
        %vm470 = vcmask 523264
        %471 = vst.msk [vmem:[#allocation2 + $0x8] sm:$0xff] %vm470, 0
        %472 = vst [vmem:[#allocation2 + $0x110] sm:$0xff] 0
        %473 = vst.msk [vmem:[#allocation2 + $0x118] sm:$0xff] %vm470, 0
        %v474 = vlaneseq
        %v475 = vshrl.u32 %v474, 7
        %v476 = vadd.s32 %v475, 8
        %v477 = vadd.s32 %v475, 16
        %v478 = vadd.s32 %v475, 24
        %v479 = vadd.s32 %v475, 32
        %v480 = vadd.s32 %v475, 40
        %v481 = vadd.s32 %v475, 48
        %v482 = vadd.s32 %v475, 56
        %v483 = vadd.s32 %v475, 64
        %v484 = vadd.s32 %v475, 72
        %v485 = vadd.s32 %v475, 80
        %v486 = vadd.s32 %v475, 88
        %v487 = vadd.s32 %v475, 96
        %v488 = vadd.s32 %v475, 104
        %v489 = vadd.s32 %v475, 112
        %v490 = vadd.s32 %v475, 120
        %v491 = vadd.s32 %v475, 128
        %v492 = vadd.s32 %v475, 136
        %v493 = vadd.s32 %v475, 144
        %v494 = vadd.s32 %v475, 152
        %v495 = vadd.s32 %v475, 160
        %v496 = vadd.s32 %v475, 168
        %v497 = vadd.s32 %v475, 176
        %v498 = vadd.s32 %v475, 184
        %v499 = vadd.s32 %v475, 192
        %v500 = vadd.s32 %v475, 200
        %v501 = vadd.s32 %v475, 208
        %v502 = vadd.s32 %v475, 216
        %v503 = vadd.s32 %v475, 224
        %v504 = vadd.s32 %v475, 232
        %v505 = vadd.s32 %v475, 240
        %v506 = vadd.s32 %v475, 248
        %vm507 = vcmp.lt.s32.totalorder %v475, 0
        %v508 = vsub.s32 0, %v475
        %v509 = vsel %vm507, %v508, %v475
        %v510 = vshrl.u32 %v509, 4
        %v511 = vand.u32 %v509, 15
        %v512 = vsub.s32 0, %v511
        %v513 = vsel %vm507, %v512, %v511
        %vm514 = vcmp.lt.s32.totalorder %v476, 0
        %v515 = vsub.s32 0, %v476
        %v516 = vsel %vm514, %v515, %v476
        %v517 = vshrl.u32 %v516, 4
        %v518 = vand.u32 %v516, 15
        %v519 = vsub.s32 0, %v518
        %v520 = vsel %vm514, %v519, %v518
        %vm521 = vcmp.lt.s32.totalorder %v477, 0
        %v522 = vsub.s32 0, %v477
        %v523 = vsel %vm521, %v522, %v477
        %v524 = vshrl.u32 %v523, 4
        %v525 = vand.u32 %v523, 15
        %v526 = vsub.s32 0, %v525
        %v527 = vsel %vm521, %v526, %v525
        %vm528 = vcmp.lt.s32.totalorder %v478, 0
        %v529 = vsub.s32 0, %v478
        %v530 = vsel %vm528, %v529, %v478
        %v531 = vshrl.u32 %v530, 4
        %v532 = vand.u32 %v530, 15
        %v533 = vsub.s32 0, %v532
        %v534 = vsel %vm528, %v533, %v532
        %vm535 = vcmp.lt.s32.totalorder %v479, 0
        %v536 = vsub.s32 0, %v479
        %v537 = vsel %vm535, %v536, %v479
        %v538 = vshrl.u32 %v537, 4
        %v539 = vand.u32 %v537, 15
        %v540 = vsub.s32 0, %v539
        %v541 = vsel %vm535, %v540, %v539
        %vm542 = vcmp.lt.s32.totalorder %v480, 0
        %v543 = vsub.s32 0, %v480
        %v544 = vsel %vm542, %v543, %v480
        %v545 = vshrl.u32 %v544, 4
        %v546 = vand.u32 %v544, 15
        %v547 = vsub.s32 0, %v546
        %v548 = vsel %vm542, %v547, %v546
        %vm549 = vcmp.lt.s32.totalorder %v481, 0
        %v550 = vsub.s32 0, %v481
        %v551 = vsel %vm549, %v550, %v481
        %v552 = vshrl.u32 %v551, 4
        %v553 = vand.u32 %v551, 15
        %v554 = vsub.s32 0, %v553
        %v555 = vsel %vm549, %v554, %v553
        %vm556 = vcmp.lt.s32.totalorder %v482, 0
        %v557 = vsub.s32 0, %v482
        %v558 = vsel %vm556, %v557, %v482
        %v559 = vshrl.u32 %v558, 4
        %v560 = vand.u32 %v558, 15
        %v561 = vsub.s32 0, %v560
        %v562 = vsel %vm556, %v561, %v560
        %vm563 = vcmp.lt.s32.totalorder %v483, 0
        %v564 = vsub.s32 0, %v483
        %v565 = vsel %vm563, %v564, %v483
        %v566 = vshrl.u32 %v565, 4
        %v567 = vand.u32 %v565, 15
        %v568 = vsub.s32 0, %v567
        %v569 = vsel %vm563, %v568, %v567
        %vm570 = vcmp.lt.s32.totalorder %v484, 0
        %v571 = vsub.s32 0, %v484
        %v572 = vsel %vm570, %v571, %v484
        %v573 = vshrl.u32 %v572, 4
        %v574 = vand.u32 %v572, 15
        %v575 = vsub.s32 0, %v574
        %v576 = vsel %vm570, %v575, %v574
        %vm577 = vcmp.lt.s32.totalorder %v485, 0
        %v578 = vsub.s32 0, %v485
        %v579 = vsel %vm577, %v578, %v485
        %v580 = vshrl.u32 %v579, 4
        %v581 = vand.u32 %v579, 15
        %v582 = vsub.s32 0, %v581
        %v583 = vsel %vm577, %v582, %v581
        %vm584 = vcmp.lt.s32.totalorder %v486, 0
        %v585 = vsub.s32 0, %v486
        %v586 = vsel %vm584, %v585, %v486
        %v587 = vshrl.u32 %v586, 4
        %v588 = vand.u32 %v586, 15
        %v589 = vsub.s32 0, %v588
        %v590 = vsel %vm584, %v589, %v588
        %vm591 = vcmp.lt.s32.totalorder %v487, 0
        %v592 = vsub.s32 0, %v487
        %v593 = vsel %vm591, %v592, %v487
        %v594 = vshrl.u32 %v593, 4
        %v595 = vand.u32 %v593, 15
        %v596 = vsub.s32 0, %v595
        %v597 = vsel %vm591, %v596, %v595
        %vm598 = vcmp.lt.s32.totalorder %v488, 0
        %v599 = vsub.s32 0, %v488
        %v600 = vsel %vm598, %v599, %v488
        %v601 = vshrl.u32 %v600, 4
        %v602 = vand.u32 %v600, 15
        %v603 = vsub.s32 0, %v602
        %v604 = vsel %vm598, %v603, %v602
        %vm605 = vcmp.lt.s32.totalorder %v489, 0
        %v606 = vsub.s32 0, %v489
        %v607 = vsel %vm605, %v606, %v489
        %v608 = vshrl.u32 %v607, 4
        %v609 = vand.u32 %v607, 15
        %v610 = vsub.s32 0, %v609
        %v611 = vsel %vm605, %v610, %v609
        %vm612 = vcmp.lt.s32.totalorder %v490, 0
        %v613 = vsub.s32 0, %v490
        %v614 = vsel %vm612, %v613, %v490
        %v615 = vshrl.u32 %v614, 4
        %v616 = vand.u32 %v614, 15
        %v617 = vsub.s32 0, %v616
        %v618 = vsel %vm612, %v617, %v616
        %vm619 = vcmp.lt.s32.totalorder %v491, 0
        %v620 = vsub.s32 0, %v491
        %v621 = vsel %vm619, %v620, %v491
        %v622 = vshrl.u32 %v621, 4
        %v623 = vand.u32 %v621, 15
        %v624 = vsub.s32 0, %v623
        %v625 = vsel %vm619, %v624, %v623
        %vm626 = vcmp.lt.s32.totalorder %v492, 0
        %v627 = vsub.s32 0, %v492
        %v628 = vsel %vm626, %v627, %v492
        %v629 = vshrl.u32 %v628, 4
        %v630 = vand.u32 %v628, 15
        %v631 = vsub.s32 0, %v630
        %v632 = vsel %vm626, %v631, %v630
        %vm633 = vcmp.lt.s32.totalorder %v493, 0
        %v634 = vsub.s32 0, %v493
        %v635 = vsel %vm633, %v634, %v493
        %v636 = vshrl.u32 %v635, 4
        %v637 = vand.u32 %v635, 15
        %v638 = vsub.s32 0, %v637
        %v639 = vsel %vm633, %v638, %v637
        %vm640 = vcmp.lt.s32.totalorder %v494, 0
        %v641 = vsub.s32 0, %v494
        %v642 = vsel %vm640, %v641, %v494
        %v643 = vshrl.u32 %v642, 4
        %v644 = vand.u32 %v642, 15
        %v645 = vsub.s32 0, %v644
        %v646 = vsel %vm640, %v645, %v644
        %vm647 = vcmp.lt.s32.totalorder %v495, 0
        %v648 = vsub.s32 0, %v495
        %v649 = vsel %vm647, %v648, %v495
        %v650 = vshrl.u32 %v649, 4
        %v651 = vand.u32 %v649, 15
        %v652 = vsub.s32 0, %v651
        %v653 = vsel %vm647, %v652, %v651
        %vm654 = vcmp.lt.s32.totalorder %v496, 0
        %v655 = vsub.s32 0, %v496
        %v656 = vsel %vm654, %v655, %v496
        %v657 = vshrl.u32 %v656, 4
        %v658 = vand.u32 %v656, 15
        %v659 = vsub.s32 0, %v658
        %v660 = vsel %vm654, %v659, %v658
        %vm661 = vcmp.lt.s32.totalorder %v497, 0
        %v662 = vsub.s32 0, %v497
        %v663 = vsel %vm661, %v662, %v497
        %v664 = vshrl.u32 %v663, 4
        %v665 = vand.u32 %v663, 15
        %v666 = vsub.s32 0, %v665
        %v667 = vsel %vm661, %v666, %v665
        %vm668 = vcmp.lt.s32.totalorder %v498, 0
        %v669 = vsub.s32 0, %v498
        %v670 = vsel %vm668, %v669, %v498
        %v671 = vshrl.u32 %v670, 4
        %v672 = vand.u32 %v670, 15
        %v673 = vsub.s32 0, %v672
        %v674 = vsel %vm668, %v673, %v672
        %vm675 = vcmp.lt.s32.totalorder %v499, 0
        %v676 = vsub.s32 0, %v499
        %v677 = vsel %vm675, %v676, %v499
        %v678 = vshrl.u32 %v677, 4
        %v679 = vand.u32 %v677, 15
        %v680 = vsub.s32 0, %v679
        %v681 = vsel %vm675, %v680, %v679
        %vm682 = vcmp.lt.s32.totalorder %v500, 0
        %v683 = vsub.s32 0, %v500
        %v684 = vsel %vm682, %v683, %v500
        %v685 = vshrl.u32 %v684, 4
        %v686 = vand.u32 %v684, 15
        %v687 = vsub.s32 0, %v686
        %v688 = vsel %vm682, %v687, %v686
        %vm689 = vcmp.lt.s32.totalorder %v501, 0
        %v690 = vsub.s32 0, %v501
        %v691 = vsel %vm689, %v690, %v501
        %v692 = vshrl.u32 %v691, 4
        %v693 = vand.u32 %v691, 15
        %v694 = vsub.s32 0, %v693
        %v695 = vsel %vm689, %v694, %v693
        %vm696 = vcmp.lt.s32.totalorder %v502, 0
        %v697 = vsub.s32 0, %v502
        %v698 = vsel %vm696, %v697, %v502
        %v699 = vshrl.u32 %v698, 4
        %v700 = vand.u32 %v698, 15
        %v701 = vsub.s32 0, %v700
        %v702 = vsel %vm696, %v701, %v700
        %vm703 = vcmp.lt.s32.totalorder %v503, 0
        %v704 = vsub.s32 0, %v503
        %v705 = vsel %vm703, %v704, %v503
        %v706 = vshrl.u32 %v705, 4
        %v707 = vand.u32 %v705, 15
        %v708 = vsub.s32 0, %v707
        %v709 = vsel %vm703, %v708, %v707
        %vm710 = vcmp.lt.s32.totalorder %v504, 0
        %v711 = vsub.s32 0, %v504
        %v712 = vsel %vm710, %v711, %v504
        %v713 = vshrl.u32 %v712, 4
        %v714 = vand.u32 %v712, 15
        %v715 = vsub.s32 0, %v714
        %v716 = vsel %vm710, %v715, %v714
        %vm717 = vcmp.lt.s32.totalorder %v505, 0
        %v718 = vsub.s32 0, %v505
        %v719 = vsel %vm717, %v718, %v505
        %v720 = vshrl.u32 %v719, 4
        %v721 = vand.u32 %v719, 15
        %v722 = vsub.s32 0, %v721
        %v723 = vsel %vm717, %v722, %v721
        %vm724 = vcmp.lt.s32.totalorder %v506, 0
        %v725 = vsub.s32 0, %v506
        %v726 = vsel %vm724, %v725, %v506
        %v727 = vshrl.u32 %v726, 4
        %v728 = vand.u32 %v726, 15
        %v729 = vsub.s32 0, %v728
        %v730 = vsel %vm724, %v729, %v728
        %vm731 = vcmp.ne.s32.totalorder %v513, 0
        %vm732 = vcmp.ne.s32.totalorder %v520, 0
        %vm733 = vcmp.ne.s32.totalorder %v527, 0
        %vm734 = vcmp.ne.s32.totalorder %v534, 0
        %vm735 = vcmp.ne.s32.totalorder %v541, 0
        %vm736 = vcmp.ne.s32.totalorder %v548, 0
        %vm737 = vcmp.ne.s32.totalorder %v555, 0
        %vm738 = vcmp.ne.s32.totalorder %v562, 0
        %vm739 = vcmp.ne.s32.totalorder %v569, 0
        %vm740 = vcmp.ne.s32.totalorder %v576, 0
        %vm741 = vcmp.ne.s32.totalorder %v583, 0
        %vm742 = vcmp.ne.s32.totalorder %v590, 0
        %vm743 = vcmp.ne.s32.totalorder %v597, 0
        %vm744 = vcmp.ne.s32.totalorder %v604, 0
        %vm745 = vcmp.ne.s32.totalorder %v611, 0
        %vm746 = vcmp.ne.s32.totalorder %v618, 0
        %vm747 = vcmp.ne.s32.totalorder %v625, 0
        %vm748 = vcmp.ne.s32.totalorder %v632, 0
        %vm749 = vcmp.ne.s32.totalorder %v639, 0
        %vm750 = vcmp.ne.s32.totalorder %v646, 0
        %vm751 = vcmp.ne.s32.totalorder %v653, 0
        %vm752 = vcmp.ne.s32.totalorder %v660, 0
        %vm753 = vcmp.ne.s32.totalorder %v667, 0
        %vm754 = vcmp.ne.s32.totalorder %v674, 0
        %vm755 = vcmp.ne.s32.totalorder %v681, 0
        %vm756 = vcmp.ne.s32.totalorder %v688, 0
        %vm757 = vcmp.ne.s32.totalorder %v695, 0
        %vm758 = vcmp.ne.s32.totalorder %v702, 0
        %vm759 = vcmp.ne.s32.totalorder %v709, 0
        %vm760 = vcmp.ne.s32.totalorder %v716, 0
        %vm761 = vcmp.ne.s32.totalorder %v723, 0
        %vm762 = vcmp.ne.s32.totalorder %v730, 0
        %vm763 = vcmp.lt.s32.totalorder %v513, 0
        %vm764 = vcmp.lt.s32.totalorder %v520, 0
        %vm765 = vcmp.lt.s32.totalorder %v527, 0
        %vm766 = vcmp.lt.s32.totalorder %v534, 0
        %vm767 = vcmp.lt.s32.totalorder %v541, 0
        %vm768 = vcmp.lt.s32.totalorder %v548, 0
        %vm769 = vcmp.lt.s32.totalorder %v555, 0
        %vm770 = vcmp.lt.s32.totalorder %v562, 0
        %vm771 = vcmp.lt.s32.totalorder %v569, 0
        %vm772 = vcmp.lt.s32.totalorder %v576, 0
        %vm773 = vcmp.lt.s32.totalorder %v583, 0
        %vm774 = vcmp.lt.s32.totalorder %v590, 0
        %vm775 = vcmp.lt.s32.totalorder %v597, 0
        %vm776 = vcmp.lt.s32.totalorder %v604, 0
        %vm777 = vcmp.lt.s32.totalorder %v611, 0
        %vm778 = vcmp.lt.s32.totalorder %v618, 0
        %vm779 = vcmp.lt.s32.totalorder %v625, 0
        %vm780 = vcmp.lt.s32.totalorder %v632, 0
        %vm781 = vcmp.lt.s32.totalorder %v639, 0
        %vm782 = vcmp.lt.s32.totalorder %v646, 0
        %vm783 = vcmp.lt.s32.totalorder %v653, 0
        %vm784 = vcmp.lt.s32.totalorder %v660, 0
        %vm785 = vcmp.lt.s32.totalorder %v667, 0
        %vm786 = vcmp.lt.s32.totalorder %v674, 0
        %vm787 = vcmp.lt.s32.totalorder %v681, 0
        %vm788 = vcmp.lt.s32.totalorder %v688, 0
        %vm789 = vcmp.lt.s32.totalorder %v695, 0
        %vm790 = vcmp.lt.s32.totalorder %v702, 0
        %vm791 = vcmp.lt.s32.totalorder %v709, 0
        %vm792 = vcmp.lt.s32.totalorder %v716, 0
        %vm793 = vcmp.lt.s32.totalorder %v723, 0
        %vm794 = vcmp.lt.s32.totalorder %v730, 0
        %vm795 = vmand %vm763, %vm731
        %vm796 = vmand %vm764, %vm732
        %vm797 = vmand %vm765, %vm733
        %vm798 = vmand %vm766, %vm734
        %vm799 = vmand %vm767, %vm735
        %vm800 = vmand %vm768, %vm736
        %vm801 = vmand %vm769, %vm737
        %vm802 = vmand %vm770, %vm738
        %vm803 = vmand %vm771, %vm739
        %vm804 = vmand %vm772, %vm740
        %vm805 = vmand %vm773, %vm741
        %vm806 = vmand %vm774, %vm742
        %vm807 = vmand %vm775, %vm743
        %vm808 = vmand %vm776, %vm744
        %vm809 = vmand %vm777, %vm745
        %vm810 = vmand %vm778, %vm746
        %vm811 = vmand %vm779, %vm747
        %vm812 = vmand %vm780, %vm748
        %vm813 = vmand %vm781, %vm749
        %vm814 = vmand %vm782, %vm750
        %vm815 = vmand %vm783, %vm751
        %vm816 = vmand %vm784, %vm752
        %vm817 = vmand %vm785, %vm753
        %vm818 = vmand %vm786, %vm754
        %vm819 = vmand %vm787, %vm755
        %vm820 = vmand %vm788, %vm756
        %vm821 = vmand %vm789, %vm757
        %vm822 = vmand %vm790, %vm758
        %vm823 = vmand %vm791, %vm759
        %vm824 = vmand %vm792, %vm760
        %vm825 = vmand %vm793, %vm761
        %vm826 = vmand %vm794, %vm762
        %v827 = vadd.s32 %v513, 16
        %v828 = vadd.s32 %v520, 16
        %v829 = vadd.s32 %v527, 16
        %v830 = vadd.s32 %v534, 16
        %v831 = vadd.s32 %v541, 16
        %v832 = vadd.s32 %v548, 16
        %v833 = vadd.s32 %v555, 16
        %v834 = vadd.s32 %v562, 16
        %v835 = vadd.s32 %v569, 16
        %v836 = vadd.s32 %v576, 16
        %v837 = vadd.s32 %v583, 16
        %v838 = vadd.s32 %v590, 16
        %v839 = vadd.s32 %v597, 16
        %v840 = vadd.s32 %v604, 16
        %v841 = vadd.s32 %v611, 16
        %v842 = vadd.s32 %v618, 16
        %v843 = vadd.s32 %v625, 16
        %v844 = vadd.s32 %v632, 16
        %v845 = vadd.s32 %v639, 16
        %v846 = vadd.s32 %v646, 16
        %v847 = vadd.s32 %v653, 16
        %v848 = vadd.s32 %v660, 16
        %v849 = vadd.s32 %v667, 16
        %v850 = vadd.s32 %v674, 16
        %v851 = vadd.s32 %v681, 16
        %v852 = vadd.s32 %v688, 16
        %v853 = vadd.s32 %v695, 16
        %v854 = vadd.s32 %v702, 16
        %v855 = vadd.s32 %v709, 16
        %v856 = vadd.s32 %v716, 16
        %v857 = vadd.s32 %v723, 16
        %v858 = vadd.s32 %v730, 16
        %v859 = vsel %vm795, %v827, %v513
        %v860 = vsel %vm796, %v828, %v520
        %v861 = vsel %vm797, %v829, %v527
        %v862 = vsel %vm798, %v830, %v534
        %v863 = vsel %vm799, %v831, %v541
        %v864 = vsel %vm800, %v832, %v548
        %v865 = vsel %vm801, %v833, %v555
        %v866 = vsel %vm802, %v834, %v562
        %v867 = vsel %vm803, %v835, %v569
        %v868 = vsel %vm804, %v836, %v576
        %v869 = vsel %vm805, %v837, %v583
        %v870 = vsel %vm806, %v838, %v590
        %v871 = vsel %vm807, %v839, %v597
        %v872 = vsel %vm808, %v840, %v604
        %v873 = vsel %vm809, %v841, %v611
        %v874 = vsel %vm810, %v842, %v618
        %v875 = vsel %vm811, %v843, %v625
        %v876 = vsel %vm812, %v844, %v632
        %v877 = vsel %vm813, %v845, %v639
        %v878 = vsel %vm814, %v846, %v646
        %v879 = vsel %vm815, %v847, %v653
        %v880 = vsel %vm816, %v848, %v660
        %v881 = vsel %vm817, %v849, %v667
        %v882 = vsel %vm818, %v850, %v674
        %v883 = vsel %vm819, %v851, %v681
        %v884 = vsel %vm820, %v852, %v688
        %v885 = vsel %vm821, %v853, %v695
        %v886 = vsel %vm822, %v854, %v702
        %v887 = vsel %vm823, %v855, %v709
        %v888 = vsel %vm824, %v856, %v716
        %v889 = vsel %vm825, %v857, %v723
        %v890 = vsel %vm826, %v858, %v730
        %vm891 = vcmp.eq.s32.totalorder %v859, 0
        %vm892 = vcmp.eq.s32.totalorder %v860, 0
        %vm893 = vcmp.eq.s32.totalorder %v861, 0
        %vm894 = vcmp.eq.s32.totalorder %v862, 0
        %vm895 = vcmp.eq.s32.totalorder %v863, 0
        %vm896 = vcmp.eq.s32.totalorder %v864, 0
        %vm897 = vcmp.eq.s32.totalorder %v865, 0
        %vm898 = vcmp.eq.s32.totalorder %v866, 0
        %vm899 = vcmp.eq.s32.totalorder %v867, 0
        %vm900 = vcmp.eq.s32.totalorder %v868, 0
        %vm901 = vcmp.eq.s32.totalorder %v869, 0
        %vm902 = vcmp.eq.s32.totalorder %v870, 0
        %vm903 = vcmp.eq.s32.totalorder %v871, 0
        %vm904 = vcmp.eq.s32.totalorder %v872, 0
        %vm905 = vcmp.eq.s32.totalorder %v873, 0
        %vm906 = vcmp.eq.s32.totalorder %v874, 0
        %vm907 = vcmp.eq.s32.totalorder %v875, 0
        %vm908 = vcmp.eq.s32.totalorder %v876, 0
        %vm909 = vcmp.eq.s32.totalorder %v877, 0
        %vm910 = vcmp.eq.s32.totalorder %v878, 0
        %vm911 = vcmp.eq.s32.totalorder %v879, 0
        %vm912 = vcmp.eq.s32.totalorder %v880, 0
        %vm913 = vcmp.eq.s32.totalorder %v881, 0
        %vm914 = vcmp.eq.s32.totalorder %v882, 0
        %vm915 = vcmp.eq.s32.totalorder %v883, 0
        %vm916 = vcmp.eq.s32.totalorder %v884, 0
        %vm917 = vcmp.eq.s32.totalorder %v885, 0
        %vm918 = vcmp.eq.s32.totalorder %v886, 0
        %vm919 = vcmp.eq.s32.totalorder %v887, 0
        %vm920 = vcmp.eq.s32.totalorder %v888, 0
        %vm921 = vcmp.eq.s32.totalorder %v889, 0
        %vm922 = vcmp.eq.s32.totalorder %v890, 0
        %vm923 = vcmp.eq.s32.totalorder %v859, 15
        %vm924 = vcmp.eq.s32.totalorder %v860, 15
        %vm925 = vcmp.eq.s32.totalorder %v861, 15
        %vm926 = vcmp.eq.s32.totalorder %v862, 15
        %vm927 = vcmp.eq.s32.totalorder %v863, 15
        %vm928 = vcmp.eq.s32.totalorder %v864, 15
        %vm929 = vcmp.eq.s32.totalorder %v865, 15
        %vm930 = vcmp.eq.s32.totalorder %v866, 15
        %vm931 = vcmp.eq.s32.totalorder %v867, 15
        %vm932 = vcmp.eq.s32.totalorder %v868, 15
        %vm933 = vcmp.eq.s32.totalorder %v869, 15
        %vm934 = vcmp.eq.s32.totalorder %v870, 15
        %vm935 = vcmp.eq.s32.totalorder %v871, 15
        %vm936 = vcmp.eq.s32.totalorder %v872, 15
        %vm937 = vcmp.eq.s32.totalorder %v873, 15
        %vm938 = vcmp.eq.s32.totalorder %v874, 15
        %vm939 = vcmp.eq.s32.totalorder %v875, 15
        %vm940 = vcmp.eq.s32.totalorder %v876, 15
        %vm941 = vcmp.eq.s32.totalorder %v877, 15
        %vm942 = vcmp.eq.s32.totalorder %v878, 15
        %vm943 = vcmp.eq.s32.totalorder %v879, 15
        %vm944 = vcmp.eq.s32.totalorder %v880, 15
        %vm945 = vcmp.eq.s32.totalorder %v881, 15
        %vm946 = vcmp.eq.s32.totalorder %v882, 15
        %vm947 = vcmp.eq.s32.totalorder %v883, 15
        %vm948 = vcmp.eq.s32.totalorder %v884, 15
        %vm949 = vcmp.eq.s32.totalorder %v885, 15
        %vm950 = vcmp.eq.s32.totalorder %v886, 15
        %vm951 = vcmp.eq.s32.totalorder %v887, 15
        %vm952 = vcmp.eq.s32.totalorder %v888, 15
        %vm953 = vcmp.eq.s32.totalorder %v889, 15
        %vm954 = vcmp.eq.s32.totalorder %v890, 15
        %v955 = vld [vmem:[%s462] sm:$0xff]
        %v956 = vld [vmem:[%s462 + $0x8] sm:$0xff]
        %v957 = vld [vmem:[%s462 + $0x10] sm:$0xff]
        %v958 = vld [vmem:[%s462 + $0x18] sm:$0xff]
        %v959 = vld [vmem:[%s462 + $0x20] sm:$0xff]
        %v960 = vld [vmem:[%s462 + $0x28] sm:$0xff]
        %v961 = vld [vmem:[%s462 + $0x30] sm:$0xff]
        %v962 = vld [vmem:[%s462 + $0x38] sm:$0xff]
        %v963 = vld [vmem:[%s462 + $0x40] sm:$0xff]
        %v964 = vld [vmem:[%s462 + $0x48] sm:$0xff]
        %v965 = vld [vmem:[%s462 + $0x50] sm:$0xff]
        %v966 = vld [vmem:[%s462 + $0x58] sm:$0xff]
        %v967 = vld [vmem:[%s462 + $0x60] sm:$0xff]
        %v968 = vld [vmem:[%s462 + $0x68] sm:$0xff]
        %v969 = vld [vmem:[%s462 + $0x70] sm:$0xff]
        %v970 = vld [vmem:[%s462 + $0x78] sm:$0xff]
        %v971 = vld [vmem:[%s462 + $0x80] sm:$0xff]
        %v972 = vld [vmem:[%s462 + $0x88] sm:$0xff]
        %v973 = vld [vmem:[%s462 + $0x90] sm:$0xff]
        %v974 = vld [vmem:[%s462 + $0x98] sm:$0xff]
        %v975 = vld [vmem:[%s462 + $0xa0] sm:$0xff]
        %v976 = vld [vmem:[%s462 + $0xa8] sm:$0xff]
        %v977 = vld [vmem:[%s462 + $0xb0] sm:$0xff]
        %v978 = vld [vmem:[%s462 + $0xb8] sm:$0xff]
        %v979 = vld [vmem:[%s462 + $0xc0] sm:$0xff]
        %v980 = vld [vmem:[%s462 + $0xc8] sm:$0xff]
        %v981 = vld [vmem:[%s462 + $0xd0] sm:$0xff]
        %v982 = vld [vmem:[%s462 + $0xd8] sm:$0xff]
        %v983 = vld [vmem:[%s462 + $0xe0] sm:$0xff]
        %v984 = vld [vmem:[%s462 + $0xe8] sm:$0xff]
        %v985 = vld [vmem:[%s462 + $0xf0] sm:$0xff]
        %v986 = vld [vmem:[%s462 + $0xf8] sm:$0xff]
        %vm1019 = vcmask 1040384
        %v1020 = vrot.slane %v955, 7
        %v1021 = vrot.slane %v956, 7
        %v1022 = vsel %vm1019, %v1020, %v1021
        %v1023 = vrot.slane %v957, 7
        %v1024 = vsel %vm1019, %v1021, %v1023
        %v1025 = vrot.slane %v958, 7
        %v1026 = vsel %vm1019, %v1023, %v1025
        %v1027 = vrot.slane %v959, 7
        %v1028 = vsel %vm1019, %v1025, %v1027
        %v1029 = vrot.slane %v960, 7
        %v1030 = vsel %vm1019, %v1027, %v1029
        %v1031 = vrot.slane %v961, 7
        %v1032 = vsel %vm1019, %v1029, %v1031
        %v1033 = vrot.slane %v962, 7
        %v1034 = vsel %vm1019, %v1031, %v1033
        %v1035 = vrot.slane %v963, 7
        %v1036 = vsel %vm1019, %v1033, %v1035
        %v1037 = vrot.slane %v964, 7
        %v1038 = vsel %vm1019, %v1035, %v1037
        %v1039 = vrot.slane %v965, 7
        %v1040 = vsel %vm1019, %v1037, %v1039
        %v1041 = vrot.slane %v966, 7
        %v1042 = vsel %vm1019, %v1039, %v1041
        %v1043 = vrot.slane %v967, 7
        %v1044 = vsel %vm1019, %v1041, %v1043
        %v1045 = vrot.slane %v968, 7
        %v1046 = vsel %vm1019, %v1043, %v1045
        %v1047 = vrot.slane %v969, 7
        %v1048 = vsel %vm1019, %v1045, %v1047
        %v1049 = vrot.slane %v970, 7
        %v1050 = vsel %vm1019, %v1047, %v1049
        %v1051 = vrot.slane %v971, 7
        %v1052 = vsel %vm1019, %v1049, %v1051
        %v1053 = vrot.slane %v972, 7
        %v1054 = vsel %vm1019, %v1051, %v1053
        %v1055 = vrot.slane %v973, 7
        %v1056 = vsel %vm1019, %v1053, %v1055
        %v1057 = vrot.slane %v974, 7
        %v1058 = vsel %vm1019, %v1055, %v1057
        %v1059 = vrot.slane %v975, 7
        %v1060 = vsel %vm1019, %v1057, %v1059
        %v1061 = vrot.slane %v976, 7
        %v1062 = vsel %vm1019, %v1059, %v1061
        %v1063 = vrot.slane %v977, 7
        %v1064 = vsel %vm1019, %v1061, %v1063
        %v1065 = vrot.slane %v978, 7
        %v1066 = vsel %vm1019, %v1063, %v1065
        %v1067 = vrot.slane %v979, 7
        %v1068 = vsel %vm1019, %v1065, %v1067
        %v1069 = vrot.slane %v980, 7
        %v1070 = vsel %vm1019, %v1067, %v1069
        %v1071 = vrot.slane %v981, 7
        %v1072 = vsel %vm1019, %v1069, %v1071
        %v1073 = vrot.slane %v982, 7
        %v1074 = vsel %vm1019, %v1071, %v1073
        %v1075 = vrot.slane %v983, 7
        %v1076 = vsel %vm1019, %v1073, %v1075
        %v1077 = vrot.slane %v984, 7
        %v1078 = vsel %vm1019, %v1075, %v1077
        %v1079 = vrot.slane %v985, 7
        %v1080 = vsel %vm1019, %v1077, %v1079
        %v1081 = vrot.slane %v986, 7
        %v1082 = vsel %vm1019, %v1079, %v1081
        %v1115 = vsel %vm1019, 0.0, %v1020
        %v1116 = vsel %vm891, 1, 0
        %v1117 = vsel %vm892, 1, 0
        %v1118 = vsel %vm893, 1, 0
        %v1119 = vsel %vm894, 1, 0
        %v1120 = vsel %vm895, 1, 0
        %v1121 = vsel %vm896, 1, 0
        %v1122 = vsel %vm897, 1, 0
        %v1123 = vsel %vm898, 1, 0
        %v1124 = vsel %vm899, 1, 0
        %v1125 = vsel %vm900, 1, 0
        %v1126 = vsel %vm901, 1, 0
        %v1127 = vsel %vm902, 1, 0
        %v1128 = vsel %vm903, 1, 0
        %v1129 = vsel %vm904, 1, 0
        %v1130 = vsel %vm905, 1, 0
        %v1131 = vsel %vm906, 1, 0
        %v1132 = vsel %vm907, 1, 0
        %v1133 = vsel %vm908, 1, 0
        %v1134 = vsel %vm909, 1, 0
        %v1135 = vsel %vm910, 1, 0
        %v1136 = vsel %vm911, 1, 0
        %v1137 = vsel %vm912, 1, 0
        %v1138 = vsel %vm913, 1, 0
        %v1139 = vsel %vm914, 1, 0
        %v1140 = vsel %vm915, 1, 0
        %v1141 = vsel %vm916, 1, 0
        %v1142 = vsel %vm917, 1, 0
        %v1143 = vsel %vm918, 1, 0
        %v1144 = vsel %vm919, 1, 0
        %v1145 = vsel %vm920, 1, 0
        %v1146 = vsel %vm921, 1, 0
        %v1147 = vsel %vm922, 1, 0
        %vm1148 = vcmp.eq.s32.totalorder %v1116, 1
        %vm1149 = vcmp.eq.s32.totalorder %v1117, 1
        %vm1150 = vcmp.eq.s32.totalorder %v1118, 1
        %vm1151 = vcmp.eq.s32.totalorder %v1119, 1
        %vm1152 = vcmp.eq.s32.totalorder %v1120, 1
        %vm1153 = vcmp.eq.s32.totalorder %v1121, 1
        %vm1154 = vcmp.eq.s32.totalorder %v1122, 1
        %vm1155 = vcmp.eq.s32.totalorder %v1123, 1
        %vm1156 = vcmp.eq.s32.totalorder %v1124, 1
        %vm1157 = vcmp.eq.s32.totalorder %v1125, 1
        %vm1158 = vcmp.eq.s32.totalorder %v1126, 1
        %vm1159 = vcmp.eq.s32.totalorder %v1127, 1
        %vm1160 = vcmp.eq.s32.totalorder %v1128, 1
        %vm1161 = vcmp.eq.s32.totalorder %v1129, 1
        %vm1162 = vcmp.eq.s32.totalorder %v1130, 1
        %vm1163 = vcmp.eq.s32.totalorder %v1131, 1
        %vm1164 = vcmp.eq.s32.totalorder %v1132, 1
        %vm1165 = vcmp.eq.s32.totalorder %v1133, 1
        %vm1166 = vcmp.eq.s32.totalorder %v1134, 1
        %vm1167 = vcmp.eq.s32.totalorder %v1135, 1
        %vm1168 = vcmp.eq.s32.totalorder %v1136, 1
        %vm1169 = vcmp.eq.s32.totalorder %v1137, 1
        %vm1170 = vcmp.eq.s32.totalorder %v1138, 1
        %vm1171 = vcmp.eq.s32.totalorder %v1139, 1
        %vm1172 = vcmp.eq.s32.totalorder %v1140, 1
        %vm1173 = vcmp.eq.s32.totalorder %v1141, 1
        %vm1174 = vcmp.eq.s32.totalorder %v1142, 1
        %vm1175 = vcmp.eq.s32.totalorder %v1143, 1
        %vm1176 = vcmp.eq.s32.totalorder %v1144, 1
        %vm1177 = vcmp.eq.s32.totalorder %v1145, 1
        %vm1178 = vcmp.eq.s32.totalorder %v1146, 1
        %vm1179 = vcmp.eq.s32.totalorder %v1147, 1
        %v1180 = vsel %vm1148, 0.0, %v1115
        %v1181 = vsel %vm1149, 0.0, %v1022
        %v1182 = vsel %vm1150, 0.0, %v1024
        %v1183 = vsel %vm1151, 0.0, %v1026
        %v1184 = vsel %vm1152, 0.0, %v1028
        %v1185 = vsel %vm1153, 0.0, %v1030
        %v1186 = vsel %vm1154, 0.0, %v1032
        %v1187 = vsel %vm1155, 0.0, %v1034
        %v1188 = vsel %vm1156, 0.0, %v1036
        %v1189 = vsel %vm1157, 0.0, %v1038
        %v1190 = vsel %vm1158, 0.0, %v1040
        %v1191 = vsel %vm1159, 0.0, %v1042
        %v1192 = vsel %vm1160, 0.0, %v1044
        %v1193 = vsel %vm1161, 0.0, %v1046
        %v1194 = vsel %vm1162, 0.0, %v1048
        %v1195 = vsel %vm1163, 0.0, %v1050
        %v1196 = vsel %vm1164, 0.0, %v1052
        %v1197 = vsel %vm1165, 0.0, %v1054
        %v1198 = vsel %vm1166, 0.0, %v1056
        %v1199 = vsel %vm1167, 0.0, %v1058
        %v1200 = vsel %vm1168, 0.0, %v1060
        %v1201 = vsel %vm1169, 0.0, %v1062
        %v1202 = vsel %vm1170, 0.0, %v1064
        %v1203 = vsel %vm1171, 0.0, %v1066
        %v1204 = vsel %vm1172, 0.0, %v1068
        %v1205 = vsel %vm1173, 0.0, %v1070
        %v1206 = vsel %vm1174, 0.0, %v1072
        %v1207 = vsel %vm1175, 0.0, %v1074
        %v1208 = vsel %vm1176, 0.0, %v1076
        %v1209 = vsel %vm1177, 0.0, %v1078
        %v1210 = vsel %vm1178, 0.0, %v1080
        %v1211 = vsel %vm1179, 0.0, %v1082
        %vm1212 = vcmask 1046528
        %v1213 = vrot.slane %v955, 1
        %v1214 = vrot.slane %v956, 1
        %v1215 = vsel %vm1212, %v1213, %v1214
        %v1216 = vrot.slane %v957, 1
        %v1217 = vsel %vm1212, %v1214, %v1216
        %v1218 = vrot.slane %v958, 1
        %v1219 = vsel %vm1212, %v1216, %v1218
        %v1220 = vrot.slane %v959, 1
        %v1221 = vsel %vm1212, %v1218, %v1220
        %v1222 = vrot.slane %v960, 1
        %v1223 = vsel %vm1212, %v1220, %v1222
        %v1224 = vrot.slane %v961, 1
        %v1225 = vsel %vm1212, %v1222, %v1224
        %v1226 = vrot.slane %v962, 1
        %v1227 = vsel %vm1212, %v1224, %v1226
        %v1228 = vrot.slane %v963, 1
        %v1229 = vsel %vm1212, %v1226, %v1228
        %v1230 = vrot.slane %v964, 1
        %v1231 = vsel %vm1212, %v1228, %v1230
        %v1232 = vrot.slane %v965, 1
        %v1233 = vsel %vm1212, %v1230, %v1232
        %v1234 = vrot.slane %v966, 1
        %v1235 = vsel %vm1212, %v1232, %v1234
        %v1236 = vrot.slane %v967, 1
        %v1237 = vsel %vm1212, %v1234, %v1236
        %v1238 = vrot.slane %v968, 1
        %v1239 = vsel %vm1212, %v1236, %v1238
        %v1240 = vrot.slane %v969, 1
        %v1241 = vsel %vm1212, %v1238, %v1240
        %v1242 = vrot.slane %v970, 1
        %v1243 = vsel %vm1212, %v1240, %v1242
        %v1244 = vrot.slane %v971, 1
        %v1245 = vsel %vm1212, %v1242, %v1244
        %v1246 = vrot.slane %v972, 1
        %v1247 = vsel %vm1212, %v1244, %v1246
        %v1248 = vrot.slane %v973, 1
        %v1249 = vsel %vm1212, %v1246, %v1248
        %v1250 = vrot.slane %v974, 1
        %v1251 = vsel %vm1212, %v1248, %v1250
        %v1252 = vrot.slane %v975, 1
        %v1253 = vsel %vm1212, %v1250, %v1252
        %v1254 = vrot.slane %v976, 1
        %v1255 = vsel %vm1212, %v1252, %v1254
        %v1256 = vrot.slane %v977, 1
        %v1257 = vsel %vm1212, %v1254, %v1256
        %v1258 = vrot.slane %v978, 1
        %v1259 = vsel %vm1212, %v1256, %v1258
        %v1260 = vrot.slane %v979, 1
        %v1261 = vsel %vm1212, %v1258, %v1260
        %v1262 = vrot.slane %v980, 1
        %v1263 = vsel %vm1212, %v1260, %v1262
        %v1264 = vrot.slane %v981, 1
        %v1265 = vsel %vm1212, %v1262, %v1264
        %v1266 = vrot.slane %v982, 1
        %v1267 = vsel %vm1212, %v1264, %v1266
        %v1268 = vrot.slane %v983, 1
        %v1269 = vsel %vm1212, %v1266, %v1268
        %v1270 = vrot.slane %v984, 1
        %v1271 = vsel %vm1212, %v1268, %v1270
        %v1272 = vrot.slane %v985, 1
        %v1273 = vsel %vm1212, %v1270, %v1272
        %v1274 = vrot.slane %v986, 1
        %v1275 = vsel %vm1212, %v1272, %v1274
        %v1308 = vsel %vm1212, %v1274, 0.0
        %v1309 = vsel %vm923, 1, 0
        %v1310 = vsel %vm924, 1, 0
        %v1311 = vsel %vm925, 1, 0
        %v1312 = vsel %vm926, 1, 0
        %v1313 = vsel %vm927, 1, 0
        %v1314 = vsel %vm928, 1, 0
        %v1315 = vsel %vm929, 1, 0
        %v1316 = vsel %vm930, 1, 0
        %v1317 = vsel %vm931, 1, 0
        %v1318 = vsel %vm932, 1, 0
        %v1319 = vsel %vm933, 1, 0
        %v1320 = vsel %vm934, 1, 0
        %v1321 = vsel %vm935, 1, 0
        %v1322 = vsel %vm936, 1, 0
        %v1323 = vsel %vm937, 1, 0
        %v1324 = vsel %vm938, 1, 0
        %v1325 = vsel %vm939, 1, 0
        %v1326 = vsel %vm940, 1, 0
        %v1327 = vsel %vm941, 1, 0
        %v1328 = vsel %vm942, 1, 0
        %v1329 = vsel %vm943, 1, 0
        %v1330 = vsel %vm944, 1, 0
        %v1331 = vsel %vm945, 1, 0
        %v1332 = vsel %vm946, 1, 0
        %v1333 = vsel %vm947, 1, 0
        %v1334 = vsel %vm948, 1, 0
        %v1335 = vsel %vm949, 1, 0
        %v1336 = vsel %vm950, 1, 0
        %v1337 = vsel %vm951, 1, 0
        %v1338 = vsel %vm952, 1, 0
        %v1339 = vsel %vm953, 1, 0
        %v1340 = vsel %vm954, 1, 0
        %vm1341 = vcmp.eq.s32.totalorder %v1309, 1
        %vm1342 = vcmp.eq.s32.totalorder %v1310, 1
        %vm1343 = vcmp.eq.s32.totalorder %v1311, 1
        %vm1344 = vcmp.eq.s32.totalorder %v1312, 1
        %vm1345 = vcmp.eq.s32.totalorder %v1313, 1
        %vm1346 = vcmp.eq.s32.totalorder %v1314, 1
        %vm1347 = vcmp.eq.s32.totalorder %v1315, 1
        %vm1348 = vcmp.eq.s32.totalorder %v1316, 1
        %vm1349 = vcmp.eq.s32.totalorder %v1317, 1
        %vm1350 = vcmp.eq.s32.totalorder %v1318, 1
        %vm1351 = vcmp.eq.s32.totalorder %v1319, 1
        %vm1352 = vcmp.eq.s32.totalorder %v1320, 1
        %vm1353 = vcmp.eq.s32.totalorder %v1321, 1
        %vm1354 = vcmp.eq.s32.totalorder %v1322, 1
        %vm1355 = vcmp.eq.s32.totalorder %v1323, 1
        %vm1356 = vcmp.eq.s32.totalorder %v1324, 1
        %vm1357 = vcmp.eq.s32.totalorder %v1325, 1
        %vm1358 = vcmp.eq.s32.totalorder %v1326, 1
        %vm1359 = vcmp.eq.s32.totalorder %v1327, 1
        %vm1360 = vcmp.eq.s32.totalorder %v1328, 1
        %vm1361 = vcmp.eq.s32.totalorder %v1329, 1
        %vm1362 = vcmp.eq.s32.totalorder %v1330, 1
        %vm1363 = vcmp.eq.s32.totalorder %v1331, 1
        %vm1364 = vcmp.eq.s32.totalorder %v1332, 1
        %vm1365 = vcmp.eq.s32.totalorder %v1333, 1
        %vm1366 = vcmp.eq.s32.totalorder %v1334, 1
        %vm1367 = vcmp.eq.s32.totalorder %v1335, 1
        %vm1368 = vcmp.eq.s32.totalorder %v1336, 1
        %vm1369 = vcmp.eq.s32.totalorder %v1337, 1
        %vm1370 = vcmp.eq.s32.totalorder %v1338, 1
        %vm1371 = vcmp.eq.s32.totalorder %v1339, 1
        %vm1372 = vcmp.eq.s32.totalorder %v1340, 1
        %v1373 = vsel %vm1341, 0.0, %v1215
        %v1374 = vsel %vm1342, 0.0, %v1217
        %v1375 = vsel %vm1343, 0.0, %v1219
        %v1376 = vsel %vm1344, 0.0, %v1221
        %v1377 = vsel %vm1345, 0.0, %v1223
        %v1378 = vsel %vm1346, 0.0, %v1225
        %v1379 = vsel %vm1347, 0.0, %v1227
        %v1380 = vsel %vm1348, 0.0, %v1229
        %v1381 = vsel %vm1349, 0.0, %v1231
        %v1382 = vsel %vm1350, 0.0, %v1233
        %v1383 = vsel %vm1351, 0.0, %v1235
        %v1384 = vsel %vm1352, 0.0, %v1237
        %v1385 = vsel %vm1353, 0.0, %v1239
        %v1386 = vsel %vm1354, 0.0, %v1241
        %v1387 = vsel %vm1355, 0.0, %v1243
        %v1388 = vsel %vm1356, 0.0, %v1245
        %v1389 = vsel %vm1357, 0.0, %v1247
        %v1390 = vsel %vm1358, 0.0, %v1249
        %v1391 = vsel %vm1359, 0.0, %v1251
        %v1392 = vsel %vm1360, 0.0, %v1253
        %v1393 = vsel %vm1361, 0.0, %v1255
        %v1394 = vsel %vm1362, 0.0, %v1257
        %v1395 = vsel %vm1363, 0.0, %v1259
        %v1396 = vsel %vm1364, 0.0, %v1261
        %v1397 = vsel %vm1365, 0.0, %v1263
        %v1398 = vsel %vm1366, 0.0, %v1265
        %v1399 = vsel %vm1367, 0.0, %v1267
        %v1400 = vsel %vm1368, 0.0, %v1269
        %v1401 = vsel %vm1369, 0.0, %v1271
        %v1402 = vsel %vm1370, 0.0, %v1273
        %v1403 = vsel %vm1371, 0.0, %v1275
        %v1404 = vsel %vm1372, 0.0, %v1308
        %v1405 = vpack.c.bf16 %v1181, %v1180
        %v1406 = vpack.c.bf16 %v1183, %v1182
        %v1407 = vpack.c.bf16 %v1185, %v1184
        %v1408 = vpack.c.bf16 %v1187, %v1186
        %v1409 = vpack.c.bf16 %v1189, %v1188
        %v1410 = vpack.c.bf16 %v1191, %v1190
        %v1411 = vpack.c.bf16 %v1193, %v1192
        %v1412 = vpack.c.bf16 %v1195, %v1194
        %v1413 = vpack.c.bf16 %v1197, %v1196
        %v1414 = vpack.c.bf16 %v1199, %v1198
        %v1415 = vpack.c.bf16 %v1201, %v1200
        %v1416 = vpack.c.bf16 %v1203, %v1202
        %v1417 = vpack.c.bf16 %v1205, %v1204
        %v1418 = vpack.c.bf16 %v1207, %v1206
        %v1419 = vpack.c.bf16 %v1209, %v1208
        %v1420 = vpack.c.bf16 %v1211, %v1210
        %1421 = vst.msk [vmem:[#allocation2 + $0x10] sm:$0xff] %vm470, %v1405
        %1422 = vst.msk [vmem:[#allocation2 + $0x20] sm:$0xff] %vm470, %v1406
        %1423 = vst.msk [vmem:[#allocation2 + $0x30] sm:$0xff] %vm470, %v1407
        %1424 = vst.msk [vmem:[#allocation2 + $0x40] sm:$0xff] %vm470, %v1408
        %1425 = vst.msk [vmem:[#allocation2 + $0x50] sm:$0xff] %vm470, %v1409
        %1426 = vst.msk [vmem:[#allocation2 + $0x60] sm:$0xff] %vm470, %v1410
        %1427 = vst.msk [vmem:[#allocation2 + $0x70] sm:$0xff] %vm470, %v1411
        %1428 = vst.msk [vmem:[#allocation2 + $0x80] sm:$0xff] %vm470, %v1412
        %1429 = vst.msk [vmem:[#allocation2 + $0x90] sm:$0xff] %vm470, %v1413
        %1430 = vst.msk [vmem:[#allocation2 + $0xa0] sm:$0xff] %vm470, %v1414
        %1431 = vst.msk [vmem:[#allocation2 + $0xb0] sm:$0xff] %vm470, %v1415
        %1432 = vst.msk [vmem:[#allocation2 + $0xc0] sm:$0xff] %vm470, %v1416
        %1433 = vst.msk [vmem:[#allocation2 + $0xd0] sm:$0xff] %vm470, %v1417
        %1434 = vst.msk [vmem:[#allocation2 + $0xe0] sm:$0xff] %vm470, %v1418
        %1435 = vst.msk [vmem:[#allocation2 + $0xf0] sm:$0xff] %vm470, %v1419
        %1436 = vst.msk [vmem:[#allocation2 + $0x100] sm:$0xff] %vm470, %v1420
        %v1437 = vpack.c.bf16 %v956, %v955
        %v1438 = vpack.c.bf16 %v958, %v957
        %v1439 = vpack.c.bf16 %v960, %v959
        %v1440 = vpack.c.bf16 %v962, %v961
        %v1441 = vpack.c.bf16 %v964, %v963
        %v1442 = vpack.c.bf16 %v966, %v965
        %v1443 = vpack.c.bf16 %v968, %v967
        %v1444 = vpack.c.bf16 %v970, %v969
        %v1445 = vpack.c.bf16 %v972, %v971
        %v1446 = vpack.c.bf16 %v974, %v973
        %v1447 = vpack.c.bf16 %v976, %v975
        %v1448 = vpack.c.bf16 %v978, %v977
        %v1449 = vpack.c.bf16 %v980, %v979
        %v1450 = vpack.c.bf16 %v982, %v981
        %v1451 = vpack.c.bf16 %v984, %v983
        %v1452 = vpack.c.bf16 %v986, %v985
        %1469 = vrot.lane.b32.xlu0 %v1437, 64
        %v1470 = vpop.permute.xlu0 %1469
        %1471 = vrot.lane.b32.xlu0 %v1438, 64
        %v1472 = vpop.permute.xlu0 %1471
        %1473 = vrot.lane.b32.xlu0 %v1439, 64
        %v1474 = vpop.permute.xlu0 %1473
        %1475 = vrot.lane.b32.xlu0 %v1440, 64
        %v1476 = vpop.permute.xlu0 %1475
        %1477 = vrot.lane.b32.xlu0 %v1441, 64
        %v1478 = vpop.permute.xlu0 %1477
        %1479 = vrot.lane.b32.xlu0 %v1442, 64
        %v1480 = vpop.permute.xlu0 %1479
        %1481 = vrot.lane.b32.xlu0 %v1443, 64
        %v1482 = vpop.permute.xlu0 %1481
        %1483 = vrot.lane.b32.xlu0 %v1444, 64
        %v1484 = vpop.permute.xlu0 %1483
        %1485 = vrot.lane.b32.xlu0 %v1445, 64
        %v1486 = vpop.permute.xlu0 %1485
        %1487 = vrot.lane.b32.xlu0 %v1446, 64
        %v1488 = vpop.permute.xlu0 %1487
        %1489 = vrot.lane.b32.xlu0 %v1447, 64
        %v1490 = vpop.permute.xlu0 %1489
        %1491 = vrot.lane.b32.xlu0 %v1448, 64
        %v1492 = vpop.permute.xlu0 %1491
        %1493 = vrot.lane.b32.xlu0 %v1449, 64
        %v1494 = vpop.permute.xlu0 %1493
        %1495 = vrot.lane.b32.xlu0 %v1450, 64
        %v1496 = vpop.permute.xlu0 %1495
        %1497 = vrot.lane.b32.xlu0 %v1451, 64
        %v1498 = vpop.permute.xlu0 %1497
        %1499 = vrot.lane.b32.xlu0 %v1452, 64
        %v1500 = vpop.permute.xlu0 %1499
        %vm1517 = vcmask 1048064
        %1518 = vst.msk [vmem:[#allocation2 + $0x10] sm:$0xff] %vm1517, %v1470
        %1519 = vst.msk [vmem:[#allocation2 + $0x20] sm:$0xff] %vm1517, %v1472
        %1520 = vst.msk [vmem:[#allocation2 + $0x30] sm:$0xff] %vm1517, %v1474
        %1521 = vst.msk [vmem:[#allocation2 + $0x40] sm:$0xff] %vm1517, %v1476
        %1522 = vst.msk [vmem:[#allocation2 + $0x50] sm:$0xff] %vm1517, %v1478
        %1523 = vst.msk [vmem:[#allocation2 + $0x60] sm:$0xff] %vm1517, %v1480
        %1524 = vst.msk [vmem:[#allocation2 + $0x70] sm:$0xff] %vm1517, %v1482
        %1525 = vst.msk [vmem:[#allocation2 + $0x80] sm:$0xff] %vm1517, %v1484
        %1526 = vst.msk [vmem:[#allocation2 + $0x90] sm:$0xff] %vm1517, %v1486
        %1527 = vst.msk [vmem:[#allocation2 + $0xa0] sm:$0xff] %vm1517, %v1488
        %1528 = vst.msk [vmem:[#allocation2 + $0xb0] sm:$0xff] %vm1517, %v1490
        %1529 = vst.msk [vmem:[#allocation2 + $0xc0] sm:$0xff] %vm1517, %v1492
        %1530 = vst.msk [vmem:[#allocation2 + $0xd0] sm:$0xff] %vm1517, %v1494
        %1531 = vst.msk [vmem:[#allocation2 + $0xe0] sm:$0xff] %vm1517, %v1496
        %1532 = vst.msk [vmem:[#allocation2 + $0xf0] sm:$0xff] %vm1517, %v1498
        %1533 = vst.msk [vmem:[#allocation2 + $0x100] sm:$0xff] %vm1517, %v1500
        %v1534 = vpack.c.bf16 %v1374, %v1373
        %v1535 = vpack.c.bf16 %v1376, %v1375
        %v1536 = vpack.c.bf16 %v1378, %v1377
        %v1537 = vpack.c.bf16 %v1380, %v1379
        %v1538 = vpack.c.bf16 %v1382, %v1381
        %v1539 = vpack.c.bf16 %v1384, %v1383
        %v1540 = vpack.c.bf16 %v1386, %v1385
        %v1541 = vpack.c.bf16 %v1388, %v1387
        %v1542 = vpack.c.bf16 %v1390, %v1389
        %v1543 = vpack.c.bf16 %v1392, %v1391
        %v1544 = vpack.c.bf16 %v1394, %v1393
        %v1545 = vpack.c.bf16 %v1396, %v1395
        %v1546 = vpack.c.bf16 %v1398, %v1397
        %v1547 = vpack.c.bf16 %v1400, %v1399
        %v1548 = vpack.c.bf16 %v1402, %v1401
        %v1549 = vpack.c.bf16 %v1404, %v1403
        %1550 = vst.msk [vmem:[#allocation2 + $0x18] sm:$0xff] %vm470, %v1534
        %1551 = vst.msk [vmem:[#allocation2 + $0x28] sm:$0xff] %vm470, %v1535
        %1552 = vst.msk [vmem:[#allocation2 + $0x38] sm:$0xff] %vm470, %v1536
        %1553 = vst.msk [vmem:[#allocation2 + $0x48] sm:$0xff] %vm470, %v1537
        %1554 = vst.msk [vmem:[#allocation2 + $0x58] sm:$0xff] %vm470, %v1538
        %1555 = vst.msk [vmem:[#allocation2 + $0x68] sm:$0xff] %vm470, %v1539
        %1556 = vst.msk [vmem:[#allocation2 + $0x78] sm:$0xff] %vm470, %v1540
        %1557 = vst.msk [vmem:[#allocation2 + $0x88] sm:$0xff] %vm470, %v1541
        %1558 = vst.msk [vmem:[#allocation2 + $0x98] sm:$0xff] %vm470, %v1542
        %1559 = vst.msk [vmem:[#allocation2 + $0xa8] sm:$0xff] %vm470, %v1543
        %1560 = vst.msk [vmem:[#allocation2 + $0xb8] sm:$0xff] %vm470, %v1544
        %1561 = vst.msk [vmem:[#allocation2 + $0xc8] sm:$0xff] %vm470, %v1545
        %1562 = vst.msk [vmem:[#allocation2 + $0xd8] sm:$0xff] %vm470, %v1546
        %1563 = vst.msk [vmem:[#allocation2 + $0xe8] sm:$0xff] %vm470, %v1547
        %1564 = vst.msk [vmem:[#allocation2 + $0xf8] sm:$0xff] %vm470, %v1548
        %1565 = vst.msk [vmem:[#allocation2 + $0x108] sm:$0xff] %vm470, %v1549
        %v1566 = vld [vmem:[#allocation2] sm:$0xff]
        %v1567 = vld [vmem:[#allocation2 + $0x8] sm:$0xff]
        %v1568 = vld [vmem:[#allocation2 + $0x10] sm:$0xff]
        %v1569 = vld [vmem:[#allocation2 + $0x18] sm:$0xff]
        %v1570 = vld [vmem:[#allocation2 + $0x20] sm:$0xff]
        %v1571 = vld [vmem:[#allocation2 + $0x28] sm:$0xff]
        %v1572 = vld [vmem:[#allocation2 + $0x30] sm:$0xff]
        %v1573 = vld [vmem:[#allocation2 + $0x38] sm:$0xff]
        %v1574 = vld [vmem:[#allocation2 + $0x40] sm:$0xff]
        %v1575 = vld [vmem:[#allocation2 + $0x48] sm:$0xff]
        %v1576 = vld [vmem:[#allocation2 + $0x50] sm:$0xff]
        %v1577 = vld [vmem:[#allocation2 + $0x58] sm:$0xff]
        %v1578 = vld [vmem:[#allocation2 + $0x60] sm:$0xff]
        %v1579 = vld [vmem:[#allocation2 + $0x68] sm:$0xff]
        %v1580 = vld [vmem:[#allocation2 + $0x70] sm:$0xff]
        %v1581 = vld [vmem:[#allocation2 + $0x78] sm:$0xff]
        %v1582 = vld [vmem:[#allocation2 + $0x80] sm:$0xff]
        %v1583 = vld [vmem:[#allocation2 + $0x88] sm:$0xff]
        %v1584 = vld [vmem:[#allocation2 + $0x90] sm:$0xff]
        %v1585 = vld [vmem:[#allocation2 + $0x98] sm:$0xff]
        %v1586 = vld [vmem:[#allocation2 + $0xa0] sm:$0xff]
        %v1587 = vld [vmem:[#allocation2 + $0xa8] sm:$0xff]
        %v1588 = vld [vmem:[#allocation2 + $0xb0] sm:$0xff]
        %v1589 = vld [vmem:[#allocation2 + $0xb8] sm:$0xff]
        %v1590 = vld [vmem:[#allocation2 + $0xc0] sm:$0xff]
        %v1591 = vld [vmem:[#allocation2 + $0xc8] sm:$0xff]
        %v1592 = vld [vmem:[#allocation2 + $0xd0] sm:$0xff]
        %v1593 = vld [vmem:[#allocation2 + $0xd8] sm:$0xff]
        %v1594 = vld [vmem:[#allocation2 + $0xe0] sm:$0xff]
        %v1595 = vld [vmem:[#allocation2 + $0xe8] sm:$0xff]
        %v1596 = vld [vmem:[#allocation2 + $0xf0] sm:$0xff]
        %v1597 = vld [vmem:[#allocation2 + $0xf8] sm:$0xff]
        %v1598 = vld [vmem:[%s1] sm:$0xf]
        %v1599 = vld [vmem:[%s1 + $0x4] sm:$0xf]
        %v1600 = vld [vmem:[%s1 + $0x8] sm:$0xf]
        %v1601 = vld [vmem:[%s1 + $0xc] sm:$0xf]
        %v1602 = vld [vmem:[%s1 + $0x10] sm:$0xf]
        %v1603 = vld [vmem:[%s1 + $0x14] sm:$0xf]
        %v1604 = vld [vmem:[%s1 + $0x18] sm:$0xf]
        %v1605 = vld [vmem:[%s1 + $0x1c] sm:$0xf]
        %v1606 = vld [vmem:[%s1 + $0x20] sm:$0xf]
        %v1607 = vld [vmem:[%s1 + $0x24] sm:$0xf]
        %v1608 = vld [vmem:[%s1 + $0x28] sm:$0xf]
        %v1609 = vld [vmem:[%s1 + $0x2c] sm:$0xf]
        %v1610 = vld [vmem:[%s1 + $0x30] sm:$0xf]
        %v1611 = vld [vmem:[%s1 + $0x34] sm:$0xf]
        %v1612 = vld [vmem:[%s1 + $0x38] sm:$0xf]
        %v1613 = vld [vmem:[%s1 + $0x3c] sm:$0xf]
        %v1614 = vld [vmem:[%s1 + $0x40] sm:$0xf]
        %v1615 = vld [vmem:[%s1 + $0x44] sm:$0xf]
        %v1616 = vld [vmem:[%s1 + $0x48] sm:$0xf]
        %v1617 = vld [vmem:[%s1 + $0x4c] sm:$0xf]
        %v1618 = vld [vmem:[%s1 + $0x50] sm:$0xf]
        %v1619 = vld [vmem:[%s1 + $0x54] sm:$0xf]
        %v1620 = vld [vmem:[%s1 + $0x58] sm:$0xf]
        %v1621 = vld [vmem:[%s1 + $0x5c] sm:$0xf]
        %v1622 = vld [vmem:[#allocation2 + $0x100] sm:$0xff]
        %v1623 = vld [vmem:[#allocation2 + $0x108] sm:$0xff]
        %s1624 = scalar_lea.vmem %s1, 96
        %v1625 = vld [vmem:[%s1624] sm:$0xf]
        %v1626 = vld [vmem:[%s1624 + $0x4] sm:$0xf]
        %v1627 = vld [vmem:[%s1624 + $0x8] sm:$0xf]
        %v1628 = vld [vmem:[%s1624 + $0xc] sm:$0xf]
        %v1629 = vld [vmem:[%s1624 + $0x10] sm:$0xf]
        %v1630 = vld [vmem:[%s1624 + $0x14] sm:$0xf]
        %v1631 = vld [vmem:[%s1624 + $0x18] sm:$0xf]
        %v1632 = vld [vmem:[%s1624 + $0x1c] sm:$0xf]
        %v1633 = vld [vmem:[%s1624 + $0x20] sm:$0xf]
        %v1634 = vld [vmem:[%s1624 + $0x24] sm:$0xf]
        %v1635 = vld [vmem:[%s1624 + $0x28] sm:$0xf]
        %v1636 = vld [vmem:[%s1624 + $0x2c] sm:$0xf]
        %v1637 = vld [vmem:[%s1624 + $0x30] sm:$0xf]
        %v1638 = vld [vmem:[%s1624 + $0x34] sm:$0xf]
        %v1639 = vld [vmem:[%s1624 + $0x38] sm:$0xf]
        %v1640 = vld [vmem:[%s1624 + $0x3c] sm:$0xf]
        %v1641 = vld [vmem:[%s1624 + $0x40] sm:$0xf]
        %v1642 = vld [vmem:[%s1624 + $0x44] sm:$0xf]
        %v1643 = vld [vmem:[%s1624 + $0x48] sm:$0xf]
        %v1644 = vld [vmem:[%s1624 + $0x4c] sm:$0xf]
        %v1645 = vld [vmem:[%s1624 + $0x50] sm:$0xf]
        %v1646 = vld [vmem:[%s1624 + $0x54] sm:$0xf]
        %v1647 = vld [vmem:[%s1624 + $0x58] sm:$0xf]
        %v1648 = vld [vmem:[%s1624 + $0x5c] sm:$0xf]
        %v1673 = vunpack.c.l.b16 %v1625
        %v1674 = vunpack.c.l.b16 %v1626
        %v1675 = vunpack.c.l.b16 %v1627
        %v1676 = vunpack.c.l.b16 %v1628
        %v1677 = vunpack.c.l.b16 %v1629
        %v1678 = vunpack.c.l.b16 %v1630
        %v1679 = vunpack.c.l.b16 %v1631
        %v1680 = vunpack.c.l.b16 %v1632
        %v1681 = vunpack.c.l.b16 %v1633
        %v1682 = vunpack.c.l.b16 %v1634
        %v1683 = vunpack.c.l.b16 %v1635
        %v1684 = vunpack.c.l.b16 %v1636
        %v1685 = vunpack.c.l.b16 %v1637
        %v1686 = vunpack.c.l.b16 %v1638
        %v1687 = vunpack.c.l.b16 %v1639
        %v1688 = vunpack.c.l.b16 %v1640
        %v1689 = vunpack.c.l.b16 %v1641
        %v1690 = vunpack.c.l.b16 %v1642
        %v1691 = vunpack.c.l.b16 %v1643
        %v1692 = vunpack.c.l.b16 %v1644
        %v1693 = vunpack.c.l.b16 %v1645
        %v1694 = vunpack.c.l.b16 %v1646
        %v1695 = vunpack.c.l.b16 %v1647
        %v1696 = vunpack.c.l.b16 %v1648
        %v1697 = vpack.c.b16 %v1674, %v1673
        %v1698 = vpack.c.b16 %v1676, %v1675
        %v1699 = vpack.c.b16 %v1678, %v1677
        %v1700 = vpack.c.b16 %v1680, %v1679
        %v1701 = vpack.c.b16 %v1682, %v1681
        %v1702 = vpack.c.b16 %v1684, %v1683
        %v1703 = vpack.c.b16 %v1686, %v1685
        %v1704 = vpack.c.b16 %v1688, %v1687
        %v1705 = vpack.c.b16 %v1690, %v1689
        %v1706 = vpack.c.b16 %v1692, %v1691
        %v1707 = vpack.c.b16 %v1694, %v1693
        %v1708 = vpack.c.b16 %v1696, %v1695
        %v1722 = vsel %vm470, %v1569, 0
        %v1725 = vsel %vm470, %v1571, 0
        %v1728 = vsel %vm470, %v1573, 0
        %v1731 = vsel %vm470, %v1575, 0
        %v1734 = vsel %vm470, %v1577, 0
        %v1737 = vsel %vm470, %v1579, 0
        %v1740 = vsel %vm470, %v1581, 0
        %v1743 = vsel %vm470, %v1583, 0
        %v1746 = vsel %vm470, %v1585, 0
        %v1749 = vsel %vm470, %v1587, 0
        %v1752 = vsel %vm470, %v1589, 0
        %v1755 = vsel %vm470, %v1591, 0
        %v1758 = vsel %vm470, %v1593, 0
        %v1761 = vsel %vm470, %v1595, 0
        %v1764 = vsel %vm470, %v1597, 0
        %v1767 = vsel %vm470, %v1623, 0
        %1769 = vmatprep.subr.bf16.mxu0 0
        %1770 = vmatpush1.bf16.msra.mxu0 %v1697
        %1771 = vmatprep.subr.bf16.mxu0 0
        %1772 = vmatpush1.bf16.msra.mxu0 %v1698
        %1773 = vmatprep.subr.bf16.mxu0 0
        %1774 = vmatpush1.bf16.msra.mxu0 %v1699
        %1775 = vmatprep.subr.bf16.mxu0 0
        %1776 = vmatpush1.bf16.msra.mxu0 %v1700
        %1777 = vmatprep.subr.bf16.mxu0 0
        %1778 = vmatpush1.bf16.msra.mxu0 %v1701
        %1779 = vmatprep.subr.bf16.mxu0 0
        %1780 = vmatpush1.bf16.msra.mxu0 %v1702
        %1781 = vmatprep.subr.bf16.mxu0 0
        %1782 = vmatpush1.bf16.msra.mxu0 %v1703
        %1783 = vmatprep.subr.bf16.mxu0 0
        %1784 = vmatpush1.bf16.msra.mxu0 %v1704
        %1785 = vmatprep.subr.bf16.mxu0 0
        %1786 = vmatpush1.bf16.msra.mxu0 %v1705
        %1787 = vmatprep.subr.bf16.mxu0 0
        %1788 = vmatpush1.bf16.msra.mxu0 %v1706
        %1789 = vmatprep.subr.bf16.mxu0 0
        %1790 = vmatpush1.bf16.msra.mxu0 %v1707
        %1791 = vmatprep.subr.bf16.mxu0 0
        %1792 = vmatpush1.bf16.msra.mxu0 %v1708
        %1793 = vmatprep.subr.bf16.mxu0 0
        %1794 = vmatpush1.bf16.msra.mxu0 0
        %1795 = vmatprep.subr.bf16.mxu0 0
        %1796 = vmatpush1.bf16.msra.mxu0 0
        %1797 = vmatprep.subr.bf16.mxu0 0
        %1798 = vmatpush1.bf16.msra.mxu0 0
        %1799 = vmatprep.subr.bf16.mxu0 0
        %1800 = vmatpush1.bf16.msra.mxu0 0
        %1801 = vmatprep.mubr.bf16.mxu0 %v1722
        %1802 = vmatmul.mubr.bf16.gmra.mrb[0].mxu0 %v1568
        %v1803 = vpop.f32.mrb[0].mxu0
        %v1804 = vadd.f32 0.0, %v1803
        %v1805 = vpop.f32.mrb[0].mxu0
        %v1806 = vpop.f32.mrb[0].mxu0
        %v1807 = vadd.f32 0.0, %v1806
        %v1808 = vpop.f32.mrb[0].mxu0
        %1809 = vmatprep.mubr.bf16.mxu0 %v1725
        %1810 = vmatmul.mubr.bf16.gmra.mrb[0].mxu0 %v1570
        %v1811 = vpop.f32.mrb[0].mxu0
        %v1812 = vadd.f32 0.0, %v1811
        %v1813 = vpop.f32.mrb[0].mxu0
        %v1814 = vpop.f32.mrb[0].mxu0
        %v1815 = vadd.f32 0.0, %v1814
        %v1816 = vpop.f32.mrb[0].mxu0
        %1817 = vmatprep.mubr.bf16.mxu0 %v1728
        %1818 = vmatmul.mubr.bf16.gmra.mrb[0].mxu0 %v1572
        %v1819 = vpop.f32.mrb[0].mxu0
        %v1820 = vadd.f32 0.0, %v1819
        %v1821 = vpop.f32.mrb[0].mxu0
        %v1822 = vpop.f32.mrb[0].mxu0
        %v1823 = vadd.f32 0.0, %v1822
        %v1824 = vpop.f32.mrb[0].mxu0
        %1825 = vmatprep.mubr.bf16.mxu0 %v1731
        %1826 = vmatmul.mubr.bf16.gmra.mrb[0].mxu0 %v1574
        %v1827 = vpop.f32.mrb[0].mxu0
        %v1828 = vadd.f32 0.0, %v1827
        %v1829 = vpop.f32.mrb[0].mxu0
        %v1830 = vpop.f32.mrb[0].mxu0
        %v1831 = vadd.f32 0.0, %v1830
        %v1832 = vpop.f32.mrb[0].mxu0
        %1833 = vmatprep.mubr.bf16.mxu0 %v1734
        %1834 = vmatmul.mubr.bf16.gmra.mrb[0].mxu0 %v1576
        %v1835 = vpop.f32.mrb[0].mxu0
        %v1836 = vadd.f32 0.0, %v1835
        %v1837 = vpop.f32.mrb[0].mxu0
        %v1838 = vpop.f32.mrb[0].mxu0
        %v1839 = vadd.f32 0.0, %v1838
        %v1840 = vpop.f32.mrb[0].mxu0
        %1841 = vmatprep.mubr.bf16.mxu0 %v1737
        %1842 = vmatmul.mubr.bf16.gmra.mrb[0].mxu0 %v1578
        %v1843 = vpop.f32.mrb[0].mxu0
        %v1844 = vadd.f32 0.0, %v1843
        %v1845 = vpop.f32.mrb[0].mxu0
        %v1846 = vpop.f32.mrb[0].mxu0
        %v1847 = vadd.f32 0.0, %v1846
        %v1848 = vpop.f32.mrb[0].mxu0
        %1849 = vmatprep.mubr.bf16.mxu0 %v1740
        %1850 = vmatmul.mubr.bf16.gmra.mrb[0].mxu0 %v1580
        %v1851 = vpop.f32.mrb[0].mxu0
        %v1852 = vadd.f32 0.0, %v1851
        %v1853 = vpop.f32.mrb[0].mxu0
        %v1854 = vpop.f32.mrb[0].mxu0
        %v1855 = vadd.f32 0.0, %v1854
        %v1856 = vpop.f32.mrb[0].mxu0
        %1857 = vmatprep.mubr.bf16.mxu0 %v1743
        %1858 = vmatmul.mubr.bf16.gmra.mrb[0].mxu0 %v1582
        %v1859 = vpop.f32.mrb[0].mxu0
        %v1860 = vadd.f32 0.0, %v1859
        %v1861 = vpop.f32.mrb[0].mxu0
        %v1862 = vpop.f32.mrb[0].mxu0
        %v1863 = vadd.f32 0.0, %v1862
        %v1864 = vpop.f32.mrb[0].mxu0
        %1865 = vmatprep.mubr.bf16.mxu0 %v1746
        %1866 = vmatmul.mubr.bf16.gmra.mrb[0].mxu0 %v1584
        %v1867 = vpop.f32.mrb[0].mxu0
        %v1868 = vadd.f32 0.0, %v1867
        %v1869 = vpop.f32.mrb[0].mxu0
        %v1870 = vpop.f32.mrb[0].mxu0
        %v1871 = vadd.f32 0.0, %v1870
        %v1872 = vpop.f32.mrb[0].mxu0
        %1873 = vmatprep.mubr.bf16.mxu0 %v1749
        %1874 = vmatmul.mubr.bf16.gmra.mrb[0].mxu0 %v1586
        %v1875 = vpop.f32.mrb[0].mxu0
        %v1876 = vadd.f32 0.0, %v1875
        %v1877 = vpop.f32.mrb[0].mxu0
        %v1878 = vpop.f32.mrb[0].mxu0
        %v1879 = vadd.f32 0.0, %v1878
        %v1880 = vpop.f32.mrb[0].mxu0
        %1881 = vmatprep.mubr.bf16.mxu0 %v1752
        %1882 = vmatmul.mubr.bf16.gmra.mrb[0].mxu0 %v1588
        %v1883 = vpop.f32.mrb[0].mxu0
        %v1884 = vadd.f32 0.0, %v1883
        %v1885 = vpop.f32.mrb[0].mxu0
        %v1886 = vpop.f32.mrb[0].mxu0
        %v1887 = vadd.f32 0.0, %v1886
        %v1888 = vpop.f32.mrb[0].mxu0
        %1889 = vmatprep.mubr.bf16.mxu0 %v1755
        %1890 = vmatmul.mubr.bf16.gmra.mrb[0].mxu0 %v1590
        %v1891 = vpop.f32.mrb[0].mxu0
        %v1892 = vadd.f32 0.0, %v1891
        %v1893 = vpop.f32.mrb[0].mxu0
        %v1894 = vpop.f32.mrb[0].mxu0
        %v1895 = vadd.f32 0.0, %v1894
        %v1896 = vpop.f32.mrb[0].mxu0
        %1897 = vmatprep.mubr.bf16.mxu0 %v1758
        %1898 = vmatmul.mubr.bf16.gmra.mrb[0].mxu0 %v1592
        %v1899 = vpop.f32.mrb[0].mxu0
        %v1900 = vadd.f32 0.0, %v1899
        %v1901 = vpop.f32.mrb[0].mxu0
        %v1902 = vpop.f32.mrb[0].mxu0
        %v1903 = vadd.f32 0.0, %v1902
        %v1904 = vpop.f32.mrb[0].mxu0
        %1905 = vmatprep.mubr.bf16.mxu0 %v1761
        %1906 = vmatmul.mubr.bf16.gmra.mrb[0].mxu0 %v1594
        %v1907 = vpop.f32.mrb[0].mxu0
        %v1908 = vadd.f32 0.0, %v1907
        %v1909 = vpop.f32.mrb[0].mxu0
        %v1910 = vpop.f32.mrb[0].mxu0
        %v1911 = vadd.f32 0.0, %v1910
        %v1912 = vpop.f32.mrb[0].mxu0
        %1913 = vmatprep.mubr.bf16.mxu0 %v1764
        %1914 = vmatmul.mubr.bf16.gmra.mrb[0].mxu0 %v1596
        %v1915 = vpop.f32.mrb[0].mxu0
        %v1916 = vadd.f32 0.0, %v1915
        %v1917 = vpop.f32.mrb[0].mxu0
        %v1918 = vpop.f32.mrb[0].mxu0
        %v1919 = vadd.f32 0.0, %v1918
        %v1920 = vpop.f32.mrb[0].mxu0
        %1921 = vmatprep.mubr.bf16.mxu0 %v1767
        %1922 = vmatmul.mubr.bf16.gmra.mrb[0].mxu0 %v1622
        %v1923 = vpop.f32.mrb[0].mxu0
        %v1924 = vadd.f32 0.0, %v1923
        %v1925 = vpop.f32.mrb[0].mxu0
        %v1926 = vpop.f32.mrb[0].mxu0
        %v1927 = vadd.f32 0.0, %v1926
        %v1928 = vpop.f32.mrb[0].mxu0
        %1929 = vdwg.mxu0
        %v1954 = vunpack.c.l.b16 %v1598
        %v1955 = vunpack.c.l.b16 %v1599
        %v1956 = vunpack.c.l.b16 %v1600
        %v1957 = vunpack.c.l.b16 %v1601
        %v1958 = vunpack.c.l.b16 %v1602
        %v1959 = vunpack.c.l.b16 %v1603
        %v1960 = vunpack.c.l.b16 %v1604
        %v1961 = vunpack.c.l.b16 %v1605
        %v1962 = vunpack.c.l.b16 %v1606
        %v1963 = vunpack.c.l.b16 %v1607
        %v1964 = vunpack.c.l.b16 %v1608
        %v1965 = vunpack.c.l.b16 %v1609
        %v1966 = vunpack.c.l.b16 %v1610
        %v1967 = vunpack.c.l.b16 %v1611
        %v1968 = vunpack.c.l.b16 %v1612
        %v1969 = vunpack.c.l.b16 %v1613
        %v1970 = vunpack.c.l.b16 %v1614
        %v1971 = vunpack.c.l.b16 %v1615
        %v1972 = vunpack.c.l.b16 %v1616
        %v1973 = vunpack.c.l.b16 %v1617
        %v1974 = vunpack.c.l.b16 %v1618
        %v1975 = vunpack.c.l.b16 %v1619
        %v1976 = vunpack.c.l.b16 %v1620
        %v1977 = vunpack.c.l.b16 %v1621
        %v1978 = vpack.c.b16 %v1955, %v1954
        %v1979 = vpack.c.b16 %v1957, %v1956
        %v1980 = vpack.c.b16 %v1959, %v1958
        %v1981 = vpack.c.b16 %v1961, %v1960
        %v1982 = vpack.c.b16 %v1963, %v1962
        %v1983 = vpack.c.b16 %v1965, %v1964
        %v1984 = vpack.c.b16 %v1967, %v1966
        %v1985 = vpack.c.b16 %v1969, %v1968
        %v1986 = vpack.c.b16 %v1971, %v1970
        %v1987 = vpack.c.b16 %v1973, %v1972
        %v1988 = vpack.c.b16 %v1975, %v1974
        %v1989 = vpack.c.b16 %v1977, %v1976
        %v2003 = vsel %vm470, %v1567, 0
        %2005 = vmatprep.subr.bf16.mxu0 0
        %2006 = vmatpush1.bf16.msra.mxu0 %v1978
        %2007 = vmatprep.subr.bf16.mxu0 0
        %2008 = vmatpush1.bf16.msra.mxu0 %v1979
        %2009 = vmatprep.subr.bf16.mxu0 0
        %2010 = vmatpush1.bf16.msra.mxu0 %v1980
        %2011 = vmatprep.subr.bf16.mxu0 0
        %2012 = vmatpush1.bf16.msra.mxu0 %v1981
        %2013 = vmatprep.subr.bf16.mxu0 0
        %2014 = vmatpush1.bf16.msra.mxu0 %v1982
        %2015 = vmatprep.subr.bf16.mxu0 0
        %2016 = vmatpush1.bf16.msra.mxu0 %v1983
        %2017 = vmatprep.subr.bf16.mxu0 0
        %2018 = vmatpush1.bf16.msra.mxu0 %v1984
        %2019 = vmatprep.subr.bf16.mxu0 0
        %2020 = vmatpush1.bf16.msra.mxu0 %v1985
        %2021 = vmatprep.subr.bf16.mxu0 0
        %2022 = vmatpush1.bf16.msra.mxu0 %v1986
        %2023 = vmatprep.subr.bf16.mxu0 0
        %2024 = vmatpush1.bf16.msra.mxu0 %v1987
        %2025 = vmatprep.subr.bf16.mxu0 0
        %2026 = vmatpush1.bf16.msra.mxu0 %v1988
        %2027 = vmatprep.subr.bf16.mxu0 0
        %2028 = vmatpush1.bf16.msra.mxu0 %v1989
        %2029 = vmatprep.subr.bf16.mxu0 0
        %2030 = vmatpush1.bf16.msra.mxu0 0
        %2031 = vmatprep.subr.bf16.mxu0 0
        %2032 = vmatpush1.bf16.msra.mxu0 0
        %2033 = vmatprep.subr.bf16.mxu0 0
        %2034 = vmatpush1.bf16.msra.mxu0 0
        %2035 = vmatprep.subr.bf16.mxu0 0
        %2036 = vmatpush1.bf16.msra.mxu0 0
        %2037 = vmatprep.mubr.bf16.mxu0 %v2003
        %2038 = vmatmul.mubr.bf16.gmra.mrb[0].mxu0 %v1566
        %v2039 = vpop.f32.mrb[0].mxu0
        %v2040 = vadd.f32 %v1804, %v2039
        %v2041 = vpop.f32.mrb[0].mxu0
        %v2042 = vpop.f32.mrb[0].mxu0
        %v2043 = vadd.f32 %v1807, %v2042
        %v2044 = vpop.f32.mrb[0].mxu0
        %2045 = vmatprep.mubr.bf16.mxu0 %v1722
        %2046 = vmatmul.mubr.bf16.gmra.mrb[0].mxu0 %v1568
        %v2047 = vpop.f32.mrb[0].mxu0
        %v2048 = vadd.f32 %v1812, %v2047
        %v2049 = vpop.f32.mrb[0].mxu0
        %v2050 = vpop.f32.mrb[0].mxu0
        %v2051 = vadd.f32 %v1815, %v2050
        %v2052 = vpop.f32.mrb[0].mxu0
        %2053 = vmatprep.mubr.bf16.mxu0 %v1725
        %2054 = vmatmul.mubr.bf16.gmra.mrb[0].mxu0 %v1570
        %v2055 = vpop.f32.mrb[0].mxu0
        %v2056 = vadd.f32 %v1820, %v2055
        %v2057 = vpop.f32.mrb[0].mxu0
        %v2058 = vpop.f32.mrb[0].mxu0
        %v2059 = vadd.f32 %v1823, %v2058
        %v2060 = vpop.f32.mrb[0].mxu0
        %2061 = vmatprep.mubr.bf16.mxu0 %v1728
        %2062 = vmatmul.mubr.bf16.gmra.mrb[0].mxu0 %v1572
        %v2063 = vpop.f32.mrb[0].mxu0
        %v2064 = vadd.f32 %v1828, %v2063
        %v2065 = vpop.f32.mrb[0].mxu0
        %v2066 = vpop.f32.mrb[0].mxu0
        %v2067 = vadd.f32 %v1831, %v2066
        %v2068 = vpop.f32.mrb[0].mxu0
        %2069 = vmatprep.mubr.bf16.mxu0 %v1731
        %2070 = vmatmul.mubr.bf16.gmra.mrb[0].mxu0 %v1574
        %v2071 = vpop.f32.mrb[0].mxu0
        %v2072 = vadd.f32 %v1836, %v2071
        %v2073 = vpop.f32.mrb[0].mxu0
        %v2074 = vpop.f32.mrb[0].mxu0
        %v2075 = vadd.f32 %v1839, %v2074
        %v2076 = vpop.f32.mrb[0].mxu0
        %2077 = vmatprep.mubr.bf16.mxu0 %v1734
        %2078 = vmatmul.mubr.bf16.gmra.mrb[0].mxu0 %v1576
        %v2079 = vpop.f32.mrb[0].mxu0
        %v2080 = vadd.f32 %v1844, %v2079
        %v2081 = vpop.f32.mrb[0].mxu0
        %v2082 = vpop.f32.mrb[0].mxu0
        %v2083 = vadd.f32 %v1847, %v2082
        %v2084 = vpop.f32.mrb[0].mxu0
        %2085 = vmatprep.mubr.bf16.mxu0 %v1737
        %2086 = vmatmul.mubr.bf16.gmra.mrb[0].mxu0 %v1578
        %v2087 = vpop.f32.mrb[0].mxu0
        %v2088 = vadd.f32 %v1852, %v2087
        %v2089 = vpop.f32.mrb[0].mxu0
        %v2090 = vpop.f32.mrb[0].mxu0
        %v2091 = vadd.f32 %v1855, %v2090
        %v2092 = vpop.f32.mrb[0].mxu0
        %2093 = vmatprep.mubr.bf16.mxu0 %v1740
        %2094 = vmatmul.mubr.bf16.gmra.mrb[0].mxu0 %v1580
        %v2095 = vpop.f32.mrb[0].mxu0
        %v2096 = vadd.f32 %v1860, %v2095
        %v2097 = vpop.f32.mrb[0].mxu0
        %v2098 = vpop.f32.mrb[0].mxu0
        %v2099 = vadd.f32 %v1863, %v2098
        %v2100 = vpop.f32.mrb[0].mxu0
        %2101 = vmatprep.mubr.bf16.mxu0 %v1743
        %2102 = vmatmul.mubr.bf16.gmra.mrb[0].mxu0 %v1582
        %v2103 = vpop.f32.mrb[0].mxu0
        %v2104 = vadd.f32 %v1868, %v2103
        %v2105 = vpop.f32.mrb[0].mxu0
        %v2106 = vpop.f32.mrb[0].mxu0
        %v2107 = vadd.f32 %v1871, %v2106
        %v2108 = vpop.f32.mrb[0].mxu0
        %2109 = vmatprep.mubr.bf16.mxu0 %v1746
        %2110 = vmatmul.mubr.bf16.gmra.mrb[0].mxu0 %v1584
        %v2111 = vpop.f32.mrb[0].mxu0
        %v2112 = vadd.f32 %v1876, %v2111
        %v2113 = vpop.f32.mrb[0].mxu0
        %v2114 = vpop.f32.mrb[0].mxu0
        %v2115 = vadd.f32 %v1879, %v2114
        %v2116 = vpop.f32.mrb[0].mxu0
        %2117 = vmatprep.mubr.bf16.mxu0 %v1749
        %2118 = vmatmul.mubr.bf16.gmra.mrb[0].mxu0 %v1586
        %v2119 = vpop.f32.mrb[0].mxu0
        %v2120 = vadd.f32 %v1884, %v2119
        %v2121 = vpop.f32.mrb[0].mxu0
        %v2122 = vpop.f32.mrb[0].mxu0
        %v2123 = vadd.f32 %v1887, %v2122
        %v2124 = vpop.f32.mrb[0].mxu0
        %2125 = vmatprep.mubr.bf16.mxu0 %v1752
        %2126 = vmatmul.mubr.bf16.gmra.mrb[0].mxu0 %v1588
        %v2127 = vpop.f32.mrb[0].mxu0
        %v2128 = vadd.f32 %v1892, %v2127
        %v2129 = vpop.f32.mrb[0].mxu0
        %v2130 = vpop.f32.mrb[0].mxu0
        %v2131 = vadd.f32 %v1895, %v2130
        %v2132 = vpop.f32.mrb[0].mxu0
        %2133 = vmatprep.mubr.bf16.mxu0 %v1755
        %2134 = vmatmul.mubr.bf16.gmra.mrb[0].mxu0 %v1590
        %v2135 = vpop.f32.mrb[0].mxu0
        %v2136 = vadd.f32 %v1900, %v2135
        %v2137 = vpop.f32.mrb[0].mxu0
        %v2138 = vpop.f32.mrb[0].mxu0
        %v2139 = vadd.f32 %v1903, %v2138
        %v2140 = vpop.f32.mrb[0].mxu0
        %2141 = vmatprep.mubr.bf16.mxu0 %v1758
        %2142 = vmatmul.mubr.bf16.gmra.mrb[0].mxu0 %v1592
        %v2143 = vpop.f32.mrb[0].mxu0
        %v2144 = vadd.f32 %v1908, %v2143
        %v2145 = vpop.f32.mrb[0].mxu0
        %v2146 = vpop.f32.mrb[0].mxu0
        %v2147 = vadd.f32 %v1911, %v2146
        %v2148 = vpop.f32.mrb[0].mxu0
        %2149 = vmatprep.mubr.bf16.mxu0 %v1761
        %2150 = vmatmul.mubr.bf16.gmra.mrb[0].mxu0 %v1594
        %v2151 = vpop.f32.mrb[0].mxu0
        %v2152 = vadd.f32 %v1916, %v2151
        %v2153 = vpop.f32.mrb[0].mxu0
        %v2154 = vpop.f32.mrb[0].mxu0
        %v2155 = vadd.f32 %v1919, %v2154
        %v2156 = vpop.f32.mrb[0].mxu0
        %2157 = vmatprep.mubr.bf16.mxu0 %v1764
        %2158 = vmatmul.mubr.bf16.gmra.mrb[0].mxu0 %v1596
        %v2159 = vpop.f32.mrb[0].mxu0
        %v2160 = vadd.f32 %v1924, %v2159
        %v2161 = vpop.f32.mrb[0].mxu0
        %v2162 = vpop.f32.mrb[0].mxu0
        %v2163 = vadd.f32 %v1927, %v2162
        %v2164 = vpop.f32.mrb[0].mxu0
        %2165 = vdwg.mxu0
        %v2166 = vld [vmem:[#allocation2 + $0x20] sm:$0xff]
        %v2167 = vld [vmem:[#allocation2 + $0x28] sm:$0xff]
        %v2168 = vld [vmem:[#allocation2 + $0x30] sm:$0xff]
        %v2169 = vld [vmem:[#allocation2 + $0x38] sm:$0xff]
        %v2170 = vld [vmem:[#allocation2 + $0x40] sm:$0xff]
        %v2171 = vld [vmem:[#allocation2 + $0x48] sm:$0xff]
        %v2172 = vld [vmem:[#allocation2 + $0x50] sm:$0xff]
        %v2173 = vld [vmem:[#allocation2 + $0x58] sm:$0xff]
        %v2174 = vld [vmem:[#allocation2 + $0x60] sm:$0xff]
        %v2175 = vld [vmem:[#allocation2 + $0x68] sm:$0xff]
        %v2176 = vld [vmem:[#allocation2 + $0x70] sm:$0xff]
        %v2177 = vld [vmem:[#allocation2 + $0x78] sm:$0xff]
        %v2178 = vld [vmem:[#allocation2 + $0x80] sm:$0xff]
        %v2179 = vld [vmem:[#allocation2 + $0x88] sm:$0xff]
        %v2180 = vld [vmem:[#allocation2 + $0x90] sm:$0xff]
        %v2181 = vld [vmem:[#allocation2 + $0x98] sm:$0xff]
        %v2182 = vld [vmem:[#allocation2 + $0xa0] sm:$0xff]
        %v2183 = vld [vmem:[#allocation2 + $0xa8] sm:$0xff]
        %v2184 = vld [vmem:[#allocation2 + $0xb0] sm:$0xff]
        %v2185 = vld [vmem:[#allocation2 + $0xb8] sm:$0xff]
        %v2186 = vld [vmem:[#allocation2 + $0xc0] sm:$0xff]
        %v2187 = vld [vmem:[#allocation2 + $0xc8] sm:$0xff]
        %v2188 = vld [vmem:[#allocation2 + $0xd0] sm:$0xff]
        %v2189 = vld [vmem:[#allocation2 + $0xd8] sm:$0xff]
        %v2190 = vld [vmem:[#allocation2 + $0xe0] sm:$0xff]
        %v2191 = vld [vmem:[#allocation2 + $0xe8] sm:$0xff]
        %v2192 = vld [vmem:[#allocation2 + $0xf0] sm:$0xff]
        %v2193 = vld [vmem:[#allocation2 + $0xf8] sm:$0xff]
        %v2194 = vld [vmem:[#allocation2 + $0x100] sm:$0xff]
        %v2195 = vld [vmem:[#allocation2 + $0x108] sm:$0xff]
        %v2196 = vld [vmem:[#allocation2 + $0x110] sm:$0xff]
        %v2197 = vld [vmem:[#allocation2 + $0x118] sm:$0xff]
        %s2198 = scalar_lea.vmem %s1, 192
        %v2199 = vld [vmem:[%s2198] sm:$0xf]
        %v2200 = vld [vmem:[%s2198 + $0x4] sm:$0xf]
        %v2201 = vld [vmem:[%s2198 + $0x8] sm:$0xf]
        %v2202 = vld [vmem:[%s2198 + $0xc] sm:$0xf]
        %v2203 = vld [vmem:[%s2198 + $0x10] sm:$0xf]
        %v2204 = vld [vmem:[%s2198 + $0x14] sm:$0xf]
        %v2205 = vld [vmem:[%s2198 + $0x18] sm:$0xf]
        %v2206 = vld [vmem:[%s2198 + $0x1c] sm:$0xf]
        %v2207 = vld [vmem:[%s2198 + $0x20] sm:$0xf]
        %v2208 = vld [vmem:[%s2198 + $0x24] sm:$0xf]
        %v2209 = vld [vmem:[%s2198 + $0x28] sm:$0xf]
        %v2210 = vld [vmem:[%s2198 + $0x2c] sm:$0xf]
        %v2211 = vld [vmem:[%s2198 + $0x30] sm:$0xf]
        %v2212 = vld [vmem:[%s2198 + $0x34] sm:$0xf]
        %v2213 = vld [vmem:[%s2198 + $0x38] sm:$0xf]
        %v2214 = vld [vmem:[%s2198 + $0x3c] sm:$0xf]
        %v2215 = vld [vmem:[%s2198 + $0x40] sm:$0xf]
        %v2216 = vld [vmem:[%s2198 + $0x44] sm:$0xf]
        %v2217 = vld [vmem:[%s2198 + $0x48] sm:$0xf]
        %v2218 = vld [vmem:[%s2198 + $0x4c] sm:$0xf]
        %v2219 = vld [vmem:[%s2198 + $0x50] sm:$0xf]
        %v2220 = vld [vmem:[%s2198 + $0x54] sm:$0xf]
        %v2221 = vld [vmem:[%s2198 + $0x58] sm:$0xf]
        %v2222 = vld [vmem:[%s2198 + $0x5c] sm:$0xf]
        %v2247 = vunpack.c.l.b16 %v2199
        %v2248 = vunpack.c.l.b16 %v2200
        %v2249 = vunpack.c.l.b16 %v2201
        %v2250 = vunpack.c.l.b16 %v2202
        %v2251 = vunpack.c.l.b16 %v2203
        %v2252 = vunpack.c.l.b16 %v2204
        %v2253 = vunpack.c.l.b16 %v2205
        %v2254 = vunpack.c.l.b16 %v2206
        %v2255 = vunpack.c.l.b16 %v2207
        %v2256 = vunpack.c.l.b16 %v2208
        %v2257 = vunpack.c.l.b16 %v2209
        %v2258 = vunpack.c.l.b16 %v2210
        %v2259 = vunpack.c.l.b16 %v2211
        %v2260 = vunpack.c.l.b16 %v2212
        %v2261 = vunpack.c.l.b16 %v2213
        %v2262 = vunpack.c.l.b16 %v2214
        %v2263 = vunpack.c.l.b16 %v2215
        %v2264 = vunpack.c.l.b16 %v2216
        %v2265 = vunpack.c.l.b16 %v2217
        %v2266 = vunpack.c.l.b16 %v2218
        %v2267 = vunpack.c.l.b16 %v2219
        %v2268 = vunpack.c.l.b16 %v2220
        %v2269 = vunpack.c.l.b16 %v2221
        %v2270 = vunpack.c.l.b16 %v2222
        %v2271 = vpack.c.b16 %v2248, %v2247
        %v2272 = vpack.c.b16 %v2250, %v2249
        %v2273 = vpack.c.b16 %v2252, %v2251
        %v2274 = vpack.c.b16 %v2254, %v2253
        %v2275 = vpack.c.b16 %v2256, %v2255
        %v2276 = vpack.c.b16 %v2258, %v2257
        %v2277 = vpack.c.b16 %v2260, %v2259
        %v2278 = vpack.c.b16 %v2262, %v2261
        %v2279 = vpack.c.b16 %v2264, %v2263
        %v2280 = vpack.c.b16 %v2266, %v2265
        %v2281 = vpack.c.b16 %v2268, %v2267
        %v2282 = vpack.c.b16 %v2270, %v2269
        %v2296 = vsel %vm470, %v2167, 0
        %v2299 = vsel %vm470, %v2169, 0
        %v2302 = vsel %vm470, %v2171, 0
        %v2305 = vsel %vm470, %v2173, 0
        %v2308 = vsel %vm470, %v2175, 0
        %v2311 = vsel %vm470, %v2177, 0
        %v2314 = vsel %vm470, %v2179, 0
        %v2317 = vsel %vm470, %v2181, 0
        %v2320 = vsel %vm470, %v2183, 0
        %v2323 = vsel %vm470, %v2185, 0
        %v2326 = vsel %vm470, %v2187, 0
        %v2329 = vsel %vm470, %v2189, 0
        %v2332 = vsel %vm470, %v2191, 0
        %v2335 = vsel %vm470, %v2193, 0
        %v2338 = vsel %vm470, %v2195, 0
        %v2341 = vsel %vm470, %v2197, 0
        %2343 = vmatprep.subr.bf16.mxu0 0
        %2344 = vmatpush1.bf16.msra.mxu0 %v2271
        %2345 = vmatprep.subr.bf16.mxu0 0
        %2346 = vmatpush1.bf16.msra.mxu0 %v2272
        %2347 = vmatprep.subr.bf16.mxu0 0
        %2348 = vmatpush1.bf16.msra.mxu0 %v2273
        %2349 = vmatprep.subr.bf16.mxu0 0
        %2350 = vmatpush1.bf16.msra.mxu0 %v2274
        %2351 = vmatprep.subr.bf16.mxu0 0
        %2352 = vmatpush1.bf16.msra.mxu0 %v2275
        %2353 = vmatprep.subr.bf16.mxu0 0
        %2354 = vmatpush1.bf16.msra.mxu0 %v2276
        %2355 = vmatprep.subr.bf16.mxu0 0
        %2356 = vmatpush1.bf16.msra.mxu0 %v2277
        %2357 = vmatprep.subr.bf16.mxu0 0
        %2358 = vmatpush1.bf16.msra.mxu0 %v2278
        %2359 = vmatprep.subr.bf16.mxu0 0
        %2360 = vmatpush1.bf16.msra.mxu0 %v2279
        %2361 = vmatprep.subr.bf16.mxu0 0
        %2362 = vmatpush1.bf16.msra.mxu0 %v2280
        %2363 = vmatprep.subr.bf16.mxu0 0
        %2364 = vmatpush1.bf16.msra.mxu0 %v2281
        %2365 = vmatprep.subr.bf16.mxu0 0
        %2366 = vmatpush1.bf16.msra.mxu0 %v2282
        %2367 = vmatprep.subr.bf16.mxu0 0
        %2368 = vmatpush1.bf16.msra.mxu0 0
        %2369 = vmatprep.subr.bf16.mxu0 0
        %2370 = vmatpush1.bf16.msra.mxu0 0
        %2371 = vmatprep.subr.bf16.mxu0 0
        %2372 = vmatpush1.bf16.msra.mxu0 0
        %2373 = vmatprep.subr.bf16.mxu0 0
        %2374 = vmatpush1.bf16.msra.mxu0 0
        %2375 = vmatprep.mubr.bf16.mxu0 %v2296
        %2376 = vmatmul.mubr.bf16.gmra.mrb[0].mxu0 %v2166
        %v2377 = vpop.f32.mrb[0].mxu0
        %v2378 = vadd.f32 0.0, %v2377
        %v2379 = vpop.f32.mrb[0].mxu0
        %v2380 = vpop.f32.mrb[0].mxu0
        %v2381 = vadd.f32 0.0, %v2380
        %v2382 = vpop.f32.mrb[0].mxu0
        %2383 = vmatprep.mubr.bf16.mxu0 %v2299
        %2384 = vmatmul.mubr.bf16.gmra.mrb[0].mxu0 %v2168
        %v2385 = vpop.f32.mrb[0].mxu0
        %v2386 = vadd.f32 0.0, %v2385
        %v2387 = vpop.f32.mrb[0].mxu0
        %v2388 = vpop.f32.mrb[0].mxu0
        %v2389 = vadd.f32 0.0, %v2388
        %v2390 = vpop.f32.mrb[0].mxu0
        %2391 = vmatprep.mubr.bf16.mxu0 %v2302
        %2392 = vmatmul.mubr.bf16.gmra.mrb[0].mxu0 %v2170
        %v2393 = vpop.f32.mrb[0].mxu0
        %v2394 = vadd.f32 0.0, %v2393
        %v2395 = vpop.f32.mrb[0].mxu0
        %v2396 = vpop.f32.mrb[0].mxu0
        %v2397 = vadd.f32 0.0, %v2396
        %v2398 = vpop.f32.mrb[0].mxu0
        %2399 = vmatprep.mubr.bf16.mxu0 %v2305
        %2400 = vmatmul.mubr.bf16.gmra.mrb[0].mxu0 %v2172
        %v2401 = vpop.f32.mrb[0].mxu0
        %v2402 = vadd.f32 0.0, %v2401
        %v2403 = vpop.f32.mrb[0].mxu0
        %v2404 = vpop.f32.mrb[0].mxu0
        %v2405 = vadd.f32 0.0, %v2404
        %v2406 = vpop.f32.mrb[0].mxu0
        %2407 = vmatprep.mubr.bf16.mxu0 %v2308
        %2408 = vmatmul.mubr.bf16.gmra.mrb[0].mxu0 %v2174
        %v2409 = vpop.f32.mrb[0].mxu0
        %v2410 = vadd.f32 0.0, %v2409
        %v2411 = vpop.f32.mrb[0].mxu0
        %v2412 = vpop.f32.mrb[0].mxu0
        %v2413 = vadd.f32 0.0, %v2412
        %v2414 = vpop.f32.mrb[0].mxu0
        %2415 = vmatprep.mubr.bf16.mxu0 %v2311
        %2416 = vmatmul.mubr.bf16.gmra.mrb[0].mxu0 %v2176
        %v2417 = vpop.f32.mrb[0].mxu0
        %v2418 = vadd.f32 0.0, %v2417
        %v2419 = vpop.f32.mrb[0].mxu0
        %v2420 = vpop.f32.mrb[0].mxu0
        %v2421 = vadd.f32 0.0, %v2420
        %v2422 = vpop.f32.mrb[0].mxu0
        %2423 = vmatprep.mubr.bf16.mxu0 %v2314
        %2424 = vmatmul.mubr.bf16.gmra.mrb[0].mxu0 %v2178
        %v2425 = vpop.f32.mrb[0].mxu0
        %v2426 = vadd.f32 0.0, %v2425
        %v2427 = vpop.f32.mrb[0].mxu0
        %v2428 = vpop.f32.mrb[0].mxu0
        %v2429 = vadd.f32 0.0, %v2428
        %v2430 = vpop.f32.mrb[0].mxu0
        %2431 = vmatprep.mubr.bf16.mxu0 %v2317
        %2432 = vmatmul.mubr.bf16.gmra.mrb[0].mxu0 %v2180
        %v2433 = vpop.f32.mrb[0].mxu0
        %v2434 = vadd.f32 0.0, %v2433
        %v2435 = vpop.f32.mrb[0].mxu0
        %v2436 = vpop.f32.mrb[0].mxu0
        %v2437 = vadd.f32 0.0, %v2436
        %v2438 = vpop.f32.mrb[0].mxu0
        %2439 = vmatprep.mubr.bf16.mxu0 %v2320
        %2440 = vmatmul.mubr.bf16.gmra.mrb[0].mxu0 %v2182
        %v2441 = vpop.f32.mrb[0].mxu0
        %v2442 = vadd.f32 0.0, %v2441
        %v2443 = vpop.f32.mrb[0].mxu0
        %v2444 = vpop.f32.mrb[0].mxu0
        %v2445 = vadd.f32 0.0, %v2444
        %v2446 = vpop.f32.mrb[0].mxu0
        %2447 = vmatprep.mubr.bf16.mxu0 %v2323
        %2448 = vmatmul.mubr.bf16.gmra.mrb[0].mxu0 %v2184
        %v2449 = vpop.f32.mrb[0].mxu0
        %v2450 = vadd.f32 0.0, %v2449
        %v2451 = vpop.f32.mrb[0].mxu0
        %v2452 = vpop.f32.mrb[0].mxu0
        %v2453 = vadd.f32 0.0, %v2452
        %v2454 = vpop.f32.mrb[0].mxu0
        %2455 = vmatprep.mubr.bf16.mxu0 %v2326
        %2456 = vmatmul.mubr.bf16.gmra.mrb[0].mxu0 %v2186
        %v2457 = vpop.f32.mrb[0].mxu0
        %v2458 = vadd.f32 0.0, %v2457
        %v2459 = vpop.f32.mrb[0].mxu0
        %v2460 = vpop.f32.mrb[0].mxu0
        %v2461 = vadd.f32 0.0, %v2460
        %v2462 = vpop.f32.mrb[0].mxu0
        %2463 = vmatprep.mubr.bf16.mxu0 %v2329
        %2464 = vmatmul.mubr.bf16.gmra.mrb[0].mxu0 %v2188
        %v2465 = vpop.f32.mrb[0].mxu0
        %v2466 = vadd.f32 0.0, %v2465
        %v2467 = vpop.f32.mrb[0].mxu0
        %v2468 = vpop.f32.mrb[0].mxu0
        %v2469 = vadd.f32 0.0, %v2468
        %v2470 = vpop.f32.mrb[0].mxu0
        %2471 = vmatprep.mubr.bf16.mxu0 %v2332
        %2472 = vmatmul.mubr.bf16.gmra.mrb[0].mxu0 %v2190
        %v2473 = vpop.f32.mrb[0].mxu0
        %v2474 = vadd.f32 0.0, %v2473
        %v2475 = vpop.f32.mrb[0].mxu0
        %v2476 = vpop.f32.mrb[0].mxu0
        %v2477 = vadd.f32 0.0, %v2476
        %v2478 = vpop.f32.mrb[0].mxu0
        %2479 = vmatprep.mubr.bf16.mxu0 %v2335
        %2480 = vmatmul.mubr.bf16.gmra.mrb[0].mxu0 %v2192
        %v2481 = vpop.f32.mrb[0].mxu0
        %v2482 = vadd.f32 0.0, %v2481
        %v2483 = vpop.f32.mrb[0].mxu0
        %v2484 = vpop.f32.mrb[0].mxu0
        %v2485 = vadd.f32 0.0, %v2484
        %v2486 = vpop.f32.mrb[0].mxu0
        %2487 = vmatprep.mubr.bf16.mxu0 %v2338
        %2488 = vmatmul.mubr.bf16.gmra.mrb[0].mxu0 %v2194
        %v2489 = vpop.f32.mrb[0].mxu0
        %v2490 = vadd.f32 0.0, %v2489
        %v2491 = vpop.f32.mrb[0].mxu0
        %v2492 = vpop.f32.mrb[0].mxu0
        %v2493 = vadd.f32 0.0, %v2492
        %v2494 = vpop.f32.mrb[0].mxu0
        %2495 = vmatprep.mubr.bf16.mxu0 %v2341
        %2496 = vmatmul.mubr.bf16.gmra.mrb[0].mxu0 %v2196
        %v2497 = vpop.f32.mrb[0].mxu0
        %v2498 = vadd.f32 0.0, %v2497
        %v2499 = vpop.f32.mrb[0].mxu0
        %v2500 = vpop.f32.mrb[0].mxu0
        %v2501 = vadd.f32 0.0, %v2500
        %v2502 = vpop.f32.mrb[0].mxu0
        %2503 = vdwg.mxu0
        %v2504 = vadd.f32 %v2040, %v2378
        %v2505 = vadd.f32 %v2043, %v2381
        %v2506 = vadd.f32 %v2048, %v2386
        %v2507 = vadd.f32 %v2051, %v2389
        %v2508 = vadd.f32 %v2056, %v2394
        %v2509 = vadd.f32 %v2059, %v2397
        %v2510 = vadd.f32 %v2064, %v2402
        %v2511 = vadd.f32 %v2067, %v2405
        %v2512 = vadd.f32 %v2072, %v2410
        %v2513 = vadd.f32 %v2075, %v2413
        %v2514 = vadd.f32 %v2080, %v2418
        %v2515 = vadd.f32 %v2083, %v2421
        %v2516 = vadd.f32 %v2088, %v2426
        %v2517 = vadd.f32 %v2091, %v2429
        %v2518 = vadd.f32 %v2096, %v2434
        %v2519 = vadd.f32 %v2099, %v2437
        %v2520 = vadd.f32 %v2104, %v2442
        %v2521 = vadd.f32 %v2107, %v2445
        %v2522 = vadd.f32 %v2112, %v2450
        %v2523 = vadd.f32 %v2115, %v2453
        %v2524 = vadd.f32 %v2120, %v2458
        %v2525 = vadd.f32 %v2123, %v2461
        %v2526 = vadd.f32 %v2128, %v2466
        %v2527 = vadd.f32 %v2131, %v2469
        %v2528 = vadd.f32 %v2136, %v2474
        %v2529 = vadd.f32 %v2139, %v2477
        %v2530 = vadd.f32 %v2144, %v2482
        %v2531 = vadd.f32 %v2147, %v2485
        %v2532 = vadd.f32 %v2152, %v2490
        %v2533 = vadd.f32 %v2155, %v2493
        %v2534 = vadd.f32 %v2160, %v2498
        %v2535 = vadd.f32 %v2163, %v2501
        %v2536 = vld [vmem:[%s2] sm:$0x1]
        %v2538 = vlaneseq
        %v2539 = vshrl.u32 %v2538, 7
        %v2540 = vsub.s32 0, %v2539
        %v2541 = vrot.slane %v2536, %v2540
        %v2543 = vadd.f32 %v2504, %v2541
        %v2544 = vadd.f32 %v2505, %v2541
        %v2545 = vadd.f32 %v2506, %v2541
        %v2546 = vadd.f32 %v2507, %v2541
        %v2547 = vadd.f32 %v2508, %v2541
        %v2548 = vadd.f32 %v2509, %v2541
        %v2549 = vadd.f32 %v2510, %v2541
        %v2550 = vadd.f32 %v2511, %v2541
        %v2551 = vadd.f32 %v2512, %v2541
        %v2552 = vadd.f32 %v2513, %v2541
        %v2553 = vadd.f32 %v2514, %v2541
        %v2554 = vadd.f32 %v2515, %v2541
        %v2555 = vadd.f32 %v2516, %v2541
        %v2556 = vadd.f32 %v2517, %v2541
        %v2557 = vadd.f32 %v2518, %v2541
        %v2558 = vadd.f32 %v2519, %v2541
        %v2559 = vadd.f32 %v2520, %v2541
        %v2560 = vadd.f32 %v2521, %v2541
        %v2561 = vadd.f32 %v2522, %v2541
        %v2562 = vadd.f32 %v2523, %v2541
        %v2563 = vadd.f32 %v2524, %v2541
        %v2564 = vadd.f32 %v2525, %v2541
        %v2565 = vadd.f32 %v2526, %v2541
        %v2566 = vadd.f32 %v2527, %v2541
        %v2567 = vadd.f32 %v2528, %v2541
        %v2568 = vadd.f32 %v2529, %v2541
        %v2569 = vadd.f32 %v2530, %v2541
        %v2570 = vadd.f32 %v2531, %v2541
        %v2571 = vadd.f32 %v2532, %v2541
        %v2572 = vadd.f32 %v2533, %v2541
        %v2573 = vadd.f32 %v2534, %v2541
        %v2574 = vadd.f32 %v2535, %v2541
        %v2575 = vld [vmem:[%s387] sm:$0xff]
        %v2576 = vld [vmem:[%s387 + $0x8] sm:$0xff]
        %v2577 = vld [vmem:[%s387 + $0x10] sm:$0xff]
        %v2578 = vld [vmem:[%s387 + $0x18] sm:$0xff]
        %v2579 = vld [vmem:[%s387 + $0x20] sm:$0xff]
        %v2580 = vld [vmem:[%s387 + $0x28] sm:$0xff]
        %v2581 = vld [vmem:[%s387 + $0x30] sm:$0xff]
        %v2582 = vld [vmem:[%s387 + $0x38] sm:$0xff]
        %v2583 = vld [vmem:[%s387 + $0x40] sm:$0xff]
        %v2584 = vld [vmem:[%s387 + $0x48] sm:$0xff]
        %v2585 = vld [vmem:[%s387 + $0x50] sm:$0xff]
        %v2586 = vld [vmem:[%s387 + $0x58] sm:$0xff]
        %v2587 = vld [vmem:[%s387 + $0x60] sm:$0xff]
        %v2588 = vld [vmem:[%s387 + $0x68] sm:$0xff]
        %v2589 = vld [vmem:[%s387 + $0x70] sm:$0xff]
        %v2590 = vld [vmem:[%s387 + $0x78] sm:$0xff]
        %v2591 = vld [vmem:[%s387 + $0x80] sm:$0xff]
        %v2592 = vld [vmem:[%s387 + $0x88] sm:$0xff]
        %v2593 = vld [vmem:[%s387 + $0x90] sm:$0xff]
        %v2594 = vld [vmem:[%s387 + $0x98] sm:$0xff]
        %v2595 = vld [vmem:[%s387 + $0xa0] sm:$0xff]
        %v2596 = vld [vmem:[%s387 + $0xa8] sm:$0xff]
        %v2597 = vld [vmem:[%s387 + $0xb0] sm:$0xff]
        %v2598 = vld [vmem:[%s387 + $0xb8] sm:$0xff]
        %v2599 = vld [vmem:[%s387 + $0xc0] sm:$0xff]
        %v2600 = vld [vmem:[%s387 + $0xc8] sm:$0xff]
        %v2601 = vld [vmem:[%s387 + $0xd0] sm:$0xff]
        %v2602 = vld [vmem:[%s387 + $0xd8] sm:$0xff]
        %v2603 = vld [vmem:[%s387 + $0xe0] sm:$0xff]
        %v2604 = vld [vmem:[%s387 + $0xe8] sm:$0xff]
        %v2605 = vld [vmem:[%s387 + $0xf0] sm:$0xff]
        %v2606 = vld [vmem:[%s387 + $0xf8] sm:$0xff]
        %v2607 = vmul.f32 %v2575, 0.8
        %v2608 = vmul.f32 %v2576, 0.8
        %v2609 = vmul.f32 %v2577, 0.8
        %v2610 = vmul.f32 %v2578, 0.8
        %v2611 = vmul.f32 %v2579, 0.8
        %v2612 = vmul.f32 %v2580, 0.8
        %v2613 = vmul.f32 %v2581, 0.8
        %v2614 = vmul.f32 %v2582, 0.8
        %v2615 = vmul.f32 %v2583, 0.8
        %v2616 = vmul.f32 %v2584, 0.8
        %v2617 = vmul.f32 %v2585, 0.8
        %v2618 = vmul.f32 %v2586, 0.8
        %v2619 = vmul.f32 %v2587, 0.8
        %v2620 = vmul.f32 %v2588, 0.8
        %v2621 = vmul.f32 %v2589, 0.8
        %v2622 = vmul.f32 %v2590, 0.8
        %v2623 = vmul.f32 %v2591, 0.8
        %v2624 = vmul.f32 %v2592, 0.8
        %v2625 = vmul.f32 %v2593, 0.8
        %v2626 = vmul.f32 %v2594, 0.8
        %v2627 = vmul.f32 %v2595, 0.8
        %v2628 = vmul.f32 %v2596, 0.8
        %v2629 = vmul.f32 %v2597, 0.8
        %v2630 = vmul.f32 %v2598, 0.8
        %v2631 = vmul.f32 %v2599, 0.8
        %v2632 = vmul.f32 %v2600, 0.8
        %v2633 = vmul.f32 %v2601, 0.8
        %v2634 = vmul.f32 %v2602, 0.8
        %v2635 = vmul.f32 %v2603, 0.8
        %v2636 = vmul.f32 %v2604, 0.8
        %v2637 = vmul.f32 %v2605, 0.8
        %v2638 = vmul.f32 %v2606, 0.8
        %v2639 = vadd.f32 %v2607, %v2543
        %v2640 = vadd.f32 %v2608, %v2544
        %v2641 = vadd.f32 %v2609, %v2545
        %v2642 = vadd.f32 %v2610, %v2546
        %v2643 = vadd.f32 %v2611, %v2547
        %v2644 = vadd.f32 %v2612, %v2548
        %v2645 = vadd.f32 %v2613, %v2549
        %v2646 = vadd.f32 %v2614, %v2550
        %v2647 = vadd.f32 %v2615, %v2551
        %v2648 = vadd.f32 %v2616, %v2552
        %v2649 = vadd.f32 %v2617, %v2553
        %v2650 = vadd.f32 %v2618, %v2554
        %v2651 = vadd.f32 %v2619, %v2555
        %v2652 = vadd.f32 %v2620, %v2556
        %v2653 = vadd.f32 %v2621, %v2557
        %v2654 = vadd.f32 %v2622, %v2558
        %v2655 = vadd.f32 %v2623, %v2559
        %v2656 = vadd.f32 %v2624, %v2560
        %v2657 = vadd.f32 %v2625, %v2561
        %v2658 = vadd.f32 %v2626, %v2562
        %v2659 = vadd.f32 %v2627, %v2563
        %v2660 = vadd.f32 %v2628, %v2564
        %v2661 = vadd.f32 %v2629, %v2565
        %v2662 = vadd.f32 %v2630, %v2566
        %v2663 = vadd.f32 %v2631, %v2567
        %v2664 = vadd.f32 %v2632, %v2568
        %v2665 = vadd.f32 %v2633, %v2569
        %v2666 = vadd.f32 %v2634, %v2570
        %v2667 = vadd.f32 %v2635, %v2571
        %v2668 = vadd.f32 %v2636, %v2572
        %v2669 = vadd.f32 %v2637, %v2573
        %v2670 = vadd.f32 %v2638, %v2574
        %2671 = vst.msk [vmem:[%s436] sm:$0xff] %vm470, %v2639
        %2672 = vst.msk [vmem:[%s436 + $0x8] sm:$0xff] %vm470, %v2640
        %2673 = vst.msk [vmem:[%s436 + $0x10] sm:$0xff] %vm470, %v2641
        %2674 = vst.msk [vmem:[%s436 + $0x18] sm:$0xff] %vm470, %v2642
        %2675 = vst.msk [vmem:[%s436 + $0x20] sm:$0xff] %vm470, %v2643
        %2676 = vst.msk [vmem:[%s436 + $0x28] sm:$0xff] %vm470, %v2644
        %2677 = vst.msk [vmem:[%s436 + $0x30] sm:$0xff] %vm470, %v2645
        %2678 = vst.msk [vmem:[%s436 + $0x38] sm:$0xff] %vm470, %v2646
        %2679 = vst.msk [vmem:[%s436 + $0x40] sm:$0xff] %vm470, %v2647
        %2680 = vst.msk [vmem:[%s436 + $0x48] sm:$0xff] %vm470, %v2648
        %2681 = vst.msk [vmem:[%s436 + $0x50] sm:$0xff] %vm470, %v2649
        %2682 = vst.msk [vmem:[%s436 + $0x58] sm:$0xff] %vm470, %v2650
        %2683 = vst.msk [vmem:[%s436 + $0x60] sm:$0xff] %vm470, %v2651
        %2684 = vst.msk [vmem:[%s436 + $0x68] sm:$0xff] %vm470, %v2652
        %2685 = vst.msk [vmem:[%s436 + $0x70] sm:$0xff] %vm470, %v2653
        %2686 = vst.msk [vmem:[%s436 + $0x78] sm:$0xff] %vm470, %v2654
        %2687 = vst.msk [vmem:[%s436 + $0x80] sm:$0xff] %vm470, %v2655
        %2688 = vst.msk [vmem:[%s436 + $0x88] sm:$0xff] %vm470, %v2656
        %2689 = vst.msk [vmem:[%s436 + $0x90] sm:$0xff] %vm470, %v2657
        %2690 = vst.msk [vmem:[%s436 + $0x98] sm:$0xff] %vm470, %v2658
        %2691 = vst.msk [vmem:[%s436 + $0xa0] sm:$0xff] %vm470, %v2659
        %2692 = vst.msk [vmem:[%s436 + $0xa8] sm:$0xff] %vm470, %v2660
        %2693 = vst.msk [vmem:[%s436 + $0xb0] sm:$0xff] %vm470, %v2661
        %2694 = vst.msk [vmem:[%s436 + $0xb8] sm:$0xff] %vm470, %v2662
        %2695 = vst.msk [vmem:[%s436 + $0xc0] sm:$0xff] %vm470, %v2663
        %2696 = vst.msk [vmem:[%s436 + $0xc8] sm:$0xff] %vm470, %v2664
        %2697 = vst.msk [vmem:[%s436 + $0xd0] sm:$0xff] %vm470, %v2665
        %2698 = vst.msk [vmem:[%s436 + $0xd8] sm:$0xff] %vm470, %v2666
        %2699 = vst.msk [vmem:[%s436 + $0xe0] sm:$0xff] %vm470, %v2667
        %2700 = vst.msk [vmem:[%s436 + $0xe8] sm:$0xff] %vm470, %v2668
        %2701 = vst.msk [vmem:[%s436 + $0xf0] sm:$0xff] %vm470, %v2669
        %2702 = vst.msk [vmem:[%s436 + $0xf8] sm:$0xff] %vm470, %v2670
        %vm2703 = vcmp.gt.f32.partialorder %v2639, 0.5
        %vm2704 = vcmp.gt.f32.partialorder %v2640, 0.5
        %vm2705 = vcmp.gt.f32.partialorder %v2641, 0.5
        %vm2706 = vcmp.gt.f32.partialorder %v2642, 0.5
        %vm2707 = vcmp.gt.f32.partialorder %v2643, 0.5
        %vm2708 = vcmp.gt.f32.partialorder %v2644, 0.5
        %vm2709 = vcmp.gt.f32.partialorder %v2645, 0.5
        %vm2710 = vcmp.gt.f32.partialorder %v2646, 0.5
        %vm2711 = vcmp.gt.f32.partialorder %v2647, 0.5
        %vm2712 = vcmp.gt.f32.partialorder %v2648, 0.5
        %vm2713 = vcmp.gt.f32.partialorder %v2649, 0.5
        %vm2714 = vcmp.gt.f32.partialorder %v2650, 0.5
        %vm2715 = vcmp.gt.f32.partialorder %v2651, 0.5
        %vm2716 = vcmp.gt.f32.partialorder %v2652, 0.5
        %vm2717 = vcmp.gt.f32.partialorder %v2653, 0.5
        %vm2718 = vcmp.gt.f32.partialorder %v2654, 0.5
        %vm2719 = vcmp.gt.f32.partialorder %v2655, 0.5
        %vm2720 = vcmp.gt.f32.partialorder %v2656, 0.5
        %vm2721 = vcmp.gt.f32.partialorder %v2657, 0.5
        %vm2722 = vcmp.gt.f32.partialorder %v2658, 0.5
        %vm2723 = vcmp.gt.f32.partialorder %v2659, 0.5
        %vm2724 = vcmp.gt.f32.partialorder %v2660, 0.5
        %vm2725 = vcmp.gt.f32.partialorder %v2661, 0.5
        %vm2726 = vcmp.gt.f32.partialorder %v2662, 0.5
        %vm2727 = vcmp.gt.f32.partialorder %v2663, 0.5
        %vm2728 = vcmp.gt.f32.partialorder %v2664, 0.5
        %vm2729 = vcmp.gt.f32.partialorder %v2665, 0.5
        %vm2730 = vcmp.gt.f32.partialorder %v2666, 0.5
        %vm2731 = vcmp.gt.f32.partialorder %v2667, 0.5
        %vm2732 = vcmp.gt.f32.partialorder %v2668, 0.5
        %vm2733 = vcmp.gt.f32.partialorder %v2669, 0.5
        %vm2734 = vcmp.gt.f32.partialorder %v2670, 0.5
        %v2735 = vsel %vm2703, 1, 0
        %v2736 = vsel %vm2704, 1, 0
        %v2737 = vsel %vm2705, 1, 0
        %v2738 = vsel %vm2706, 1, 0
        %v2739 = vsel %vm2707, 1, 0
        %v2740 = vsel %vm2708, 1, 0
        %v2741 = vsel %vm2709, 1, 0
        %v2742 = vsel %vm2710, 1, 0
        %v2743 = vsel %vm2711, 1, 0
        %v2744 = vsel %vm2712, 1, 0
        %v2745 = vsel %vm2713, 1, 0
        %v2746 = vsel %vm2714, 1, 0
        %v2747 = vsel %vm2715, 1, 0
        %v2748 = vsel %vm2716, 1, 0
        %v2749 = vsel %vm2717, 1, 0
        %v2750 = vsel %vm2718, 1, 0
        %v2751 = vsel %vm2719, 1, 0
        %v2752 = vsel %vm2720, 1, 0
        %v2753 = vsel %vm2721, 1, 0
        %v2754 = vsel %vm2722, 1, 0
        %v2755 = vsel %vm2723, 1, 0
        %v2756 = vsel %vm2724, 1, 0
        %v2757 = vsel %vm2725, 1, 0
        %v2758 = vsel %vm2726, 1, 0
        %v2759 = vsel %vm2727, 1, 0
        %v2760 = vsel %vm2728, 1, 0
        %v2761 = vsel %vm2729, 1, 0
        %v2762 = vsel %vm2730, 1, 0
        %v2763 = vsel %vm2731, 1, 0
        %v2764 = vsel %vm2732, 1, 0
        %v2765 = vsel %vm2733, 1, 0
        %v2766 = vsel %vm2734, 1, 0
        %v2767 = vcvt.s32.f32 %v2735
        %v2768 = vcvt.s32.f32 %v2736
        %v2769 = vcvt.s32.f32 %v2737
        %v2770 = vcvt.s32.f32 %v2738
        %v2771 = vcvt.s32.f32 %v2739
        %v2772 = vcvt.s32.f32 %v2740
        %v2773 = vcvt.s32.f32 %v2741
        %v2774 = vcvt.s32.f32 %v2742
        %v2775 = vcvt.s32.f32 %v2743
        %v2776 = vcvt.s32.f32 %v2744
        %v2777 = vcvt.s32.f32 %v2745
        %v2778 = vcvt.s32.f32 %v2746
        %v2779 = vcvt.s32.f32 %v2747
        %v2780 = vcvt.s32.f32 %v2748
        %v2781 = vcvt.s32.f32 %v2749
        %v2782 = vcvt.s32.f32 %v2750
        %v2783 = vcvt.s32.f32 %v2751
        %v2784 = vcvt.s32.f32 %v2752
        %v2785 = vcvt.s32.f32 %v2753
        %v2786 = vcvt.s32.f32 %v2754
        %v2787 = vcvt.s32.f32 %v2755
        %v2788 = vcvt.s32.f32 %v2756
        %v2789 = vcvt.s32.f32 %v2757
        %v2790 = vcvt.s32.f32 %v2758
        %v2791 = vcvt.s32.f32 %v2759
        %v2792 = vcvt.s32.f32 %v2760
        %v2793 = vcvt.s32.f32 %v2761
        %v2794 = vcvt.s32.f32 %v2762
        %v2795 = vcvt.s32.f32 %v2763
        %v2796 = vcvt.s32.f32 %v2764
        %v2797 = vcvt.s32.f32 %v2765
        %v2798 = vcvt.s32.f32 %v2766
        %2799 = vst.msk [vmem:[%s443] sm:$0xff] %vm470, %v2767
        %2800 = vst.msk [vmem:[%s443 + $0x8] sm:$0xff] %vm470, %v2768
        %2801 = vst.msk [vmem:[%s443 + $0x10] sm:$0xff] %vm470, %v2769
        %2802 = vst.msk [vmem:[%s443 + $0x18] sm:$0xff] %vm470, %v2770
        %2803 = vst.msk [vmem:[%s443 + $0x20] sm:$0xff] %vm470, %v2771
        %2804 = vst.msk [vmem:[%s443 + $0x28] sm:$0xff] %vm470, %v2772
        %2805 = vst.msk [vmem:[%s443 + $0x30] sm:$0xff] %vm470, %v2773
        %2806 = vst.msk [vmem:[%s443 + $0x38] sm:$0xff] %vm470, %v2774
        %2807 = vst.msk [vmem:[%s443 + $0x40] sm:$0xff] %vm470, %v2775
        %2808 = vst.msk [vmem:[%s443 + $0x48] sm:$0xff] %vm470, %v2776
        %2809 = vst.msk [vmem:[%s443 + $0x50] sm:$0xff] %vm470, %v2777
        %2810 = vst.msk [vmem:[%s443 + $0x58] sm:$0xff] %vm470, %v2778
        %2811 = vst.msk [vmem:[%s443 + $0x60] sm:$0xff] %vm470, %v2779
        %2812 = vst.msk [vmem:[%s443 + $0x68] sm:$0xff] %vm470, %v2780
        %2813 = vst.msk [vmem:[%s443 + $0x70] sm:$0xff] %vm470, %v2781
        %2814 = vst.msk [vmem:[%s443 + $0x78] sm:$0xff] %vm470, %v2782
        %2815 = vst.msk [vmem:[%s443 + $0x80] sm:$0xff] %vm470, %v2783
        %2816 = vst.msk [vmem:[%s443 + $0x88] sm:$0xff] %vm470, %v2784
        %2817 = vst.msk [vmem:[%s443 + $0x90] sm:$0xff] %vm470, %v2785
        %2818 = vst.msk [vmem:[%s443 + $0x98] sm:$0xff] %vm470, %v2786
        %2819 = vst.msk [vmem:[%s443 + $0xa0] sm:$0xff] %vm470, %v2787
        %2820 = vst.msk [vmem:[%s443 + $0xa8] sm:$0xff] %vm470, %v2788
        %2821 = vst.msk [vmem:[%s443 + $0xb0] sm:$0xff] %vm470, %v2789
        %2822 = vst.msk [vmem:[%s443 + $0xb8] sm:$0xff] %vm470, %v2790
        %2823 = vst.msk [vmem:[%s443 + $0xc0] sm:$0xff] %vm470, %v2791
        %2824 = vst.msk [vmem:[%s443 + $0xc8] sm:$0xff] %vm470, %v2792
        %2825 = vst.msk [vmem:[%s443 + $0xd0] sm:$0xff] %vm470, %v2793
        %2826 = vst.msk [vmem:[%s443 + $0xd8] sm:$0xff] %vm470, %v2794
        %2827 = vst.msk [vmem:[%s443 + $0xe0] sm:$0xff] %vm470, %v2795
        %2828 = vst.msk [vmem:[%s443 + $0xe8] sm:$0xff] %vm470, %v2796
        %2829 = vst.msk [vmem:[%s443 + $0xf0] sm:$0xff] %vm470, %v2797
        %2830 = vst.msk [vmem:[%s443 + $0xf8] sm:$0xff] %vm470, %v2798
        %v2863 = vrot.slane %v2543, 7
        %v2864 = vrot.slane %v2544, 7
        %v2865 = vsel %vm1019, %v2863, %v2864
        %v2866 = vrot.slane %v2545, 7
        %v2867 = vsel %vm1019, %v2864, %v2866
        %v2868 = vrot.slane %v2546, 7
        %v2869 = vsel %vm1019, %v2866, %v2868
        %v2870 = vrot.slane %v2547, 7
        %v2871 = vsel %vm1019, %v2868, %v2870
        %v2872 = vrot.slane %v2548, 7
        %v2873 = vsel %vm1019, %v2870, %v2872
        %v2874 = vrot.slane %v2549, 7
        %v2875 = vsel %vm1019, %v2872, %v2874
        %v2876 = vrot.slane %v2550, 7
        %v2877 = vsel %vm1019, %v2874, %v2876
        %v2878 = vrot.slane %v2551, 7
        %v2879 = vsel %vm1019, %v2876, %v2878
        %v2880 = vrot.slane %v2552, 7
        %v2881 = vsel %vm1019, %v2878, %v2880
        %v2882 = vrot.slane %v2553, 7
        %v2883 = vsel %vm1019, %v2880, %v2882
        %v2884 = vrot.slane %v2554, 7
        %v2885 = vsel %vm1019, %v2882, %v2884
        %v2886 = vrot.slane %v2555, 7
        %v2887 = vsel %vm1019, %v2884, %v2886
        %v2888 = vrot.slane %v2556, 7
        %v2889 = vsel %vm1019, %v2886, %v2888
        %v2890 = vrot.slane %v2557, 7
        %v2891 = vsel %vm1019, %v2888, %v2890
        %v2892 = vrot.slane %v2558, 7
        %v2893 = vsel %vm1019, %v2890, %v2892
        %v2894 = vrot.slane %v2559, 7
        %v2895 = vsel %vm1019, %v2892, %v2894
        %v2896 = vrot.slane %v2560, 7
        %v2897 = vsel %vm1019, %v2894, %v2896
        %v2898 = vrot.slane %v2561, 7
        %v2899 = vsel %vm1019, %v2896, %v2898
        %v2900 = vrot.slane %v2562, 7
        %v2901 = vsel %vm1019, %v2898, %v2900
        %v2902 = vrot.slane %v2563, 7
        %v2903 = vsel %vm1019, %v2900, %v2902
        %v2904 = vrot.slane %v2564, 7
        %v2905 = vsel %vm1019, %v2902, %v2904
        %v2906 = vrot.slane %v2565, 7
        %v2907 = vsel %vm1019, %v2904, %v2906
        %v2908 = vrot.slane %v2566, 7
        %v2909 = vsel %vm1019, %v2906, %v2908
        %v2910 = vrot.slane %v2567, 7
        %v2911 = vsel %vm1019, %v2908, %v2910
        %v2912 = vrot.slane %v2568, 7
        %v2913 = vsel %vm1019, %v2910, %v2912
        %v2914 = vrot.slane %v2569, 7
        %v2915 = vsel %vm1019, %v2912, %v2914
        %v2916 = vrot.slane %v2570, 7
        %v2917 = vsel %vm1019, %v2914, %v2916
        %v2918 = vrot.slane %v2571, 7
        %v2919 = vsel %vm1019, %v2916, %v2918
        %v2920 = vrot.slane %v2572, 7
        %v2921 = vsel %vm1019, %v2918, %v2920
        %v2922 = vrot.slane %v2573, 7
        %v2923 = vsel %vm1019, %v2920, %v2922
        %v2924 = vrot.slane %v2574, 7
        %v2925 = vsel %vm1019, %v2922, %v2924
        %v2958 = vsel %vm1019, 0.0, %v2863
        %v2959 = vsel %vm1148, 0.0, %v2958
        %v2960 = vsel %vm1149, 0.0, %v2865
        %v2961 = vsel %vm1150, 0.0, %v2867
        %v2962 = vsel %vm1151, 0.0, %v2869
        %v2963 = vsel %vm1152, 0.0, %v2871
        %v2964 = vsel %vm1153, 0.0, %v2873
        %v2965 = vsel %vm1154, 0.0, %v2875
        %v2966 = vsel %vm1155, 0.0, %v2877
        %v2967 = vsel %vm1156, 0.0, %v2879
        %v2968 = vsel %vm1157, 0.0, %v2881
        %v2969 = vsel %vm1158, 0.0, %v2883
        %v2970 = vsel %vm1159, 0.0, %v2885
        %v2971 = vsel %vm1160, 0.0, %v2887
        %v2972 = vsel %vm1161, 0.0, %v2889
        %v2973 = vsel %vm1162, 0.0, %v2891
        %v2974 = vsel %vm1163, 0.0, %v2893
        %v2975 = vsel %vm1164, 0.0, %v2895
        %v2976 = vsel %vm1165, 0.0, %v2897
        %v2977 = vsel %vm1166, 0.0, %v2899
        %v2978 = vsel %vm1167, 0.0, %v2901
        %v2979 = vsel %vm1168, 0.0, %v2903
        %v2980 = vsel %vm1169, 0.0, %v2905
        %v2981 = vsel %vm1170, 0.0, %v2907
        %v2982 = vsel %vm1171, 0.0, %v2909
        %v2983 = vsel %vm1172, 0.0, %v2911
        %v2984 = vsel %vm1173, 0.0, %v2913
        %v2985 = vsel %vm1174, 0.0, %v2915
        %v2986 = vsel %vm1175, 0.0, %v2917
        %v2987 = vsel %vm1176, 0.0, %v2919
        %v2988 = vsel %vm1177, 0.0, %v2921
        %v2989 = vsel %vm1178, 0.0, %v2923
        %v2990 = vsel %vm1179, 0.0, %v2925
        %v2991 = vrot.slane %v2543, 1
        %v2992 = vrot.slane %v2544, 1
        %v2993 = vsel %vm1212, %v2991, %v2992
        %v2994 = vrot.slane %v2545, 1
        %v2995 = vsel %vm1212, %v2992, %v2994
        %v2996 = vrot.slane %v2546, 1
        %v2997 = vsel %vm1212, %v2994, %v2996
        %v2998 = vrot.slane %v2547, 1
        %v2999 = vsel %vm1212, %v2996, %v2998
        %v3000 = vrot.slane %v2548, 1
        %v3001 = vsel %vm1212, %v2998, %v3000
        %v3002 = vrot.slane %v2549, 1
        %v3003 = vsel %vm1212, %v3000, %v3002
        %v3004 = vrot.slane %v2550, 1
        %v3005 = vsel %vm1212, %v3002, %v3004
        %v3006 = vrot.slane %v2551, 1
        %v3007 = vsel %vm1212, %v3004, %v3006
        %v3008 = vrot.slane %v2552, 1
        %v3009 = vsel %vm1212, %v3006, %v3008
        %v3010 = vrot.slane %v2553, 1
        %v3011 = vsel %vm1212, %v3008, %v3010
        %v3012 = vrot.slane %v2554, 1
        %v3013 = vsel %vm1212, %v3010, %v3012
        %v3014 = vrot.slane %v2555, 1
        %v3015 = vsel %vm1212, %v3012, %v3014
        %v3016 = vrot.slane %v2556, 1
        %v3017 = vsel %vm1212, %v3014, %v3016
        %v3018 = vrot.slane %v2557, 1
        %v3019 = vsel %vm1212, %v3016, %v3018
        %v3020 = vrot.slane %v2558, 1
        %v3021 = vsel %vm1212, %v3018, %v3020
        %v3022 = vrot.slane %v2559, 1
        %v3023 = vsel %vm1212, %v3020, %v3022
        %v3024 = vrot.slane %v2560, 1
        %v3025 = vsel %vm1212, %v3022, %v3024
        %v3026 = vrot.slane %v2561, 1
        %v3027 = vsel %vm1212, %v3024, %v3026
        %v3028 = vrot.slane %v2562, 1
        %v3029 = vsel %vm1212, %v3026, %v3028
        %v3030 = vrot.slane %v2563, 1
        %v3031 = vsel %vm1212, %v3028, %v3030
        %v3032 = vrot.slane %v2564, 1
        %v3033 = vsel %vm1212, %v3030, %v3032
        %v3034 = vrot.slane %v2565, 1
        %v3035 = vsel %vm1212, %v3032, %v3034
        %v3036 = vrot.slane %v2566, 1
        %v3037 = vsel %vm1212, %v3034, %v3036
        %v3038 = vrot.slane %v2567, 1
        %v3039 = vsel %vm1212, %v3036, %v3038
        %v3040 = vrot.slane %v2568, 1
        %v3041 = vsel %vm1212, %v3038, %v3040
        %v3042 = vrot.slane %v2569, 1
        %v3043 = vsel %vm1212, %v3040, %v3042
        %v3044 = vrot.slane %v2570, 1
        %v3045 = vsel %vm1212, %v3042, %v3044
        %v3046 = vrot.slane %v2571, 1
        %v3047 = vsel %vm1212, %v3044, %v3046
        %v3048 = vrot.slane %v2572, 1
        %v3049 = vsel %vm1212, %v3046, %v3048
        %v3050 = vrot.slane %v2573, 1
        %v3051 = vsel %vm1212, %v3048, %v3050
        %v3052 = vrot.slane %v2574, 1
        %v3053 = vsel %vm1212, %v3050, %v3052
        %v3086 = vsel %vm1212, %v3052, 0.0
        %v3087 = vsel %vm1341, 0.0, %v2993
        %v3088 = vsel %vm1342, 0.0, %v2995
        %v3089 = vsel %vm1343, 0.0, %v2997
        %v3090 = vsel %vm1344, 0.0, %v2999
        %v3091 = vsel %vm1345, 0.0, %v3001
        %v3092 = vsel %vm1346, 0.0, %v3003
        %v3093 = vsel %vm1347, 0.0, %v3005
        %v3094 = vsel %vm1348, 0.0, %v3007
        %v3095 = vsel %vm1349, 0.0, %v3009
        %v3096 = vsel %vm1350, 0.0, %v3011
        %v3097 = vsel %vm1351, 0.0, %v3013
        %v3098 = vsel %vm1352, 0.0, %v3015
        %v3099 = vsel %vm1353, 0.0, %v3017
        %v3100 = vsel %vm1354, 0.0, %v3019
        %v3101 = vsel %vm1355, 0.0, %v3021
        %v3102 = vsel %vm1356, 0.0, %v3023
        %v3103 = vsel %vm1357, 0.0, %v3025
        %v3104 = vsel %vm1358, 0.0, %v3027
        %v3105 = vsel %vm1359, 0.0, %v3029
        %v3106 = vsel %vm1360, 0.0, %v3031
        %v3107 = vsel %vm1361, 0.0, %v3033
        %v3108 = vsel %vm1362, 0.0, %v3035
        %v3109 = vsel %vm1363, 0.0, %v3037
        %v3110 = vsel %vm1364, 0.0, %v3039
        %v3111 = vsel %vm1365, 0.0, %v3041
        %v3112 = vsel %vm1366, 0.0, %v3043
        %v3113 = vsel %vm1367, 0.0, %v3045
        %v3114 = vsel %vm1368, 0.0, %v3047
        %v3115 = vsel %vm1369, 0.0, %v3049
        %v3116 = vsel %vm1370, 0.0, %v3051
        %v3117 = vsel %vm1371, 0.0, %v3053
        %v3118 = vsel %vm1372, 0.0, %v3086
        %v3119 = vpack.c.bf16 %v2960, %v2959
        %v3120 = vpack.c.bf16 %v2962, %v2961
        %v3121 = vpack.c.bf16 %v2964, %v2963
        %v3122 = vpack.c.bf16 %v2966, %v2965
        %v3123 = vpack.c.bf16 %v2968, %v2967
        %v3124 = vpack.c.bf16 %v2970, %v2969
        %v3125 = vpack.c.bf16 %v2972, %v2971
        %v3126 = vpack.c.bf16 %v2974, %v2973
        %v3127 = vpack.c.bf16 %v2976, %v2975
        %v3128 = vpack.c.bf16 %v2978, %v2977
        %v3129 = vpack.c.bf16 %v2980, %v2979
        %v3130 = vpack.c.bf16 %v2982, %v2981
        %v3131 = vpack.c.bf16 %v2984, %v2983
        %v3132 = vpack.c.bf16 %v2986, %v2985
        %v3133 = vpack.c.bf16 %v2988, %v2987
        %v3134 = vpack.c.bf16 %v2990, %v2989
        %3135 = vst.msk [vmem:[#allocation2 + $0x10] sm:$0xff] %vm470, %v3119
        %3136 = vst.msk [vmem:[#allocation2 + $0x20] sm:$0xff] %vm470, %v3120
        %3137 = vst.msk [vmem:[#allocation2 + $0x30] sm:$0xff] %vm470, %v3121
        %3138 = vst.msk [vmem:[#allocation2 + $0x40] sm:$0xff] %vm470, %v3122
        %3139 = vst.msk [vmem:[#allocation2 + $0x50] sm:$0xff] %vm470, %v3123
        %3140 = vst.msk [vmem:[#allocation2 + $0x60] sm:$0xff] %vm470, %v3124
        %3141 = vst.msk [vmem:[#allocation2 + $0x70] sm:$0xff] %vm470, %v3125
        %3142 = vst.msk [vmem:[#allocation2 + $0x80] sm:$0xff] %vm470, %v3126
        %3143 = vst.msk [vmem:[#allocation2 + $0x90] sm:$0xff] %vm470, %v3127
        %3144 = vst.msk [vmem:[#allocation2 + $0xa0] sm:$0xff] %vm470, %v3128
        %3145 = vst.msk [vmem:[#allocation2 + $0xb0] sm:$0xff] %vm470, %v3129
        %3146 = vst.msk [vmem:[#allocation2 + $0xc0] sm:$0xff] %vm470, %v3130
        %3147 = vst.msk [vmem:[#allocation2 + $0xd0] sm:$0xff] %vm470, %v3131
        %3148 = vst.msk [vmem:[#allocation2 + $0xe0] sm:$0xff] %vm470, %v3132
        %3149 = vst.msk [vmem:[#allocation2 + $0xf0] sm:$0xff] %vm470, %v3133
        %3150 = vst.msk [vmem:[#allocation2 + $0x100] sm:$0xff] %vm470, %v3134
        %v3151 = vpack.c.bf16 %v2544, %v2543
        %v3152 = vpack.c.bf16 %v2546, %v2545
        %v3153 = vpack.c.bf16 %v2548, %v2547
        %v3154 = vpack.c.bf16 %v2550, %v2549
        %v3155 = vpack.c.bf16 %v2552, %v2551
        %v3156 = vpack.c.bf16 %v2554, %v2553
        %v3157 = vpack.c.bf16 %v2556, %v2555
        %v3158 = vpack.c.bf16 %v2558, %v2557
        %v3159 = vpack.c.bf16 %v2560, %v2559
        %v3160 = vpack.c.bf16 %v2562, %v2561
        %v3161 = vpack.c.bf16 %v2564, %v2563
        %v3162 = vpack.c.bf16 %v2566, %v2565
        %v3163 = vpack.c.bf16 %v2568, %v2567
        %v3164 = vpack.c.bf16 %v2570, %v2569
        %v3165 = vpack.c.bf16 %v2572, %v2571
        %v3166 = vpack.c.bf16 %v2574, %v2573
        %3183 = vrot.lane.b32.xlu0 %v3151, 64
        %v3184 = vpop.permute.xlu0 %3183
        %3185 = vrot.lane.b32.xlu0 %v3152, 64
        %v3186 = vpop.permute.xlu0 %3185
        %3187 = vrot.lane.b32.xlu0 %v3153, 64
        %v3188 = vpop.permute.xlu0 %3187
        %3189 = vrot.lane.b32.xlu0 %v3154, 64
        %v3190 = vpop.permute.xlu0 %3189
        %3191 = vrot.lane.b32.xlu0 %v3155, 64
        %v3192 = vpop.permute.xlu0 %3191
        %3193 = vrot.lane.b32.xlu0 %v3156, 64
        %v3194 = vpop.permute.xlu0 %3193
        %3195 = vrot.lane.b32.xlu0 %v3157, 64
        %v3196 = vpop.permute.xlu0 %3195
        %3197 = vrot.lane.b32.xlu0 %v3158, 64
        %v3198 = vpop.permute.xlu0 %3197
        %3199 = vrot.lane.b32.xlu0 %v3159, 64
        %v3200 = vpop.permute.xlu0 %3199
        %3201 = vrot.lane.b32.xlu0 %v3160, 64
        %v3202 = vpop.permute.xlu0 %3201
        %3203 = vrot.lane.b32.xlu0 %v3161, 64
        %v3204 = vpop.permute.xlu0 %3203
        %3205 = vrot.lane.b32.xlu0 %v3162, 64
        %v3206 = vpop.permute.xlu0 %3205
        %3207 = vrot.lane.b32.xlu0 %v3163, 64
        %v3208 = vpop.permute.xlu0 %3207
        %3209 = vrot.lane.b32.xlu0 %v3164, 64
        %v3210 = vpop.permute.xlu0 %3209
        %3211 = vrot.lane.b32.xlu0 %v3165, 64
        %v3212 = vpop.permute.xlu0 %3211
        %3213 = vrot.lane.b32.xlu0 %v3166, 64
        %v3214 = vpop.permute.xlu0 %3213
        %3231 = vst.msk [vmem:[#allocation2 + $0x10] sm:$0xff] %vm1517, %v3184
        %3232 = vst.msk [vmem:[#allocation2 + $0x20] sm:$0xff] %vm1517, %v3186
        %3233 = vst.msk [vmem:[#allocation2 + $0x30] sm:$0xff] %vm1517, %v3188
        %3234 = vst.msk [vmem:[#allocation2 + $0x40] sm:$0xff] %vm1517, %v3190
        %3235 = vst.msk [vmem:[#allocation2 + $0x50] sm:$0xff] %vm1517, %v3192
        %3236 = vst.msk [vmem:[#allocation2 + $0x60] sm:$0xff] %vm1517, %v3194
        %3237 = vst.msk [vmem:[#allocation2 + $0x70] sm:$0xff] %vm1517, %v3196
        %3238 = vst.msk [vmem:[#allocation2 + $0x80] sm:$0xff] %vm1517, %v3198
        %3239 = vst.msk [vmem:[#allocation2 + $0x90] sm:$0xff] %vm1517, %v3200
        %3240 = vst.msk [vmem:[#allocation2 + $0xa0] sm:$0xff] %vm1517, %v3202
        %3241 = vst.msk [vmem:[#allocation2 + $0xb0] sm:$0xff] %vm1517, %v3204
        %3242 = vst.msk [vmem:[#allocation2 + $0xc0] sm:$0xff] %vm1517, %v3206
        %3243 = vst.msk [vmem:[#allocation2 + $0xd0] sm:$0xff] %vm1517, %v3208
        %3244 = vst.msk [vmem:[#allocation2 + $0xe0] sm:$0xff] %vm1517, %v3210
        %3245 = vst.msk [vmem:[#allocation2 + $0xf0] sm:$0xff] %vm1517, %v3212
        %3246 = vst.msk [vmem:[#allocation2 + $0x100] sm:$0xff] %vm1517, %v3214
        %v3247 = vpack.c.bf16 %v3088, %v3087
        %v3248 = vpack.c.bf16 %v3090, %v3089
        %v3249 = vpack.c.bf16 %v3092, %v3091
        %v3250 = vpack.c.bf16 %v3094, %v3093
        %v3251 = vpack.c.bf16 %v3096, %v3095
        %v3252 = vpack.c.bf16 %v3098, %v3097
        %v3253 = vpack.c.bf16 %v3100, %v3099
        %v3254 = vpack.c.bf16 %v3102, %v3101
        %v3255 = vpack.c.bf16 %v3104, %v3103
        %v3256 = vpack.c.bf16 %v3106, %v3105
        %v3257 = vpack.c.bf16 %v3108, %v3107
        %v3258 = vpack.c.bf16 %v3110, %v3109
        %v3259 = vpack.c.bf16 %v3112, %v3111
        %v3260 = vpack.c.bf16 %v3114, %v3113
        %v3261 = vpack.c.bf16 %v3116, %v3115
        %v3262 = vpack.c.bf16 %v3118, %v3117
        %3263 = vst.msk [vmem:[#allocation2 + $0x18] sm:$0xff] %vm470, %v3247
        %3264 = vst.msk [vmem:[#allocation2 + $0x28] sm:$0xff] %vm470, %v3248
        %3265 = vst.msk [vmem:[#allocation2 + $0x38] sm:$0xff] %vm470, %v3249
        %3266 = vst.msk [vmem:[#allocation2 + $0x48] sm:$0xff] %vm470, %v3250
        %3267 = vst.msk [vmem:[#allocation2 + $0x58] sm:$0xff] %vm470, %v3251
        %3268 = vst.msk [vmem:[#allocation2 + $0x68] sm:$0xff] %vm470, %v3252
        %3269 = vst.msk [vmem:[#allocation2 + $0x78] sm:$0xff] %vm470, %v3253
        %3270 = vst.msk [vmem:[#allocation2 + $0x88] sm:$0xff] %vm470, %v3254
        %3271 = vst.msk [vmem:[#allocation2 + $0x98] sm:$0xff] %vm470, %v3255
        %3272 = vst.msk [vmem:[#allocation2 + $0xa8] sm:$0xff] %vm470, %v3256
        %3273 = vst.msk [vmem:[#allocation2 + $0xb8] sm:$0xff] %vm470, %v3257
        %3274 = vst.msk [vmem:[#allocation2 + $0xc8] sm:$0xff] %vm470, %v3258
        %3275 = vst.msk [vmem:[#allocation2 + $0xd8] sm:$0xff] %vm470, %v3259
        %3276 = vst.msk [vmem:[#allocation2 + $0xe8] sm:$0xff] %vm470, %v3260
        %3277 = vst.msk [vmem:[#allocation2 + $0xf8] sm:$0xff] %vm470, %v3261
        %3278 = vst.msk [vmem:[#allocation2 + $0x108] sm:$0xff] %vm470, %v3262
        %v3279 = vld [vmem:[#allocation2] sm:$0xff]
        %v3280 = vld [vmem:[#allocation2 + $0x8] sm:$0xff]
        %v3281 = vld [vmem:[#allocation2 + $0x10] sm:$0xff]
        %v3282 = vld [vmem:[#allocation2 + $0x18] sm:$0xff]
        %v3283 = vld [vmem:[#allocation2 + $0x20] sm:$0xff]
        %v3284 = vld [vmem:[#allocation2 + $0x28] sm:$0xff]
        %v3285 = vld [vmem:[#allocation2 + $0x30] sm:$0xff]
        %v3286 = vld [vmem:[#allocation2 + $0x38] sm:$0xff]
        %v3287 = vld [vmem:[#allocation2 + $0x40] sm:$0xff]
        %v3288 = vld [vmem:[#allocation2 + $0x48] sm:$0xff]
        %v3289 = vld [vmem:[#allocation2 + $0x50] sm:$0xff]
        %v3290 = vld [vmem:[#allocation2 + $0x58] sm:$0xff]
        %v3291 = vld [vmem:[#allocation2 + $0x60] sm:$0xff]
        %v3292 = vld [vmem:[#allocation2 + $0x68] sm:$0xff]
        %v3293 = vld [vmem:[#allocation2 + $0x70] sm:$0xff]
        %v3294 = vld [vmem:[#allocation2 + $0x78] sm:$0xff]
        %v3295 = vld [vmem:[#allocation2 + $0x80] sm:$0xff]
        %v3296 = vld [vmem:[#allocation2 + $0x88] sm:$0xff]
        %v3297 = vld [vmem:[#allocation2 + $0x90] sm:$0xff]
        %v3298 = vld [vmem:[#allocation2 + $0x98] sm:$0xff]
        %v3299 = vld [vmem:[#allocation2 + $0xa0] sm:$0xff]
        %v3300 = vld [vmem:[#allocation2 + $0xa8] sm:$0xff]
        %v3301 = vld [vmem:[#allocation2 + $0xb0] sm:$0xff]
        %v3302 = vld [vmem:[#allocation2 + $0xb8] sm:$0xff]
        %v3303 = vld [vmem:[#allocation2 + $0xc0] sm:$0xff]
        %v3304 = vld [vmem:[#allocation2 + $0xc8] sm:$0xff]
        %v3305 = vld [vmem:[#allocation2 + $0xd0] sm:$0xff]
        %v3306 = vld [vmem:[#allocation2 + $0xd8] sm:$0xff]
        %v3307 = vld [vmem:[#allocation2 + $0xe0] sm:$0xff]
        %v3308 = vld [vmem:[#allocation2 + $0xe8] sm:$0xff]
        %v3309 = vld [vmem:[#allocation2 + $0xf0] sm:$0xff]
        %v3310 = vld [vmem:[#allocation2 + $0xf8] sm:$0xff]
        %v3311 = vld [vmem:[%s3] sm:$0xf]
        %v3312 = vld [vmem:[%s3 + $0x4] sm:$0xf]
        %v3313 = vld [vmem:[%s3 + $0x8] sm:$0xf]
        %v3314 = vld [vmem:[%s3 + $0xc] sm:$0xf]
        %v3315 = vld [vmem:[%s3 + $0x10] sm:$0xf]
        %v3316 = vld [vmem:[%s3 + $0x14] sm:$0xf]
        %v3317 = vld [vmem:[%s3 + $0x18] sm:$0xf]
        %v3318 = vld [vmem:[%s3 + $0x1c] sm:$0xf]
        %v3319 = vld [vmem:[%s3 + $0x20] sm:$0xf]
        %v3320 = vld [vmem:[%s3 + $0x24] sm:$0xf]
        %v3321 = vld [vmem:[%s3 + $0x28] sm:$0xf]
        %v3322 = vld [vmem:[%s3 + $0x2c] sm:$0xf]
        %v3323 = vld [vmem:[%s3 + $0x30] sm:$0xf]
        %v3324 = vld [vmem:[%s3 + $0x34] sm:$0xf]
        %v3325 = vld [vmem:[%s3 + $0x38] sm:$0xf]
        %v3326 = vld [vmem:[%s3 + $0x3c] sm:$0xf]
        %v3327 = vld [vmem:[%s3 + $0x40] sm:$0xf]
        %v3328 = vld [vmem:[%s3 + $0x44] sm:$0xf]
        %v3329 = vld [vmem:[%s3 + $0x48] sm:$0xf]
        %v3330 = vld [vmem:[%s3 + $0x4c] sm:$0xf]
        %v3331 = vld [vmem:[%s3 + $0x50] sm:$0xf]
        %v3332 = vld [vmem:[%s3 + $0x54] sm:$0xf]
        %v3333 = vld [vmem:[%s3 + $0x58] sm:$0xf]
        %v3334 = vld [vmem:[%s3 + $0x5c] sm:$0xf]
        %v3335 = vld [vmem:[#allocation2 + $0x100] sm:$0xff]
        %v3336 = vld [vmem:[#allocation2 + $0x108] sm:$0xff]
        %s3337 = scalar_lea.vmem %s3, 96
        %v3338 = vld [vmem:[%s3337] sm:$0xf]
        %v3339 = vld [vmem:[%s3337 + $0x4] sm:$0xf]
        %v3340 = vld [vmem:[%s3337 + $0x8] sm:$0xf]
        %v3341 = vld [vmem:[%s3337 + $0xc] sm:$0xf]
        %v3342 = vld [vmem:[%s3337 + $0x10] sm:$0xf]
        %v3343 = vld [vmem:[%s3337 + $0x14] sm:$0xf]
        %v3344 = vld [vmem:[%s3337 + $0x18] sm:$0xf]
        %v3345 = vld [vmem:[%s3337 + $0x1c] sm:$0xf]
        %v3346 = vld [vmem:[%s3337 + $0x20] sm:$0xf]
        %v3347 = vld [vmem:[%s3337 + $0x24] sm:$0xf]
        %v3348 = vld [vmem:[%s3337 + $0x28] sm:$0xf]
        %v3349 = vld [vmem:[%s3337 + $0x2c] sm:$0xf]
        %v3350 = vld [vmem:[%s3337 + $0x30] sm:$0xf]
        %v3351 = vld [vmem:[%s3337 + $0x34] sm:$0xf]
        %v3352 = vld [vmem:[%s3337 + $0x38] sm:$0xf]
        %v3353 = vld [vmem:[%s3337 + $0x3c] sm:$0xf]
        %v3354 = vld [vmem:[%s3337 + $0x40] sm:$0xf]
        %v3355 = vld [vmem:[%s3337 + $0x44] sm:$0xf]
        %v3356 = vld [vmem:[%s3337 + $0x48] sm:$0xf]
        %v3357 = vld [vmem:[%s3337 + $0x4c] sm:$0xf]
        %v3358 = vld [vmem:[%s3337 + $0x50] sm:$0xf]
        %v3359 = vld [vmem:[%s3337 + $0x54] sm:$0xf]
        %v3360 = vld [vmem:[%s3337 + $0x58] sm:$0xf]
        %v3361 = vld [vmem:[%s3337 + $0x5c] sm:$0xf]
        %v3386 = vunpack.c.l.b16 %v3338
        %v3387 = vunpack.c.l.b16 %v3339
        %v3388 = vunpack.c.l.b16 %v3340
        %v3389 = vunpack.c.l.b16 %v3341
        %v3390 = vunpack.c.l.b16 %v3342
        %v3391 = vunpack.c.l.b16 %v3343
        %v3392 = vunpack.c.l.b16 %v3344
        %v3393 = vunpack.c.l.b16 %v3345
        %v3394 = vunpack.c.l.b16 %v3346
        %v3395 = vunpack.c.l.b16 %v3347
        %v3396 = vunpack.c.l.b16 %v3348
        %v3397 = vunpack.c.l.b16 %v3349
        %v3398 = vunpack.c.l.b16 %v3350
        %v3399 = vunpack.c.l.b16 %v3351
        %v3400 = vunpack.c.l.b16 %v3352
        %v3401 = vunpack.c.l.b16 %v3353
        %v3402 = vunpack.c.l.b16 %v3354
        %v3403 = vunpack.c.l.b16 %v3355
        %v3404 = vunpack.c.l.b16 %v3356
        %v3405 = vunpack.c.l.b16 %v3357
        %v3406 = vunpack.c.l.b16 %v3358
        %v3407 = vunpack.c.l.b16 %v3359
        %v3408 = vunpack.c.l.b16 %v3360
        %v3409 = vunpack.c.l.b16 %v3361
        %v3410 = vpack.c.b16 %v3387, %v3386
        %v3411 = vpack.c.b16 %v3389, %v3388
        %v3412 = vpack.c.b16 %v3391, %v3390
        %v3413 = vpack.c.b16 %v3393, %v3392
        %v3414 = vpack.c.b16 %v3395, %v3394
        %v3415 = vpack.c.b16 %v3397, %v3396
        %v3416 = vpack.c.b16 %v3399, %v3398
        %v3417 = vpack.c.b16 %v3401, %v3400
        %v3418 = vpack.c.b16 %v3403, %v3402
        %v3419 = vpack.c.b16 %v3405, %v3404
        %v3420 = vpack.c.b16 %v3407, %v3406
        %v3421 = vpack.c.b16 %v3409, %v3408
        %v3435 = vsel %vm470, %v3282, 0
        %v3438 = vsel %vm470, %v3284, 0
        %v3441 = vsel %vm470, %v3286, 0
        %v3444 = vsel %vm470, %v3288, 0
        %v3447 = vsel %vm470, %v3290, 0
        %v3450 = vsel %vm470, %v3292, 0
        %v3453 = vsel %vm470, %v3294, 0
        %v3456 = vsel %vm470, %v3296, 0
        %v3459 = vsel %vm470, %v3298, 0
        %v3462 = vsel %vm470, %v3300, 0
        %v3465 = vsel %vm470, %v3302, 0
        %v3468 = vsel %vm470, %v3304, 0
        %v3471 = vsel %vm470, %v3306, 0
        %v3474 = vsel %vm470, %v3308, 0
        %v3477 = vsel %vm470, %v3310, 0
        %v3480 = vsel %vm470, %v3336, 0
        %3482 = vmatprep.subr.bf16.mxu0 0
        %3483 = vmatpush1.bf16.msra.mxu0 %v3410
        %3484 = vmatprep.subr.bf16.mxu0 0
        %3485 = vmatpush1.bf16.msra.mxu0 %v3411
        %3486 = vmatprep.subr.bf16.mxu0 0
        %3487 = vmatpush1.bf16.msra.mxu0 %v3412
        %3488 = vmatprep.subr.bf16.mxu0 0
        %3489 = vmatpush1.bf16.msra.mxu0 %v3413
        %3490 = vmatprep.subr.bf16.mxu0 0
        %3491 = vmatpush1.bf16.msra.mxu0 %v3414
        %3492 = vmatprep.subr.bf16.mxu0 0
        %3493 = vmatpush1.bf16.msra.mxu0 %v3415
        %3494 = vmatprep.subr.bf16.mxu0 0
        %3495 = vmatpush1.bf16.msra.mxu0 %v3416
        %3496 = vmatprep.subr.bf16.mxu0 0
        %3497 = vmatpush1.bf16.msra.mxu0 %v3417
        %3498 = vmatprep.subr.bf16.mxu0 0
        %3499 = vmatpush1.bf16.msra.mxu0 %v3418
        %3500 = vmatprep.subr.bf16.mxu0 0
        %3501 = vmatpush1.bf16.msra.mxu0 %v3419
        %3502 = vmatprep.subr.bf16.mxu0 0
        %3503 = vmatpush1.bf16.msra.mxu0 %v3420
        %3504 = vmatprep.subr.bf16.mxu0 0
        %3505 = vmatpush1.bf16.msra.mxu0 %v3421
        %3506 = vmatprep.subr.bf16.mxu0 0
        %3507 = vmatpush1.bf16.msra.mxu0 0
        %3508 = vmatprep.subr.bf16.mxu0 0
        %3509 = vmatpush1.bf16.msra.mxu0 0
        %3510 = vmatprep.subr.bf16.mxu0 0
        %3511 = vmatpush1.bf16.msra.mxu0 0
        %3512 = vmatprep.subr.bf16.mxu0 0
        %3513 = vmatpush1.bf16.msra.mxu0 0
        %3514 = vmatprep.mubr.bf16.mxu0 %v3435
        %3515 = vmatmul.mubr.bf16.gmra.mrb[0].mxu0 %v3281
        %v3516 = vpop.f32.mrb[0].mxu0
        %v3517 = vadd.f32 0.0, %v3516
        %v3518 = vpop.f32.mrb[0].mxu0
        %v3519 = vpop.f32.mrb[0].mxu0
        %v3520 = vadd.f32 0.0, %v3519
        %v3521 = vpop.f32.mrb[0].mxu0
        %3522 = vmatprep.mubr.bf16.mxu0 %v3438
        %3523 = vmatmul.mubr.bf16.gmra.mrb[0].mxu0 %v3283
        %v3524 = vpop.f32.mrb[0].mxu0
        %v3525 = vadd.f32 0.0, %v3524
        %v3526 = vpop.f32.mrb[0].mxu0
        %v3527 = vpop.f32.mrb[0].mxu0
        %v3528 = vadd.f32 0.0, %v3527
        %v3529 = vpop.f32.mrb[0].mxu0
        %3530 = vmatprep.mubr.bf16.mxu0 %v3441
        %3531 = vmatmul.mubr.bf16.gmra.mrb[0].mxu0 %v3285
        %v3532 = vpop.f32.mrb[0].mxu0
        %v3533 = vadd.f32 0.0, %v3532
        %v3534 = vpop.f32.mrb[0].mxu0
        %v3535 = vpop.f32.mrb[0].mxu0
        %v3536 = vadd.f32 0.0, %v3535
        %v3537 = vpop.f32.mrb[0].mxu0
        %3538 = vmatprep.mubr.bf16.mxu0 %v3444
        %3539 = vmatmul.mubr.bf16.gmra.mrb[0].mxu0 %v3287
        %v3540 = vpop.f32.mrb[0].mxu0
        %v3541 = vadd.f32 0.0, %v3540
        %v3542 = vpop.f32.mrb[0].mxu0
        %v3543 = vpop.f32.mrb[0].mxu0
        %v3544 = vadd.f32 0.0, %v3543
        %v3545 = vpop.f32.mrb[0].mxu0
        %3546 = vmatprep.mubr.bf16.mxu0 %v3447
        %3547 = vmatmul.mubr.bf16.gmra.mrb[0].mxu0 %v3289
        %v3548 = vpop.f32.mrb[0].mxu0
        %v3549 = vadd.f32 0.0, %v3548
        %v3550 = vpop.f32.mrb[0].mxu0
        %v3551 = vpop.f32.mrb[0].mxu0
        %v3552 = vadd.f32 0.0, %v3551
        %v3553 = vpop.f32.mrb[0].mxu0
        %3554 = vmatprep.mubr.bf16.mxu0 %v3450
        %3555 = vmatmul.mubr.bf16.gmra.mrb[0].mxu0 %v3291
        %v3556 = vpop.f32.mrb[0].mxu0
        %v3557 = vadd.f32 0.0, %v3556
        %v3558 = vpop.f32.mrb[0].mxu0
        %v3559 = vpop.f32.mrb[0].mxu0
        %v3560 = vadd.f32 0.0, %v3559
        %v3561 = vpop.f32.mrb[0].mxu0
        %3562 = vmatprep.mubr.bf16.mxu0 %v3453
        %3563 = vmatmul.mubr.bf16.gmra.mrb[0].mxu0 %v3293
        %v3564 = vpop.f32.mrb[0].mxu0
        %v3565 = vadd.f32 0.0, %v3564
        %v3566 = vpop.f32.mrb[0].mxu0
        %v3567 = vpop.f32.mrb[0].mxu0
        %v3568 = vadd.f32 0.0, %v3567
        %v3569 = vpop.f32.mrb[0].mxu0
        %3570 = vmatprep.mubr.bf16.mxu0 %v3456
        %3571 = vmatmul.mubr.bf16.gmra.mrb[0].mxu0 %v3295
        %v3572 = vpop.f32.mrb[0].mxu0
        %v3573 = vadd.f32 0.0, %v3572
        %v3574 = vpop.f32.mrb[0].mxu0
        %v3575 = vpop.f32.mrb[0].mxu0
        %v3576 = vadd.f32 0.0, %v3575
        %v3577 = vpop.f32.mrb[0].mxu0
        %3578 = vmatprep.mubr.bf16.mxu0 %v3459
        %3579 = vmatmul.mubr.bf16.gmra.mrb[0].mxu0 %v3297
        %v3580 = vpop.f32.mrb[0].mxu0
        %v3581 = vadd.f32 0.0, %v3580
        %v3582 = vpop.f32.mrb[0].mxu0
        %v3583 = vpop.f32.mrb[0].mxu0
        %v3584 = vadd.f32 0.0, %v3583
        %v3585 = vpop.f32.mrb[0].mxu0
        %3586 = vmatprep.mubr.bf16.mxu0 %v3462
        %3587 = vmatmul.mubr.bf16.gmra.mrb[0].mxu0 %v3299
        %v3588 = vpop.f32.mrb[0].mxu0
        %v3589 = vadd.f32 0.0, %v3588
        %v3590 = vpop.f32.mrb[0].mxu0
        %v3591 = vpop.f32.mrb[0].mxu0
        %v3592 = vadd.f32 0.0, %v3591
        %v3593 = vpop.f32.mrb[0].mxu0
        %3594 = vmatprep.mubr.bf16.mxu0 %v3465
        %3595 = vmatmul.mubr.bf16.gmra.mrb[0].mxu0 %v3301
        %v3596 = vpop.f32.mrb[0].mxu0
        %v3597 = vadd.f32 0.0, %v3596
        %v3598 = vpop.f32.mrb[0].mxu0
        %v3599 = vpop.f32.mrb[0].mxu0
        %v3600 = vadd.f32 0.0, %v3599
        %v3601 = vpop.f32.mrb[0].mxu0
        %3602 = vmatprep.mubr.bf16.mxu0 %v3468
        %3603 = vmatmul.mubr.bf16.gmra.mrb[0].mxu0 %v3303
        %v3604 = vpop.f32.mrb[0].mxu0
        %v3605 = vadd.f32 0.0, %v3604
        %v3606 = vpop.f32.mrb[0].mxu0
        %v3607 = vpop.f32.mrb[0].mxu0
        %v3608 = vadd.f32 0.0, %v3607
        %v3609 = vpop.f32.mrb[0].mxu0
        %3610 = vmatprep.mubr.bf16.mxu0 %v3471
        %3611 = vmatmul.mubr.bf16.gmra.mrb[0].mxu0 %v3305
        %v3612 = vpop.f32.mrb[0].mxu0
        %v3613 = vadd.f32 0.0, %v3612
        %v3614 = vpop.f32.mrb[0].mxu0
        %v3615 = vpop.f32.mrb[0].mxu0
        %v3616 = vadd.f32 0.0, %v3615
        %v3617 = vpop.f32.mrb[0].mxu0
        %3618 = vmatprep.mubr.bf16.mxu0 %v3474
        %3619 = vmatmul.mubr.bf16.gmra.mrb[0].mxu0 %v3307
        %v3620 = vpop.f32.mrb[0].mxu0
        %v3621 = vadd.f32 0.0, %v3620
        %v3622 = vpop.f32.mrb[0].mxu0
        %v3623 = vpop.f32.mrb[0].mxu0
        %v3624 = vadd.f32 0.0, %v3623
        %v3625 = vpop.f32.mrb[0].mxu0
        %3626 = vmatprep.mubr.bf16.mxu0 %v3477
        %3627 = vmatmul.mubr.bf16.gmra.mrb[0].mxu0 %v3309
        %v3628 = vpop.f32.mrb[0].mxu0
        %v3629 = vadd.f32 0.0, %v3628
        %v3630 = vpop.f32.mrb[0].mxu0
        %v3631 = vpop.f32.mrb[0].mxu0
        %v3632 = vadd.f32 0.0, %v3631
        %v3633 = vpop.f32.mrb[0].mxu0
        %3634 = vmatprep.mubr.bf16.mxu0 %v3480
        %3635 = vmatmul.mubr.bf16.gmra.mrb[0].mxu0 %v3335
        %v3636 = vpop.f32.mrb[0].mxu0
        %v3637 = vadd.f32 0.0, %v3636
        %v3638 = vpop.f32.mrb[0].mxu0
        %v3639 = vpop.f32.mrb[0].mxu0
        %v3640 = vadd.f32 0.0, %v3639
        %v3641 = vpop.f32.mrb[0].mxu0
        %3642 = vdwg.mxu0
        %v3667 = vunpack.c.l.b16 %v3311
        %v3668 = vunpack.c.l.b16 %v3312
        %v3669 = vunpack.c.l.b16 %v3313
        %v3670 = vunpack.c.l.b16 %v3314
        %v3671 = vunpack.c.l.b16 %v3315
        %v3672 = vunpack.c.l.b16 %v3316
        %v3673 = vunpack.c.l.b16 %v3317
        %v3674 = vunpack.c.l.b16 %v3318
        %v3675 = vunpack.c.l.b16 %v3319
        %v3676 = vunpack.c.l.b16 %v3320
        %v3677 = vunpack.c.l.b16 %v3321
        %v3678 = vunpack.c.l.b16 %v3322
        %v3679 = vunpack.c.l.b16 %v3323
        %v3680 = vunpack.c.l.b16 %v3324
        %v3681 = vunpack.c.l.b16 %v3325
        %v3682 = vunpack.c.l.b16 %v3326
        %v3683 = vunpack.c.l.b16 %v3327
        %v3684 = vunpack.c.l.b16 %v3328
        %v3685 = vunpack.c.l.b16 %v3329
        %v3686 = vunpack.c.l.b16 %v3330
        %v3687 = vunpack.c.l.b16 %v3331
        %v3688 = vunpack.c.l.b16 %v3332
        %v3689 = vunpack.c.l.b16 %v3333
        %v3690 = vunpack.c.l.b16 %v3334
        %v3691 = vpack.c.b16 %v3668, %v3667
        %v3692 = vpack.c.b16 %v3670, %v3669
        %v3693 = vpack.c.b16 %v3672, %v3671
        %v3694 = vpack.c.b16 %v3674, %v3673
        %v3695 = vpack.c.b16 %v3676, %v3675
        %v3696 = vpack.c.b16 %v3678, %v3677
        %v3697 = vpack.c.b16 %v3680, %v3679
        %v3698 = vpack.c.b16 %v3682, %v3681
        %v3699 = vpack.c.b16 %v3684, %v3683
        %v3700 = vpack.c.b16 %v3686, %v3685
        %v3701 = vpack.c.b16 %v3688, %v3687
        %v3702 = vpack.c.b16 %v3690, %v3689
        %v3716 = vsel %vm470, %v3280, 0
        %3718 = vmatprep.subr.bf16.mxu0 0
        %3719 = vmatpush1.bf16.msra.mxu0 %v3691
        %3720 = vmatprep.subr.bf16.mxu0 0
        %3721 = vmatpush1.bf16.msra.mxu0 %v3692
        %3722 = vmatprep.subr.bf16.mxu0 0
        %3723 = vmatpush1.bf16.msra.mxu0 %v3693
        %3724 = vmatprep.subr.bf16.mxu0 0
        %3725 = vmatpush1.bf16.msra.mxu0 %v3694
        %3726 = vmatprep.subr.bf16.mxu0 0
        %3727 = vmatpush1.bf16.msra.mxu0 %v3695
        %3728 = vmatprep.subr.bf16.mxu0 0
        %3729 = vmatpush1.bf16.msra.mxu0 %v3696
        %3730 = vmatprep.subr.bf16.mxu0 0
        %3731 = vmatpush1.bf16.msra.mxu0 %v3697
        %3732 = vmatprep.subr.bf16.mxu0 0
        %3733 = vmatpush1.bf16.msra.mxu0 %v3698
        %3734 = vmatprep.subr.bf16.mxu0 0
        %3735 = vmatpush1.bf16.msra.mxu0 %v3699
        %3736 = vmatprep.subr.bf16.mxu0 0
        %3737 = vmatpush1.bf16.msra.mxu0 %v3700
        %3738 = vmatprep.subr.bf16.mxu0 0
        %3739 = vmatpush1.bf16.msra.mxu0 %v3701
        %3740 = vmatprep.subr.bf16.mxu0 0
        %3741 = vmatpush1.bf16.msra.mxu0 %v3702
        %3742 = vmatprep.subr.bf16.mxu0 0
        %3743 = vmatpush1.bf16.msra.mxu0 0
        %3744 = vmatprep.subr.bf16.mxu0 0
        %3745 = vmatpush1.bf16.msra.mxu0 0
        %3746 = vmatprep.subr.bf16.mxu0 0
        %3747 = vmatpush1.bf16.msra.mxu0 0
        %3748 = vmatprep.subr.bf16.mxu0 0
        %3749 = vmatpush1.bf16.msra.mxu0 0
        %3750 = vmatprep.mubr.bf16.mxu0 %v3716
        %3751 = vmatmul.mubr.bf16.gmra.mrb[0].mxu0 %v3279
        %v3752 = vpop.f32.mrb[0].mxu0
        %v3753 = vadd.f32 %v3517, %v3752
        %v3754 = vpop.f32.mrb[0].mxu0
        %v3755 = vpop.f32.mrb[0].mxu0
        %v3756 = vadd.f32 %v3520, %v3755
        %v3757 = vpop.f32.mrb[0].mxu0
        %3758 = vmatprep.mubr.bf16.mxu0 %v3435
        %3759 = vmatmul.mubr.bf16.gmra.mrb[0].mxu0 %v3281
        %v3760 = vpop.f32.mrb[0].mxu0
        %v3761 = vadd.f32 %v3525, %v3760
        %v3762 = vpop.f32.mrb[0].mxu0
        %v3763 = vpop.f32.mrb[0].mxu0
        %v3764 = vadd.f32 %v3528, %v3763
        %v3765 = vpop.f32.mrb[0].mxu0
        %3766 = vmatprep.mubr.bf16.mxu0 %v3438
        %3767 = vmatmul.mubr.bf16.gmra.mrb[0].mxu0 %v3283
        %v3768 = vpop.f32.mrb[0].mxu0
        %v3769 = vadd.f32 %v3533, %v3768
        %v3770 = vpop.f32.mrb[0].mxu0
        %v3771 = vpop.f32.mrb[0].mxu0
        %v3772 = vadd.f32 %v3536, %v3771
        %v3773 = vpop.f32.mrb[0].mxu0
        %3774 = vmatprep.mubr.bf16.mxu0 %v3441
        %3775 = vmatmul.mubr.bf16.gmra.mrb[0].mxu0 %v3285
        %v3776 = vpop.f32.mrb[0].mxu0
        %v3777 = vadd.f32 %v3541, %v3776
        %v3778 = vpop.f32.mrb[0].mxu0
        %v3779 = vpop.f32.mrb[0].mxu0
        %v3780 = vadd.f32 %v3544, %v3779
        %v3781 = vpop.f32.mrb[0].mxu0
        %3782 = vmatprep.mubr.bf16.mxu0 %v3444
        %3783 = vmatmul.mubr.bf16.gmra.mrb[0].mxu0 %v3287
        %v3784 = vpop.f32.mrb[0].mxu0
        %v3785 = vadd.f32 %v3549, %v3784
        %v3786 = vpop.f32.mrb[0].mxu0
        %v3787 = vpop.f32.mrb[0].mxu0
        %v3788 = vadd.f32 %v3552, %v3787
        %v3789 = vpop.f32.mrb[0].mxu0
        %3790 = vmatprep.mubr.bf16.mxu0 %v3447
        %3791 = vmatmul.mubr.bf16.gmra.mrb[0].mxu0 %v3289
        %v3792 = vpop.f32.mrb[0].mxu0
        %v3793 = vadd.f32 %v3557, %v3792
        %v3794 = vpop.f32.mrb[0].mxu0
        %v3795 = vpop.f32.mrb[0].mxu0
        %v3796 = vadd.f32 %v3560, %v3795
        %v3797 = vpop.f32.mrb[0].mxu0
        %3798 = vmatprep.mubr.bf16.mxu0 %v3450
        %3799 = vmatmul.mubr.bf16.gmra.mrb[0].mxu0 %v3291
        %v3800 = vpop.f32.mrb[0].mxu0
        %v3801 = vadd.f32 %v3565, %v3800
        %v3802 = vpop.f32.mrb[0].mxu0
        %v3803 = vpop.f32.mrb[0].mxu0
        %v3804 = vadd.f32 %v3568, %v3803
        %v3805 = vpop.f32.mrb[0].mxu0
        %3806 = vmatprep.mubr.bf16.mxu0 %v3453
        %3807 = vmatmul.mubr.bf16.gmra.mrb[0].mxu0 %v3293
        %v3808 = vpop.f32.mrb[0].mxu0
        %v3809 = vadd.f32 %v3573, %v3808
        %v3810 = vpop.f32.mrb[0].mxu0
        %v3811 = vpop.f32.mrb[0].mxu0
        %v3812 = vadd.f32 %v3576, %v3811
        %v3813 = vpop.f32.mrb[0].mxu0
        %3814 = vmatprep.mubr.bf16.mxu0 %v3456
        %3815 = vmatmul.mubr.bf16.gmra.mrb[0].mxu0 %v3295
        %v3816 = vpop.f32.mrb[0].mxu0
        %v3817 = vadd.f32 %v3581, %v3816
        %v3818 = vpop.f32.mrb[0].mxu0
        %v3819 = vpop.f32.mrb[0].mxu0
        %v3820 = vadd.f32 %v3584, %v3819
        %v3821 = vpop.f32.mrb[0].mxu0
        %3822 = vmatprep.mubr.bf16.mxu0 %v3459
        %3823 = vmatmul.mubr.bf16.gmra.mrb[0].mxu0 %v3297
        %v3824 = vpop.f32.mrb[0].mxu0
        %v3825 = vadd.f32 %v3589, %v3824
        %v3826 = vpop.f32.mrb[0].mxu0
        %v3827 = vpop.f32.mrb[0].mxu0
        %v3828 = vadd.f32 %v3592, %v3827
        %v3829 = vpop.f32.mrb[0].mxu0
        %3830 = vmatprep.mubr.bf16.mxu0 %v3462
        %3831 = vmatmul.mubr.bf16.gmra.mrb[0].mxu0 %v3299
        %v3832 = vpop.f32.mrb[0].mxu0
        %v3833 = vadd.f32 %v3597, %v3832
        %v3834 = vpop.f32.mrb[0].mxu0
        %v3835 = vpop.f32.mrb[0].mxu0
        %v3836 = vadd.f32 %v3600, %v3835
        %v3837 = vpop.f32.mrb[0].mxu0
        %3838 = vmatprep.mubr.bf16.mxu0 %v3465
        %3839 = vmatmul.mubr.bf16.gmra.mrb[0].mxu0 %v3301
        %v3840 = vpop.f32.mrb[0].mxu0
        %v3841 = vadd.f32 %v3605, %v3840
        %v3842 = vpop.f32.mrb[0].mxu0
        %v3843 = vpop.f32.mrb[0].mxu0
        %v3844 = vadd.f32 %v3608, %v3843
        %v3845 = vpop.f32.mrb[0].mxu0
        %3846 = vmatprep.mubr.bf16.mxu0 %v3468
        %3847 = vmatmul.mubr.bf16.gmra.mrb[0].mxu0 %v3303
        %v3848 = vpop.f32.mrb[0].mxu0
        %v3849 = vadd.f32 %v3613, %v3848
        %v3850 = vpop.f32.mrb[0].mxu0
        %v3851 = vpop.f32.mrb[0].mxu0
        %v3852 = vadd.f32 %v3616, %v3851
        %v3853 = vpop.f32.mrb[0].mxu0
        %3854 = vmatprep.mubr.bf16.mxu0 %v3471
        %3855 = vmatmul.mubr.bf16.gmra.mrb[0].mxu0 %v3305
        %v3856 = vpop.f32.mrb[0].mxu0
        %v3857 = vadd.f32 %v3621, %v3856
        %v3858 = vpop.f32.mrb[0].mxu0
        %v3859 = vpop.f32.mrb[0].mxu0
        %v3860 = vadd.f32 %v3624, %v3859
        %v3861 = vpop.f32.mrb[0].mxu0
        %3862 = vmatprep.mubr.bf16.mxu0 %v3474
        %3863 = vmatmul.mubr.bf16.gmra.mrb[0].mxu0 %v3307
        %v3864 = vpop.f32.mrb[0].mxu0
        %v3865 = vadd.f32 %v3629, %v3864
        %v3866 = vpop.f32.mrb[0].mxu0
        %v3867 = vpop.f32.mrb[0].mxu0
        %v3868 = vadd.f32 %v3632, %v3867
        %v3869 = vpop.f32.mrb[0].mxu0
        %3870 = vmatprep.mubr.bf16.mxu0 %v3477
        %3871 = vmatmul.mubr.bf16.gmra.mrb[0].mxu0 %v3309
        %v3872 = vpop.f32.mrb[0].mxu0
        %v3873 = vadd.f32 %v3637, %v3872
        %v3874 = vpop.f32.mrb[0].mxu0
        %v3875 = vpop.f32.mrb[0].mxu0
        %v3876 = vadd.f32 %v3640, %v3875
        %v3877 = vpop.f32.mrb[0].mxu0
        %3878 = vdwg.mxu0
        %v3879 = vld [vmem:[#allocation2 + $0x20] sm:$0xff]
        %v3880 = vld [vmem:[#allocation2 + $0x28] sm:$0xff]
        %v3881 = vld [vmem:[#allocation2 + $0x30] sm:$0xff]
        %v3882 = vld [vmem:[#allocation2 + $0x38] sm:$0xff]
        %v3883 = vld [vmem:[#allocation2 + $0x40] sm:$0xff]
        %v3884 = vld [vmem:[#allocation2 + $0x48] sm:$0xff]
        %v3885 = vld [vmem:[#allocation2 + $0x50] sm:$0xff]
        %v3886 = vld [vmem:[#allocation2 + $0x58] sm:$0xff]
        %v3887 = vld [vmem:[#allocation2 + $0x60] sm:$0xff]
        %v3888 = vld [vmem:[#allocation2 + $0x68] sm:$0xff]
        %v3889 = vld [vmem:[#allocation2 + $0x70] sm:$0xff]
        %v3890 = vld [vmem:[#allocation2 + $0x78] sm:$0xff]
        %v3891 = vld [vmem:[#allocation2 + $0x80] sm:$0xff]
        %v3892 = vld [vmem:[#allocation2 + $0x88] sm:$0xff]
        %v3893 = vld [vmem:[#allocation2 + $0x90] sm:$0xff]
        %v3894 = vld [vmem:[#allocation2 + $0x98] sm:$0xff]
        %v3895 = vld [vmem:[#allocation2 + $0xa0] sm:$0xff]
        %v3896 = vld [vmem:[#allocation2 + $0xa8] sm:$0xff]
        %v3897 = vld [vmem:[#allocation2 + $0xb0] sm:$0xff]
        %v3898 = vld [vmem:[#allocation2 + $0xb8] sm:$0xff]
        %v3899 = vld [vmem:[#allocation2 + $0xc0] sm:$0xff]
        %v3900 = vld [vmem:[#allocation2 + $0xc8] sm:$0xff]
        %v3901 = vld [vmem:[#allocation2 + $0xd0] sm:$0xff]
        %v3902 = vld [vmem:[#allocation2 + $0xd8] sm:$0xff]
        %v3903 = vld [vmem:[#allocation2 + $0xe0] sm:$0xff]
        %v3904 = vld [vmem:[#allocation2 + $0xe8] sm:$0xff]
        %v3905 = vld [vmem:[#allocation2 + $0xf0] sm:$0xff]
        %v3906 = vld [vmem:[#allocation2 + $0xf8] sm:$0xff]
        %v3907 = vld [vmem:[#allocation2 + $0x100] sm:$0xff]
        %v3908 = vld [vmem:[#allocation2 + $0x108] sm:$0xff]
        %v3909 = vld [vmem:[#allocation2 + $0x110] sm:$0xff]
        %v3910 = vld [vmem:[#allocation2 + $0x118] sm:$0xff]
        %s3911 = scalar_lea.vmem %s3, 192
        %v3912 = vld [vmem:[%s3911] sm:$0xf]
        %v3913 = vld [vmem:[%s3911 + $0x4] sm:$0xf]
        %v3914 = vld [vmem:[%s3911 + $0x8] sm:$0xf]
        %v3915 = vld [vmem:[%s3911 + $0xc] sm:$0xf]
        %v3916 = vld [vmem:[%s3911 + $0x10] sm:$0xf]
        %v3917 = vld [vmem:[%s3911 + $0x14] sm:$0xf]
        %v3918 = vld [vmem:[%s3911 + $0x18] sm:$0xf]
        %v3919 = vld [vmem:[%s3911 + $0x1c] sm:$0xf]
        %v3920 = vld [vmem:[%s3911 + $0x20] sm:$0xf]
        %v3921 = vld [vmem:[%s3911 + $0x24] sm:$0xf]
        %v3922 = vld [vmem:[%s3911 + $0x28] sm:$0xf]
        %v3923 = vld [vmem:[%s3911 + $0x2c] sm:$0xf]
        %v3924 = vld [vmem:[%s3911 + $0x30] sm:$0xf]
        %v3925 = vld [vmem:[%s3911 + $0x34] sm:$0xf]
        %v3926 = vld [vmem:[%s3911 + $0x38] sm:$0xf]
        %v3927 = vld [vmem:[%s3911 + $0x3c] sm:$0xf]
        %v3928 = vld [vmem:[%s3911 + $0x40] sm:$0xf]
        %v3929 = vld [vmem:[%s3911 + $0x44] sm:$0xf]
        %v3930 = vld [vmem:[%s3911 + $0x48] sm:$0xf]
        %v3931 = vld [vmem:[%s3911 + $0x4c] sm:$0xf]
        %v3932 = vld [vmem:[%s3911 + $0x50] sm:$0xf]
        %v3933 = vld [vmem:[%s3911 + $0x54] sm:$0xf]
        %v3934 = vld [vmem:[%s3911 + $0x58] sm:$0xf]
        %v3935 = vld [vmem:[%s3911 + $0x5c] sm:$0xf]
        %v3960 = vunpack.c.l.b16 %v3912
        %v3961 = vunpack.c.l.b16 %v3913
        %v3962 = vunpack.c.l.b16 %v3914
        %v3963 = vunpack.c.l.b16 %v3915
        %v3964 = vunpack.c.l.b16 %v3916
        %v3965 = vunpack.c.l.b16 %v3917
        %v3966 = vunpack.c.l.b16 %v3918
        %v3967 = vunpack.c.l.b16 %v3919
        %v3968 = vunpack.c.l.b16 %v3920
        %v3969 = vunpack.c.l.b16 %v3921
        %v3970 = vunpack.c.l.b16 %v3922
        %v3971 = vunpack.c.l.b16 %v3923
        %v3972 = vunpack.c.l.b16 %v3924
        %v3973 = vunpack.c.l.b16 %v3925
        %v3974 = vunpack.c.l.b16 %v3926
        %v3975 = vunpack.c.l.b16 %v3927
        %v3976 = vunpack.c.l.b16 %v3928
        %v3977 = vunpack.c.l.b16 %v3929
        %v3978 = vunpack.c.l.b16 %v3930
        %v3979 = vunpack.c.l.b16 %v3931
        %v3980 = vunpack.c.l.b16 %v3932
        %v3981 = vunpack.c.l.b16 %v3933
        %v3982 = vunpack.c.l.b16 %v3934
        %v3983 = vunpack.c.l.b16 %v3935
        %v3984 = vpack.c.b16 %v3961, %v3960
        %v3985 = vpack.c.b16 %v3963, %v3962
        %v3986 = vpack.c.b16 %v3965, %v3964
        %v3987 = vpack.c.b16 %v3967, %v3966
        %v3988 = vpack.c.b16 %v3969, %v3968
        %v3989 = vpack.c.b16 %v3971, %v3970
        %v3990 = vpack.c.b16 %v3973, %v3972
        %v3991 = vpack.c.b16 %v3975, %v3974
        %v3992 = vpack.c.b16 %v3977, %v3976
        %v3993 = vpack.c.b16 %v3979, %v3978
        %v3994 = vpack.c.b16 %v3981, %v3980
        %v3995 = vpack.c.b16 %v3983, %v3982
        %v4009 = vsel %vm470, %v3880, 0
        %v4012 = vsel %vm470, %v3882, 0
        %v4015 = vsel %vm470, %v3884, 0
        %v4018 = vsel %vm470, %v3886, 0
        %v4021 = vsel %vm470, %v3888, 0
        %v4024 = vsel %vm470, %v3890, 0
        %v4027 = vsel %vm470, %v3892, 0
        %v4030 = vsel %vm470, %v3894, 0
        %v4033 = vsel %vm470, %v3896, 0
        %v4036 = vsel %vm470, %v3898, 0
        %v4039 = vsel %vm470, %v3900, 0
        %v4042 = vsel %vm470, %v3902, 0
        %v4045 = vsel %vm470, %v3904, 0
        %v4048 = vsel %vm470, %v3906, 0
        %v4051 = vsel %vm470, %v3908, 0
        %v4054 = vsel %vm470, %v3910, 0
        %4056 = vmatprep.subr.bf16.mxu0 0
        %4057 = vmatpush1.bf16.msra.mxu0 %v3984
        %4058 = vmatprep.subr.bf16.mxu0 0
        %4059 = vmatpush1.bf16.msra.mxu0 %v3985
        %4060 = vmatprep.subr.bf16.mxu0 0
        %4061 = vmatpush1.bf16.msra.mxu0 %v3986
        %4062 = vmatprep.subr.bf16.mxu0 0
        %4063 = vmatpush1.bf16.msra.mxu0 %v3987
        %4064 = vmatprep.subr.bf16.mxu0 0
        %4065 = vmatpush1.bf16.msra.mxu0 %v3988
        %4066 = vmatprep.subr.bf16.mxu0 0
        %4067 = vmatpush1.bf16.msra.mxu0 %v3989
        %4068 = vmatprep.subr.bf16.mxu0 0
        %4069 = vmatpush1.bf16.msra.mxu0 %v3990
        %4070 = vmatprep.subr.bf16.mxu0 0
        %4071 = vmatpush1.bf16.msra.mxu0 %v3991
        %4072 = vmatprep.subr.bf16.mxu0 0
        %4073 = vmatpush1.bf16.msra.mxu0 %v3992
        %4074 = vmatprep.subr.bf16.mxu0 0
        %4075 = vmatpush1.bf16.msra.mxu0 %v3993
        %4076 = vmatprep.subr.bf16.mxu0 0
        %4077 = vmatpush1.bf16.msra.mxu0 %v3994
        %4078 = vmatprep.subr.bf16.mxu0 0
        %4079 = vmatpush1.bf16.msra.mxu0 %v3995
        %4080 = vmatprep.subr.bf16.mxu0 0
        %4081 = vmatpush1.bf16.msra.mxu0 0
        %4082 = vmatprep.subr.bf16.mxu0 0
        %4083 = vmatpush1.bf16.msra.mxu0 0
        %4084 = vmatprep.subr.bf16.mxu0 0
        %4085 = vmatpush1.bf16.msra.mxu0 0
        %4086 = vmatprep.subr.bf16.mxu0 0
        %4087 = vmatpush1.bf16.msra.mxu0 0
        %4088 = vmatprep.mubr.bf16.mxu0 %v4009
        %4089 = vmatmul.mubr.bf16.gmra.mrb[0].mxu0 %v3879
        %v4090 = vpop.f32.mrb[0].mxu0
        %v4091 = vadd.f32 0.0, %v4090
        %v4092 = vpop.f32.mrb[0].mxu0
        %v4093 = vpop.f32.mrb[0].mxu0
        %v4094 = vadd.f32 0.0, %v4093
        %v4095 = vpop.f32.mrb[0].mxu0
        %4096 = vmatprep.mubr.bf16.mxu0 %v4012
        %4097 = vmatmul.mubr.bf16.gmra.mrb[0].mxu0 %v3881
        %v4098 = vpop.f32.mrb[0].mxu0
        %v4099 = vadd.f32 0.0, %v4098
        %v4100 = vpop.f32.mrb[0].mxu0
        %v4101 = vpop.f32.mrb[0].mxu0
        %v4102 = vadd.f32 0.0, %v4101
        %v4103 = vpop.f32.mrb[0].mxu0
        %4104 = vmatprep.mubr.bf16.mxu0 %v4015
        %4105 = vmatmul.mubr.bf16.gmra.mrb[0].mxu0 %v3883
        %v4106 = vpop.f32.mrb[0].mxu0
        %v4107 = vadd.f32 0.0, %v4106
        %v4108 = vpop.f32.mrb[0].mxu0
        %v4109 = vpop.f32.mrb[0].mxu0
        %v4110 = vadd.f32 0.0, %v4109
        %v4111 = vpop.f32.mrb[0].mxu0
        %4112 = vmatprep.mubr.bf16.mxu0 %v4018
        %4113 = vmatmul.mubr.bf16.gmra.mrb[0].mxu0 %v3885
        %v4114 = vpop.f32.mrb[0].mxu0
        %v4115 = vadd.f32 0.0, %v4114
        %v4116 = vpop.f32.mrb[0].mxu0
        %v4117 = vpop.f32.mrb[0].mxu0
        %v4118 = vadd.f32 0.0, %v4117
        %v4119 = vpop.f32.mrb[0].mxu0
        %4120 = vmatprep.mubr.bf16.mxu0 %v4021
        %4121 = vmatmul.mubr.bf16.gmra.mrb[0].mxu0 %v3887
        %v4122 = vpop.f32.mrb[0].mxu0
        %v4123 = vadd.f32 0.0, %v4122
        %v4124 = vpop.f32.mrb[0].mxu0
        %v4125 = vpop.f32.mrb[0].mxu0
        %v4126 = vadd.f32 0.0, %v4125
        %v4127 = vpop.f32.mrb[0].mxu0
        %4128 = vmatprep.mubr.bf16.mxu0 %v4024
        %4129 = vmatmul.mubr.bf16.gmra.mrb[0].mxu0 %v3889
        %v4130 = vpop.f32.mrb[0].mxu0
        %v4131 = vadd.f32 0.0, %v4130
        %v4132 = vpop.f32.mrb[0].mxu0
        %v4133 = vpop.f32.mrb[0].mxu0
        %v4134 = vadd.f32 0.0, %v4133
        %v4135 = vpop.f32.mrb[0].mxu0
        %4136 = vmatprep.mubr.bf16.mxu0 %v4027
        %4137 = vmatmul.mubr.bf16.gmra.mrb[0].mxu0 %v3891
        %v4138 = vpop.f32.mrb[0].mxu0
        %v4139 = vadd.f32 0.0, %v4138
        %v4140 = vpop.f32.mrb[0].mxu0
        %v4141 = vpop.f32.mrb[0].mxu0
        %v4142 = vadd.f32 0.0, %v4141
        %v4143 = vpop.f32.mrb[0].mxu0
        %4144 = vmatprep.mubr.bf16.mxu0 %v4030
        %4145 = vmatmul.mubr.bf16.gmra.mrb[0].mxu0 %v3893
        %v4146 = vpop.f32.mrb[0].mxu0
        %v4147 = vadd.f32 0.0, %v4146
        %v4148 = vpop.f32.mrb[0].mxu0
        %v4149 = vpop.f32.mrb[0].mxu0
        %v4150 = vadd.f32 0.0, %v4149
        %v4151 = vpop.f32.mrb[0].mxu0
        %4152 = vmatprep.mubr.bf16.mxu0 %v4033
        %4153 = vmatmul.mubr.bf16.gmra.mrb[0].mxu0 %v3895
        %v4154 = vpop.f32.mrb[0].mxu0
        %v4155 = vadd.f32 0.0, %v4154
        %v4156 = vpop.f32.mrb[0].mxu0
        %v4157 = vpop.f32.mrb[0].mxu0
        %v4158 = vadd.f32 0.0, %v4157
        %v4159 = vpop.f32.mrb[0].mxu0
        %4160 = vmatprep.mubr.bf16.mxu0 %v4036
        %4161 = vmatmul.mubr.bf16.gmra.mrb[0].mxu0 %v3897
        %v4162 = vpop.f32.mrb[0].mxu0
        %v4163 = vadd.f32 0.0, %v4162
        %v4164 = vpop.f32.mrb[0].mxu0
        %v4165 = vpop.f32.mrb[0].mxu0
        %v4166 = vadd.f32 0.0, %v4165
        %v4167 = vpop.f32.mrb[0].mxu0
        %4168 = vmatprep.mubr.bf16.mxu0 %v4039
        %4169 = vmatmul.mubr.bf16.gmra.mrb[0].mxu0 %v3899
        %v4170 = vpop.f32.mrb[0].mxu0
        %v4171 = vadd.f32 0.0, %v4170
        %v4172 = vpop.f32.mrb[0].mxu0
        %v4173 = vpop.f32.mrb[0].mxu0
        %v4174 = vadd.f32 0.0, %v4173
        %v4175 = vpop.f32.mrb[0].mxu0
        %4176 = vmatprep.mubr.bf16.mxu0 %v4042
        %4177 = vmatmul.mubr.bf16.gmra.mrb[0].mxu0 %v3901
        %v4178 = vpop.f32.mrb[0].mxu0
        %v4179 = vadd.f32 0.0, %v4178
        %v4180 = vpop.f32.mrb[0].mxu0
        %v4181 = vpop.f32.mrb[0].mxu0
        %v4182 = vadd.f32 0.0, %v4181
        %v4183 = vpop.f32.mrb[0].mxu0
        %4184 = vmatprep.mubr.bf16.mxu0 %v4045
        %4185 = vmatmul.mubr.bf16.gmra.mrb[0].mxu0 %v3903
        %v4186 = vpop.f32.mrb[0].mxu0
        %v4187 = vadd.f32 0.0, %v4186
        %v4188 = vpop.f32.mrb[0].mxu0
        %v4189 = vpop.f32.mrb[0].mxu0
        %v4190 = vadd.f32 0.0, %v4189
        %v4191 = vpop.f32.mrb[0].mxu0
        %4192 = vmatprep.mubr.bf16.mxu0 %v4048
        %4193 = vmatmul.mubr.bf16.gmra.mrb[0].mxu0 %v3905
        %v4194 = vpop.f32.mrb[0].mxu0
        %v4195 = vadd.f32 0.0, %v4194
        %v4196 = vpop.f32.mrb[0].mxu0
        %v4197 = vpop.f32.mrb[0].mxu0
        %v4198 = vadd.f32 0.0, %v4197
        %v4199 = vpop.f32.mrb[0].mxu0
        %4200 = vmatprep.mubr.bf16.mxu0 %v4051
        %4201 = vmatmul.mubr.bf16.gmra.mrb[0].mxu0 %v3907
        %v4202 = vpop.f32.mrb[0].mxu0
        %v4203 = vadd.f32 0.0, %v4202
        %v4204 = vpop.f32.mrb[0].mxu0
        %v4205 = vpop.f32.mrb[0].mxu0
        %v4206 = vadd.f32 0.0, %v4205
        %v4207 = vpop.f32.mrb[0].mxu0
        %4208 = vmatprep.mubr.bf16.mxu0 %v4054
        %4209 = vmatmul.mubr.bf16.gmra.mrb[0].mxu0 %v3909
        %v4210 = vpop.f32.mrb[0].mxu0
        %v4211 = vadd.f32 0.0, %v4210
        %v4212 = vpop.f32.mrb[0].mxu0
        %v4213 = vpop.f32.mrb[0].mxu0
        %v4214 = vadd.f32 0.0, %v4213
        %v4215 = vpop.f32.mrb[0].mxu0
        %4216 = vdwg.mxu0
        %v4217 = vadd.f32 %v3753, %v4091
        %v4218 = vadd.f32 %v3756, %v4094
        %v4219 = vadd.f32 %v3761, %v4099
        %v4220 = vadd.f32 %v3764, %v4102
        %v4221 = vadd.f32 %v3769, %v4107
        %v4222 = vadd.f32 %v3772, %v4110
        %v4223 = vadd.f32 %v3777, %v4115
        %v4224 = vadd.f32 %v3780, %v4118
        %v4225 = vadd.f32 %v3785, %v4123
        %v4226 = vadd.f32 %v3788, %v4126
        %v4227 = vadd.f32 %v3793, %v4131
        %v4228 = vadd.f32 %v3796, %v4134
        %v4229 = vadd.f32 %v3801, %v4139
        %v4230 = vadd.f32 %v3804, %v4142
        %v4231 = vadd.f32 %v3809, %v4147
        %v4232 = vadd.f32 %v3812, %v4150
        %v4233 = vadd.f32 %v3817, %v4155
        %v4234 = vadd.f32 %v3820, %v4158
        %v4235 = vadd.f32 %v3825, %v4163
        %v4236 = vadd.f32 %v3828, %v4166
        %v4237 = vadd.f32 %v3833, %v4171
        %v4238 = vadd.f32 %v3836, %v4174
        %v4239 = vadd.f32 %v3841, %v4179
        %v4240 = vadd.f32 %v3844, %v4182
        %v4241 = vadd.f32 %v3849, %v4187
        %v4242 = vadd.f32 %v3852, %v4190
        %v4243 = vadd.f32 %v3857, %v4195
        %v4244 = vadd.f32 %v3860, %v4198
        %v4245 = vadd.f32 %v3865, %v4203
        %v4246 = vadd.f32 %v3868, %v4206
        %v4247 = vadd.f32 %v3873, %v4211
        %v4248 = vadd.f32 %v3876, %v4214
        %v4249 = vld [vmem:[%s4] sm:$0x1]
        %v4251 = vlaneseq
        %v4252 = vshrl.u32 %v4251, 7
        %v4253 = vsub.s32 0, %v4252
        %v4254 = vrot.slane %v4249, %v4253
        %v4256 = vadd.f32 %v4217, %v4254
        %v4257 = vadd.f32 %v4218, %v4254
        %v4258 = vadd.f32 %v4219, %v4254
        %v4259 = vadd.f32 %v4220, %v4254
        %v4260 = vadd.f32 %v4221, %v4254
        %v4261 = vadd.f32 %v4222, %v4254
        %v4262 = vadd.f32 %v4223, %v4254
        %v4263 = vadd.f32 %v4224, %v4254
        %v4264 = vadd.f32 %v4225, %v4254
        %v4265 = vadd.f32 %v4226, %v4254
        %v4266 = vadd.f32 %v4227, %v4254
        %v4267 = vadd.f32 %v4228, %v4254
        %v4268 = vadd.f32 %v4229, %v4254
        %v4269 = vadd.f32 %v4230, %v4254
        %v4270 = vadd.f32 %v4231, %v4254
        %v4271 = vadd.f32 %v4232, %v4254
        %v4272 = vadd.f32 %v4233, %v4254
        %v4273 = vadd.f32 %v4234, %v4254
        %v4274 = vadd.f32 %v4235, %v4254
        %v4275 = vadd.f32 %v4236, %v4254
        %v4276 = vadd.f32 %v4237, %v4254
        %v4277 = vadd.f32 %v4238, %v4254
        %v4278 = vadd.f32 %v4239, %v4254
        %v4279 = vadd.f32 %v4240, %v4254
        %v4280 = vadd.f32 %v4241, %v4254
        %v4281 = vadd.f32 %v4242, %v4254
        %v4282 = vadd.f32 %v4243, %v4254
        %v4283 = vadd.f32 %v4244, %v4254
        %v4284 = vadd.f32 %v4245, %v4254
        %v4285 = vadd.f32 %v4246, %v4254
        %v4286 = vadd.f32 %v4247, %v4254
        %v4287 = vadd.f32 %v4248, %v4254
        %v4288 = vadd.f32 %v4256, %v955
        %v4289 = vadd.f32 %v4257, %v956
        %v4290 = vadd.f32 %v4258, %v957
        %v4291 = vadd.f32 %v4259, %v958
        %v4292 = vadd.f32 %v4260, %v959
        %v4293 = vadd.f32 %v4261, %v960
        %v4294 = vadd.f32 %v4262, %v961
        %v4295 = vadd.f32 %v4263, %v962
        %v4296 = vadd.f32 %v4264, %v963
        %v4297 = vadd.f32 %v4265, %v964
        %v4298 = vadd.f32 %v4266, %v965
        %v4299 = vadd.f32 %v4267, %v966
        %v4300 = vadd.f32 %v4268, %v967
        %v4301 = vadd.f32 %v4269, %v968
        %v4302 = vadd.f32 %v4270, %v969
        %v4303 = vadd.f32 %v4271, %v970
        %v4304 = vadd.f32 %v4272, %v971
        %v4305 = vadd.f32 %v4273, %v972
        %v4306 = vadd.f32 %v4274, %v973
        %v4307 = vadd.f32 %v4275, %v974
        %v4308 = vadd.f32 %v4276, %v975
        %v4309 = vadd.f32 %v4277, %v976
        %v4310 = vadd.f32 %v4278, %v977
        %v4311 = vadd.f32 %v4279, %v978
        %v4312 = vadd.f32 %v4280, %v979
        %v4313 = vadd.f32 %v4281, %v980
        %v4314 = vadd.f32 %v4282, %v981
        %v4315 = vadd.f32 %v4283, %v982
        %v4316 = vadd.f32 %v4284, %v983
        %v4317 = vadd.f32 %v4285, %v984
        %v4318 = vadd.f32 %v4286, %v985
        %v4319 = vadd.f32 %v4287, %v986
        %v4320 = vld [vmem:[%s396] sm:$0xff]
        %v4321 = vld [vmem:[%s396 + $0x8] sm:$0xff]
        %v4322 = vld [vmem:[%s396 + $0x10] sm:$0xff]
        %v4323 = vld [vmem:[%s396 + $0x18] sm:$0xff]
        %v4324 = vld [vmem:[%s396 + $0x20] sm:$0xff]
        %v4325 = vld [vmem:[%s396 + $0x28] sm:$0xff]
        %v4326 = vld [vmem:[%s396 + $0x30] sm:$0xff]
        %v4327 = vld [vmem:[%s396 + $0x38] sm:$0xff]
        %v4328 = vld [vmem:[%s396 + $0x40] sm:$0xff]
        %v4329 = vld [vmem:[%s396 + $0x48] sm:$0xff]
        %v4330 = vld [vmem:[%s396 + $0x50] sm:$0xff]
        %v4331 = vld [vmem:[%s396 + $0x58] sm:$0xff]
        %v4332 = vld [vmem:[%s396 + $0x60] sm:$0xff]
        %v4333 = vld [vmem:[%s396 + $0x68] sm:$0xff]
        %v4334 = vld [vmem:[%s396 + $0x70] sm:$0xff]
        %v4335 = vld [vmem:[%s396 + $0x78] sm:$0xff]
        %v4336 = vld [vmem:[%s396 + $0x80] sm:$0xff]
        %v4337 = vld [vmem:[%s396 + $0x88] sm:$0xff]
        %v4338 = vld [vmem:[%s396 + $0x90] sm:$0xff]
        %v4339 = vld [vmem:[%s396 + $0x98] sm:$0xff]
        %v4340 = vld [vmem:[%s396 + $0xa0] sm:$0xff]
        %v4341 = vld [vmem:[%s396 + $0xa8] sm:$0xff]
        %v4342 = vld [vmem:[%s396 + $0xb0] sm:$0xff]
        %v4343 = vld [vmem:[%s396 + $0xb8] sm:$0xff]
        %v4344 = vld [vmem:[%s396 + $0xc0] sm:$0xff]
        %v4345 = vld [vmem:[%s396 + $0xc8] sm:$0xff]
        %v4346 = vld [vmem:[%s396 + $0xd0] sm:$0xff]
        %v4347 = vld [vmem:[%s396 + $0xd8] sm:$0xff]
        %v4348 = vld [vmem:[%s396 + $0xe0] sm:$0xff]
        %v4349 = vld [vmem:[%s396 + $0xe8] sm:$0xff]
        %v4350 = vld [vmem:[%s396 + $0xf0] sm:$0xff]
        %v4351 = vld [vmem:[%s396 + $0xf8] sm:$0xff]
        %v4352 = vmul.f32 %v4320, 0.8
        %v4353 = vmul.f32 %v4321, 0.8
        %v4354 = vmul.f32 %v4322, 0.8
        %v4355 = vmul.f32 %v4323, 0.8
        %v4356 = vmul.f32 %v4324, 0.8
        %v4357 = vmul.f32 %v4325, 0.8
        %v4358 = vmul.f32 %v4326, 0.8
        %v4359 = vmul.f32 %v4327, 0.8
        %v4360 = vmul.f32 %v4328, 0.8
        %v4361 = vmul.f32 %v4329, 0.8
        %v4362 = vmul.f32 %v4330, 0.8
        %v4363 = vmul.f32 %v4331, 0.8
        %v4364 = vmul.f32 %v4332, 0.8
        %v4365 = vmul.f32 %v4333, 0.8
        %v4366 = vmul.f32 %v4334, 0.8
        %v4367 = vmul.f32 %v4335, 0.8
        %v4368 = vmul.f32 %v4336, 0.8
        %v4369 = vmul.f32 %v4337, 0.8
        %v4370 = vmul.f32 %v4338, 0.8
        %v4371 = vmul.f32 %v4339, 0.8
        %v4372 = vmul.f32 %v4340, 0.8
        %v4373 = vmul.f32 %v4341, 0.8
        %v4374 = vmul.f32 %v4342, 0.8
        %v4375 = vmul.f32 %v4343, 0.8
        %v4376 = vmul.f32 %v4344, 0.8
        %v4377 = vmul.f32 %v4345, 0.8
        %v4378 = vmul.f32 %v4346, 0.8
        %v4379 = vmul.f32 %v4347, 0.8
        %v4380 = vmul.f32 %v4348, 0.8
        %v4381 = vmul.f32 %v4349, 0.8
        %v4382 = vmul.f32 %v4350, 0.8
        %v4383 = vmul.f32 %v4351, 0.8
        %v4384 = vadd.f32 %v4352, %v4288
        %v4385 = vadd.f32 %v4353, %v4289
        %v4386 = vadd.f32 %v4354, %v4290
        %v4387 = vadd.f32 %v4355, %v4291
        %v4388 = vadd.f32 %v4356, %v4292
        %v4389 = vadd.f32 %v4357, %v4293
        %v4390 = vadd.f32 %v4358, %v4294
        %v4391 = vadd.f32 %v4359, %v4295
        %v4392 = vadd.f32 %v4360, %v4296
        %v4393 = vadd.f32 %v4361, %v4297
        %v4394 = vadd.f32 %v4362, %v4298
        %v4395 = vadd.f32 %v4363, %v4299
        %v4396 = vadd.f32 %v4364, %v4300
        %v4397 = vadd.f32 %v4365, %v4301
        %v4398 = vadd.f32 %v4366, %v4302
        %v4399 = vadd.f32 %v4367, %v4303
        %v4400 = vadd.f32 %v4368, %v4304
        %v4401 = vadd.f32 %v4369, %v4305
        %v4402 = vadd.f32 %v4370, %v4306
        %v4403 = vadd.f32 %v4371, %v4307
        %v4404 = vadd.f32 %v4372, %v4308
        %v4405 = vadd.f32 %v4373, %v4309
        %v4406 = vadd.f32 %v4374, %v4310
        %v4407 = vadd.f32 %v4375, %v4311
        %v4408 = vadd.f32 %v4376, %v4312
        %v4409 = vadd.f32 %v4377, %v4313
        %v4410 = vadd.f32 %v4378, %v4314
        %v4411 = vadd.f32 %v4379, %v4315
        %v4412 = vadd.f32 %v4380, %v4316
        %v4413 = vadd.f32 %v4381, %v4317
        %v4414 = vadd.f32 %v4382, %v4318
        %v4415 = vadd.f32 %v4383, %v4319
        %4416 = vst.msk [vmem:[%s450] sm:$0xff] %vm470, %v4384
        %4417 = vst.msk [vmem:[%s450 + $0x8] sm:$0xff] %vm470, %v4385
        %4418 = vst.msk [vmem:[%s450 + $0x10] sm:$0xff] %vm470, %v4386
        %4419 = vst.msk [vmem:[%s450 + $0x18] sm:$0xff] %vm470, %v4387
        %4420 = vst.msk [vmem:[%s450 + $0x20] sm:$0xff] %vm470, %v4388
        %4421 = vst.msk [vmem:[%s450 + $0x28] sm:$0xff] %vm470, %v4389
        %4422 = vst.msk [vmem:[%s450 + $0x30] sm:$0xff] %vm470, %v4390
        %4423 = vst.msk [vmem:[%s450 + $0x38] sm:$0xff] %vm470, %v4391
        %4424 = vst.msk [vmem:[%s450 + $0x40] sm:$0xff] %vm470, %v4392
        %4425 = vst.msk [vmem:[%s450 + $0x48] sm:$0xff] %vm470, %v4393
        %4426 = vst.msk [vmem:[%s450 + $0x50] sm:$0xff] %vm470, %v4394
        %4427 = vst.msk [vmem:[%s450 + $0x58] sm:$0xff] %vm470, %v4395
        %4428 = vst.msk [vmem:[%s450 + $0x60] sm:$0xff] %vm470, %v4396
        %4429 = vst.msk [vmem:[%s450 + $0x68] sm:$0xff] %vm470, %v4397
        %4430 = vst.msk [vmem:[%s450 + $0x70] sm:$0xff] %vm470, %v4398
        %4431 = vst.msk [vmem:[%s450 + $0x78] sm:$0xff] %vm470, %v4399
        %4432 = vst.msk [vmem:[%s450 + $0x80] sm:$0xff] %vm470, %v4400
        %4433 = vst.msk [vmem:[%s450 + $0x88] sm:$0xff] %vm470, %v4401
        %4434 = vst.msk [vmem:[%s450 + $0x90] sm:$0xff] %vm470, %v4402
        %4435 = vst.msk [vmem:[%s450 + $0x98] sm:$0xff] %vm470, %v4403
        %4436 = vst.msk [vmem:[%s450 + $0xa0] sm:$0xff] %vm470, %v4404
        %4437 = vst.msk [vmem:[%s450 + $0xa8] sm:$0xff] %vm470, %v4405
        %4438 = vst.msk [vmem:[%s450 + $0xb0] sm:$0xff] %vm470, %v4406
        %4439 = vst.msk [vmem:[%s450 + $0xb8] sm:$0xff] %vm470, %v4407
        %4440 = vst.msk [vmem:[%s450 + $0xc0] sm:$0xff] %vm470, %v4408
        %4441 = vst.msk [vmem:[%s450 + $0xc8] sm:$0xff] %vm470, %v4409
        %4442 = vst.msk [vmem:[%s450 + $0xd0] sm:$0xff] %vm470, %v4410
        %4443 = vst.msk [vmem:[%s450 + $0xd8] sm:$0xff] %vm470, %v4411
        %4444 = vst.msk [vmem:[%s450 + $0xe0] sm:$0xff] %vm470, %v4412
        %4445 = vst.msk [vmem:[%s450 + $0xe8] sm:$0xff] %vm470, %v4413
        %4446 = vst.msk [vmem:[%s450 + $0xf0] sm:$0xff] %vm470, %v4414
        %4447 = vst.msk [vmem:[%s450 + $0xf8] sm:$0xff] %vm470, %v4415
        %vm4448 = vcmp.gt.f32.partialorder %v4384, 0.5
        %vm4449 = vcmp.gt.f32.partialorder %v4385, 0.5
        %vm4450 = vcmp.gt.f32.partialorder %v4386, 0.5
        %vm4451 = vcmp.gt.f32.partialorder %v4387, 0.5
        %vm4452 = vcmp.gt.f32.partialorder %v4388, 0.5
        %vm4453 = vcmp.gt.f32.partialorder %v4389, 0.5
        %vm4454 = vcmp.gt.f32.partialorder %v4390, 0.5
        %vm4455 = vcmp.gt.f32.partialorder %v4391, 0.5
        %vm4456 = vcmp.gt.f32.partialorder %v4392, 0.5
        %vm4457 = vcmp.gt.f32.partialorder %v4393, 0.5
        %vm4458 = vcmp.gt.f32.partialorder %v4394, 0.5
        %vm4459 = vcmp.gt.f32.partialorder %v4395, 0.5
        %vm4460 = vcmp.gt.f32.partialorder %v4396, 0.5
        %vm4461 = vcmp.gt.f32.partialorder %v4397, 0.5
        %vm4462 = vcmp.gt.f32.partialorder %v4398, 0.5
        %vm4463 = vcmp.gt.f32.partialorder %v4399, 0.5
        %vm4464 = vcmp.gt.f32.partialorder %v4400, 0.5
        %vm4465 = vcmp.gt.f32.partialorder %v4401, 0.5
        %vm4466 = vcmp.gt.f32.partialorder %v4402, 0.5
        %vm4467 = vcmp.gt.f32.partialorder %v4403, 0.5
        %vm4468 = vcmp.gt.f32.partialorder %v4404, 0.5
        %vm4469 = vcmp.gt.f32.partialorder %v4405, 0.5
        %vm4470 = vcmp.gt.f32.partialorder %v4406, 0.5
        %vm4471 = vcmp.gt.f32.partialorder %v4407, 0.5
        %vm4472 = vcmp.gt.f32.partialorder %v4408, 0.5
        %vm4473 = vcmp.gt.f32.partialorder %v4409, 0.5
        %vm4474 = vcmp.gt.f32.partialorder %v4410, 0.5
        %vm4475 = vcmp.gt.f32.partialorder %v4411, 0.5
        %vm4476 = vcmp.gt.f32.partialorder %v4412, 0.5
        %vm4477 = vcmp.gt.f32.partialorder %v4413, 0.5
        %vm4478 = vcmp.gt.f32.partialorder %v4414, 0.5
        %vm4479 = vcmp.gt.f32.partialorder %v4415, 0.5
        %v4480 = vsel %vm4448, 1, 0
        %v4481 = vsel %vm4449, 1, 0
        %v4482 = vsel %vm4450, 1, 0
        %v4483 = vsel %vm4451, 1, 0
        %v4484 = vsel %vm4452, 1, 0
        %v4485 = vsel %vm4453, 1, 0
        %v4486 = vsel %vm4454, 1, 0
        %v4487 = vsel %vm4455, 1, 0
        %v4488 = vsel %vm4456, 1, 0
        %v4489 = vsel %vm4457, 1, 0
        %v4490 = vsel %vm4458, 1, 0
        %v4491 = vsel %vm4459, 1, 0
        %v4492 = vsel %vm4460, 1, 0
        %v4493 = vsel %vm4461, 1, 0
        %v4494 = vsel %vm4462, 1, 0
        %v4495 = vsel %vm4463, 1, 0
        %v4496 = vsel %vm4464, 1, 0
        %v4497 = vsel %vm4465, 1, 0
        %v4498 = vsel %vm4466, 1, 0
        %v4499 = vsel %vm4467, 1, 0
        %v4500 = vsel %vm4468, 1, 0
        %v4501 = vsel %vm4469, 1, 0
        %v4502 = vsel %vm4470, 1, 0
        %v4503 = vsel %vm4471, 1, 0
        %v4504 = vsel %vm4472, 1, 0
        %v4505 = vsel %vm4473, 1, 0
        %v4506 = vsel %vm4474, 1, 0
        %v4507 = vsel %vm4475, 1, 0
        %v4508 = vsel %vm4476, 1, 0
        %v4509 = vsel %vm4477, 1, 0
        %v4510 = vsel %vm4478, 1, 0
        %v4511 = vsel %vm4479, 1, 0
        %v4512 = vcvt.s32.f32 %v4480
        %v4513 = vcvt.s32.f32 %v4481
        %v4514 = vcvt.s32.f32 %v4482
        %v4515 = vcvt.s32.f32 %v4483
        %v4516 = vcvt.s32.f32 %v4484
        %v4517 = vcvt.s32.f32 %v4485
        %v4518 = vcvt.s32.f32 %v4486
        %v4519 = vcvt.s32.f32 %v4487
        %v4520 = vcvt.s32.f32 %v4488
        %v4521 = vcvt.s32.f32 %v4489
        %v4522 = vcvt.s32.f32 %v4490
        %v4523 = vcvt.s32.f32 %v4491
        %v4524 = vcvt.s32.f32 %v4492
        %v4525 = vcvt.s32.f32 %v4493
        %v4526 = vcvt.s32.f32 %v4494
        %v4527 = vcvt.s32.f32 %v4495
        %v4528 = vcvt.s32.f32 %v4496
        %v4529 = vcvt.s32.f32 %v4497
        %v4530 = vcvt.s32.f32 %v4498
        %v4531 = vcvt.s32.f32 %v4499
        %v4532 = vcvt.s32.f32 %v4500
        %v4533 = vcvt.s32.f32 %v4501
        %v4534 = vcvt.s32.f32 %v4502
        %v4535 = vcvt.s32.f32 %v4503
        %v4536 = vcvt.s32.f32 %v4504
        %v4537 = vcvt.s32.f32 %v4505
        %v4538 = vcvt.s32.f32 %v4506
        %v4539 = vcvt.s32.f32 %v4507
        %v4540 = vcvt.s32.f32 %v4508
        %v4541 = vcvt.s32.f32 %v4509
        %v4542 = vcvt.s32.f32 %v4510
        %v4543 = vcvt.s32.f32 %v4511
        %4544 = vst.msk [vmem:[%s467] sm:$0xff] %vm470, %v4512
        %4545 = vst.msk [vmem:[%s467 + $0x8] sm:$0xff] %vm470, %v4513
        %4546 = vst.msk [vmem:[%s467 + $0x10] sm:$0xff] %vm470, %v4514
        %4547 = vst.msk [vmem:[%s467 + $0x18] sm:$0xff] %vm470, %v4515
        %4548 = vst.msk [vmem:[%s467 + $0x20] sm:$0xff] %vm470, %v4516
        %4549 = vst.msk [vmem:[%s467 + $0x28] sm:$0xff] %vm470, %v4517
        %4550 = vst.msk [vmem:[%s467 + $0x30] sm:$0xff] %vm470, %v4518
        %4551 = vst.msk [vmem:[%s467 + $0x38] sm:$0xff] %vm470, %v4519
        %4552 = vst.msk [vmem:[%s467 + $0x40] sm:$0xff] %vm470, %v4520
        %4553 = vst.msk [vmem:[%s467 + $0x48] sm:$0xff] %vm470, %v4521
        %4554 = vst.msk [vmem:[%s467 + $0x50] sm:$0xff] %vm470, %v4522
        %4555 = vst.msk [vmem:[%s467 + $0x58] sm:$0xff] %vm470, %v4523
        %4556 = vst.msk [vmem:[%s467 + $0x60] sm:$0xff] %vm470, %v4524
        %4557 = vst.msk [vmem:[%s467 + $0x68] sm:$0xff] %vm470, %v4525
        %4558 = vst.msk [vmem:[%s467 + $0x70] sm:$0xff] %vm470, %v4526
        %4559 = vst.msk [vmem:[%s467 + $0x78] sm:$0xff] %vm470, %v4527
        %4560 = vst.msk [vmem:[%s467 + $0x80] sm:$0xff] %vm470, %v4528
        %4561 = vst.msk [vmem:[%s467 + $0x88] sm:$0xff] %vm470, %v4529
        %4562 = vst.msk [vmem:[%s467 + $0x90] sm:$0xff] %vm470, %v4530
        %4563 = vst.msk [vmem:[%s467 + $0x98] sm:$0xff] %vm470, %v4531
        %4564 = vst.msk [vmem:[%s467 + $0xa0] sm:$0xff] %vm470, %v4532
        %4565 = vst.msk [vmem:[%s467 + $0xa8] sm:$0xff] %vm470, %v4533
        %4566 = vst.msk [vmem:[%s467 + $0xb0] sm:$0xff] %vm470, %v4534
        %4567 = vst.msk [vmem:[%s467 + $0xb8] sm:$0xff] %vm470, %v4535
        %4568 = vst.msk [vmem:[%s467 + $0xc0] sm:$0xff] %vm470, %v4536
        %4569 = vst.msk [vmem:[%s467 + $0xc8] sm:$0xff] %vm470, %v4537
        %4570 = vst.msk [vmem:[%s467 + $0xd0] sm:$0xff] %vm470, %v4538
        %4571 = vst.msk [vmem:[%s467 + $0xd8] sm:$0xff] %vm470, %v4539
        %4572 = vst.msk [vmem:[%s467 + $0xe0] sm:$0xff] %vm470, %v4540
        %4573 = vst.msk [vmem:[%s467 + $0xe8] sm:$0xff] %vm470, %v4541
        %4574 = vst.msk [vmem:[%s467 + $0xf0] sm:$0xff] %vm470, %v4542
        %4575 = vst.msk [vmem:[%s467 + $0xf8] sm:$0xff] %vm470, %v4543
        %s4576 = sand.u32 %s204, 1
        %s4577 = scalar_lea.sflag [#allocation5], %s4576
        %s4578 = sand.u32 %s204, 1
        %s4579 = smul.addr %s4578, 256
        %s4580 = scalar_lea.vmem [#allocation8], %s4579
        %s4581 = sand.u32 %s34, 1
        %s4582 = scalar_lea.sflag [#allocation10], %s4581
        %s4583 = sand.u32 %s230, 1
        %s4584 = smul.addr %s4583, 256
        %s4585 = scalar_lea.vmem [#allocation9], %s4584
        %s4586 = sand.u32 %s34, 1
        %s4587 = scalar_lea.sflag [#allocation10], %s4586
        %s4588 = sand.u32 %s256, 1
        %s4589 = smul.addr %s4588, 256
        %s4590 = scalar_lea.vmem [#allocation11], %s4589
        %p4591 = scmp.lt.s32.totalorder %s34, 1
        %s4592 = scalar_select %p4591, %s34, 1
        %s4593 = smul.addr %s4592, 32
        %s4594 = smul.addr %s4593, 8
        %s4595 = scalar_lea.vmem %s10, %s4594
        // Predicated region
        $region57: #{spiking_basic_block_forward.1} parent=47 // pred_check
          %p4596 = pneg %p214
        $region58: #{spiking_basic_block_forward.1} parent=47 // pred_check_branch
          %4598 = sbr.rel (%p4596) target = $region60
        $region59: #{spiking_basic_block_forward.1} parent=47 // pred_region
          %s4600 = ssub.s32 4096, 4096
          %4601 = vsyncadd %s4577, %s4600
          %s4602 = smul.addr %s34, 32
          %s4603 = smul.addr %s4602, 128
          %s4604 = scalar_lea.hbm %s7, %s4603
          %s4605 = sshll.u32 %s4580, 4
          %s4606 = int_to_ptr.vmem [resolvable:$true] %s4605
          %4611 = dma.vmem_to_hbm [thread:$0]  %s4606, 4096, %s4604, %s4577, 128, 128, 8
        $region60: #{spiking_basic_block_forward.1} parent=47 // pred_fallthru
          _
        // Predicated region
        $region61: #{spiking_basic_block_forward.1} parent=47 // pred_check
          %p4612 = pneg %p240
        $region62: #{spiking_basic_block_forward.1} parent=47 // pred_check_branch
          %4614 = sbr.rel (%p4612) target = $region64
        $region63: #{spiking_basic_block_forward.1} parent=47 // pred_region
          %s4616 = ssub.s32 4096, 4096
          %4617 = vsyncadd %s4582, %s4616
          %s4618 = smul.addr %s34, 32
          %s4619 = smul.addr %s4618, 128
          %s4620 = scalar_lea.hbm %s8, %s4619
          %s4621 = sshll.u32 %s4585, 4
          %s4622 = int_to_ptr.vmem [resolvable:$true] %s4621
          %4627 = dma.vmem_to_hbm [thread:$0]  %s4622, 4096, %s4620, %s4582, 128, 128, 8
        $region64: #{spiking_basic_block_forward.1} parent=47 // pred_fallthru
          _
        // Predicated region
        $region65: #{spiking_basic_block_forward.1} parent=47 // pred_check
          %p4628 = pneg %p266
        $region66: #{spiking_basic_block_forward.1} parent=47 // pred_check_branch
          %4630 = sbr.rel (%p4628) target = $region68
        $region67: #{spiking_basic_block_forward.1} parent=47 // pred_region
          %s4632 = ssub.s32 4096, 4096
          %4633 = vsyncadd %s4587, %s4632
          %s4634 = smul.addr %s34, 32
          %s4635 = smul.addr %s4634, 128
          %s4636 = scalar_lea.hbm %s9, %s4635
          %s4637 = sshll.u32 %s4590, 4
          %s4638 = int_to_ptr.vmem [resolvable:$true] %s4637
          %4643 = dma.vmem_to_hbm [thread:$0]  %s4638, 4096, %s4636, %s4587, 128, 128, 8
        $region68: #{spiking_basic_block_forward.1} parent=47 // pred_fallthru
          _
        // Predicated region
        $region69: #{spiking_basic_block_forward.1} parent=47 // pred_check
          %p4644 = pneg %p292
        $region70: #{spiking_basic_block_forward.1} parent=47 // pred_check_branch
          %4646 = sbr.rel (%p4644) target = $region72
        $region71: #{spiking_basic_block_forward.1} parent=47 // pred_region
          _
        $region72: #{spiking_basic_block_forward.1} parent=47 // pred_fallthru
          _
      $region48: #{spiking_basic_block_forward.1} parent=5 // pred_fallthru
        _
      %p4647 = scmp.le.s32.totalorder 2, %s29
      // Predicated region
      $region73: #{spiking_basic_block_forward.1} parent=5 // pred_check
        %p4648 = pneg %p4647
      $region74: #{spiking_basic_block_forward.1} parent=5 // pred_check_branch
        %4650 = sbr.rel (%p4648) target = $region76
      $region75: #{spiking_basic_block_forward.1} parent=5 // pred_region
        %s4651 = ssub.s32 %s29, 2
        // Predicated region
        $region77: #{spiking_basic_block_forward.1} parent=75 // pred_check
          %p4652 = pneg %p220
        $region78: #{spiking_basic_block_forward.1} parent=75 // pred_check_branch
          %4654 = sbr.rel (%p4652) target = $region80
        $region79: #{spiking_basic_block_forward.1} parent=75 // pred_region
          %s4655 = sand.u32 %s205, 1
          %s4656 = scalar_lea.sflag [#allocation5], %s4655
          %s4657 = sand.u32 %s205, 1
          %s4658 = smul.addr %s4657, 256
          %s4659 = scalar_lea.vmem [#allocation8], %s4658
          %4660 = dma.done %s4656, 4096
        $region80: #{spiking_basic_block_forward.1} parent=75 // pred_fallthru
          _
        // Predicated region
        $region81: #{spiking_basic_block_forward.1} parent=75 // pred_check
          %p4661 = pneg %p246
        $region82: #{spiking_basic_block_forward.1} parent=75 // pred_check_branch
          %4663 = sbr.rel (%p4661) target = $region84
        $region83: #{spiking_basic_block_forward.1} parent=75 // pred_region
          %s4664 = sand.u32 %s35, 1
          %s4665 = scalar_lea.sflag [#allocation10], %s4664
          %s4666 = sand.u32 %s231, 1
          %s4667 = smul.addr %s4666, 256
          %s4668 = scalar_lea.vmem [#allocation9], %s4667
          %4669 = dma.done %s4665, 4096
        $region84: #{spiking_basic_block_forward.1} parent=75 // pred_fallthru
          _
        // Predicated region
        $region85: #{spiking_basic_block_forward.1} parent=75 // pred_check
          %p4670 = pneg %p272
        $region86: #{spiking_basic_block_forward.1} parent=75 // pred_check_branch
          %4672 = sbr.rel (%p4670) target = $region88
        $region87: #{spiking_basic_block_forward.1} parent=75 // pred_region
          %s4673 = sand.u32 %s35, 1
          %s4674 = scalar_lea.sflag [#allocation10], %s4673
          %s4675 = sand.u32 %s257, 1
          %s4676 = smul.addr %s4675, 256
          %s4677 = scalar_lea.vmem [#allocation11], %s4676
          %4678 = dma.done %s4674, 4096
        $region88: #{spiking_basic_block_forward.1} parent=75 // pred_fallthru
          _
        // Predicated region
        $region89: #{spiking_basic_block_forward.1} parent=75 // pred_check
          %p4679 = pneg %p298
        $region90: #{spiking_basic_block_forward.1} parent=75 // pred_check_branch
          %4681 = sbr.rel (%p4679) target = $region92
        $region91: #{spiking_basic_block_forward.1} parent=75 // pred_region
          %p4682 = scmp.lt.s32.totalorder %s35, 1
          %s4683 = scalar_select %p4682, %s35, 1
          %s4684 = smul.addr %s4683, 32
          %s4685 = smul.addr %s4684, 8
          %s4686 = scalar_lea.vmem %s10, %s4685
        $region92: #{spiking_basic_block_forward.1} parent=75 // pred_fallthru
          _
      $region76: #{spiking_basic_block_forward.1} parent=5 // pred_fallthru
        _
    $region6: #{spiking_basic_block_forward.1} parent=1 // loop_footer
      %s33 = sadd.s32 1, %s29
    $region7: #{spiking_basic_block_forward.1} parent=1 // loop_footer_branch
      %28 = sbr.rel target = $region3
    $region8: #{spiking_basic_block_forward.1} parent=1 // loop_exit
      _
    %4687 = vsyncpa [#allocation4], 1
    %s4688 = scalar_lea.sflag [#allocation4], 1
    %4689 = vsyncpa %s4688, 1
    %4690 = vsyncpa [#allocation7], 1
    %s4691 = scalar_lea.sflag [#allocation7], 1
    %4692 = vsyncpa %s4691, 1
    %4693 = vsyncpa [#allocation5], 1
    %s4694 = scalar_lea.sflag [#allocation5], 1
    %4695 = vsyncpa %s4694, 1
    %4696 = vsyncpa [#allocation10], 1
    %s4697 = scalar_lea.sflag [#allocation10], 1
    %4698 = vsyncpa %s4697, 1

</llo_original>
